<compile_context>
chip_gen: v7x
topology: tpu7x:2x2x1
jax: 0.10.0
libtpu: 0.0.40
codegen_flags: <defaults>
</compile_context>

<pallas_src>
import math
from collections import namedtuple
from functools import partial

import jax
import jax.numpy as jnp
from jax import lax
from jax.experimental import pallas as pl
from jax.experimental.pallas import tpu as pltpu

Rays = namedtuple("Rays", ("origins", "directions", "viewdirs", "radii", "near", "far"))

# Small-but-consistent configuration (same structure as the module defaults,
# shrunk width / sample count so the example runs instantly).
CFG = dict(
    num_samples=32,
    num_levels=2,
    resample_padding=0.01,
    stop_resample_grad=True,
    use_viewdirs=True,
    disparity=False,
    ray_shape="cone",
    min_deg_point=0,
    max_deg_point=16,
    deg_view=4,
    density_bias=-1.0,
    rgb_padding=0.001,
    disable_integration=False,
    append_identity=True,
    mlp_net_depth=8,
    mlp_net_width=128,
    mlp_net_depth_condition=1,
    mlp_net_width_condition=64,
    mlp_skip_index=4,
    mlp_num_rgb_channels=3,
    mlp_num_density_channels=1,
)

OUT_WIDTH = 8  # packed output lanes: [rgb(3) | density(1) | ignored(4)]


def _cdiv(a, b):
    return -(-a // b)


def _default_fuse_skip():
    """Fuse the skip layer into one K=(W+xyz) matmul only on 256-deep MXUs."""
    try:
        kind = jax.devices()[0].device_kind.lower()
    except Exception:
        return True
    # v2/v3/v4/v5 have 128-deep MXUs: keep the split two-matmul form there.
    return not any(t in kind for t in ("v2", "v3", "v4", "v5"))


def _choose_row_tile(R, S):
    """Row-tile selection (perf review): big tiles, whole rays, megacore-friendly."""
    # Tiles hold whole rays (multiple of S) and bf16-packed sublanes (mult of 16).
    unit = S * 16 // math.gcd(S, 16)
    cap = max(unit, (1024 // unit) * unit)          # cap raised to 1024 rows
    r_unit = _cdiv(R, unit) * unit
    if r_unit <= cap:
        return r_unit                               # grid=1: keep M large, no tiny tiles
    # Multi-step: prefer an even grid with >= 4 steps (2+ steps per v7x TC,
    # balanced cores) while each step keeps >= 256 rows and padding stays small.
    floor = max(256, unit)
    tile = cap
    while tile >= floor:
        steps = _cdiv(r_unit, tile)
        padded = steps * tile
        if steps >= 4 and steps % 2 == 0 and padded - r_unit <= r_unit // 8:
            return tile
        tile -= unit
    return cap


# --------------------------------------------------------------------------
# Pallas kernel: the full MipNeRF MLP (trunk + fused density/bottleneck head
# + view branch + color head) plus the fused rgb sigmoid/padding and density
# softplus activations.  All matmuls bf16 x bf16 -> f32 on the MXU.
# --------------------------------------------------------------------------
def _mlp_kernel(kcfg, x_ref, vc_ref, *refs):
    net_depth = kcfg["net_depth"]
    skip = kcfg["skip_index"]
    depth_cond = kcfg["net_depth_condition"]
    W = kcfg["net_width"]
    rgb_padding = kcfg["rgb_padding"]
    density_bias = kcfg["density_bias"]
    n_rgb = kcfg["num_rgb_channels"]
    n_dens = kcfg["num_density_channels"]
    out_w = kcfg["out_width"]
    fuse_skip = kcfg["fuse_skip"]

    out_ref = refs[-1]
    p = list(refs[:-1])
    idx = [0]

    def take():
        r = p[idx[0]][...]
        idx[0] += 1
        return r

    x = x_ref[...]              # (T, xyz_dim) bf16
    inputs = x                  # encoded samples, kept for the skip connection
    T = x.shape[0]

    # --- trunk ---
    for i in range(net_depth):
        # torch: layer i takes cat([x, inputs]) iff the previous iteration
        # appended the skip connection.
        takes_skip = (i > 1) and ((i - 1) % skip == 0)
        if takes_skip and fuse_skip:
            # v6e/v7x: one K=(W+xyz) pass; the concat boundary is at lane 128
            # (lane-tile aligned), so this is just a vreg copy.
            w, b = take(), take()
            xin = jnp.concatenate([x, inputs], axis=-1)
            pre = jnp.dot(xin, w, preferred_element_type=jnp.float32) + b
        elif takes_skip:
            # v5e and older (128-deep MXU): split form, two K<=128 passes.
            w, w_skip, b = take(), take(), take()
            pre = (jnp.dot(x, w, preferred_element_type=jnp.float32)
                   + jnp.dot(inputs, w_skip, preferred_element_type=jnp.float32)
                   + b)
        else:
            w, b = take(), take()
            pre = jnp.dot(x, w, preferred_element_type=jnp.float32) + b
        x = jnp.maximum(pre, 0.0).astype(jnp.bfloat16)          # ReLU, back to bf16

    # --- fused [bottleneck | density] head: one matmul, lane-aligned slices ---
    w_db, b_db = take(), take()
    db = jnp.dot(x, w_db, preferred_element_type=jnp.float32) + b_db
    h = db[:, :W].astype(jnp.bfloat16)            # bottleneck (no activation)
    raw_density = db[:, W:W + n_dens]             # (T, n_dens) f32

    # --- view-conditioned branch ---
    # vc_ref holds the hoisted per-ray viewdirs_enc @ w_view contribution:
    # either (rays_per_tile, Wc) (expanded to per-sample here, nearly free on
    # the idle VPU/XLU slots) or already (T, Wc) in the fallback layout.
    vc = vc_ref[...]
    if vc.shape[0] != T:
        rpt = vc.shape[0]
        s_per = T // rpt
        vc = jnp.broadcast_to(vc[:, None, :], (rpt, s_per, vc.shape[1]))
        vc = vc.reshape(T, vc.shape[-1])
    for j in range(depth_cond):
        w, b = take(), take()
        pre = jnp.dot(h, w, preferred_element_type=jnp.float32) + b
        if j == 0:
            pre = pre + vc
        h = jnp.maximum(pre, 0.0).astype(jnp.bfloat16)

    # --- color head (weights pre-padded to OUT_WIDTH columns in the wrapper) ---
    wc, bc = take(), take()
    raw_rgb = jnp.dot(h, wc, preferred_element_type=jnp.float32) + bc   # (T, out_w)

    # Fused activations (same semantics as the module's post-MLP ops).
    rgb = 1.0 / (1.0 + jnp.exp(-raw_rgb))                               # sigmoid
    rgb = rgb * (1.0 + 2.0 * rgb_padding) - rgb_padding
    d = raw_density + density_bias
    dens = jnp.maximum(d, 0.0) + jnp.log(1.0 + jnp.exp(-jnp.abs(d)))    # softplus

    # Inject density into lane n_rgb via an iota select (no lane concatenate).
    lane = lax.broadcasted_iota(jnp.int32, (T, out_w), 1)
    packed = jnp.where(lane == n_rgb, jnp.broadcast_to(dens, (T, out_w)), rgb)
    out_ref[...] = packed


def mlp_forward(samples_enc, viewdirs_enc, flat_params, w_view, cfg, fuse_skip):
    """samples_enc: [B, S, xyz_dim] f32; viewdirs_enc: [B, view_dim] f32."""
    B, S, F = samples_enc.shape
    W = cfg["mlp_net_width"]
    Wc = cfg["mlp_net_width_condition"]
    n_rgb = cfg["mlp_num_rgb_channels"]
    n_dens = cfg["mlp_num_density_channels"]
    R = B * S

    tile = _choose_row_tile(R, S)
    R_pad = _cdiv(R, tile) * tile
    grid = (R_pad // tile,)

    # bf16 activations for the MXU (accumulation stays f32 in the kernel).
    x = samples_enc.reshape(R, F).astype(jnp.bfloat16)
    if R_pad != R:
        x = jnp.pad(x, ((0, R_pad - R), (0, 0)))

    # Hoisted per-ray view-direction matmul; fed per ray, expanded per sample
    # inside the kernel (avoids an (R, Wc) f32 HBM materialization).
    view_contrib = jnp.dot(viewdirs_enc, w_view)                 # (B, Wc) f32
    per_ray_vc = (tile % S == 0) and (S % 8 == 0) and \
                 (R_pad == tile or (tile // S) % 8 == 0)
    if per_ray_vc:
        B_pad = R_pad // S
        vc = view_contrib
        if B_pad != B:
            vc = jnp.pad(vc, ((0, B_pad - B), (0, 0)))
        vc_block = (tile // S, Wc)
    else:
        # Fallback: per-sample materialization, but in bf16 (half the traffic).
        vc = jnp.broadcast_to(view_contrib[:, None, :], (B, S, Wc))
        vc = vc.reshape(R, Wc).astype(jnp.bfloat16)
        if R_pad != R:
            vc = jnp.pad(vc, ((0, R_pad - R), (0, 0)))
        vc_block = (tile, Wc)

    kcfg = dict(
        net_depth=cfg["mlp_net_depth"],
        skip_index=cfg["mlp_skip_index"],
        net_depth_condition=cfg["mlp_net_depth_condition"],
        net_width=W,
        rgb_padding=cfg["rgb_padding"],
        density_bias=cfg["density_bias"],
        num_rgb_channels=n_rgb,
        num_density_channels=n_dens,
        out_width=OUT_WIDTH,
        fuse_skip=fuse_skip,
    )

    in_specs = [
        pl.BlockSpec((tile, F), lambda i: (i, 0)),
        pl.BlockSpec(vc_block, lambda i: (i, 0)),
    ]
    # All parameters are small 2-D arrays, resident as full blocks with
    # grid-invariant index_maps (no re-DMA across grid steps).
    in_specs += [pl.BlockSpec(p.shape, lambda i: (0, 0)) for p in flat_params]

    out_specs = pl.BlockSpec((tile, OUT_WIDTH), lambda i: (i, 0))
    out_shape = jax.ShapeDtypeStruct((R_pad, OUT_WIDTH), jnp.float32)

    packed = pl.pallas_call(
        partial(_mlp_kernel, kcfg),
        grid=grid,
        in_specs=in_specs,
        out_specs=out_specs,
        out_shape=out_shape,
        compiler_params=pltpu.CompilerParams(
            dimension_semantics=("parallel",),
            # 32 MiB: above v5e's 16 MiB scoped default, inside v7x's 64 MiB.
            vmem_limit_bytes=32 * 1024 * 1024,
        ),
    )(x, vc, *flat_params)

    packed = packed[:R]
    rgb = packed[:, :n_rgb].reshape(B, S, n_rgb)
    dens = packed[:, n_rgb:n_rgb + n_dens].reshape(B, S, n_dens)
    return rgb, dens


# --------------------------------------------------------------------------
# Deterministic parameter initialization (xavier uniform weights, torch
# default bias init).  Weights stored [in, out].
# --------------------------------------------------------------------------
def init_mlp_params(key, cfg):
    xyz_dim = (cfg["max_deg_point"] - cfg["min_deg_point"]) * 3 * 2
    view_dim = cfg["deg_view"] * 3 * 2 + (3 if cfg["append_identity"] else 0)
    W = cfg["mlp_net_width"]
    Wc = cfg["mlp_net_width_condition"]
    depth = cfg["mlp_net_depth"]
    depth_cond = cfg["mlp_net_depth_condition"]
    skip = cfg["mlp_skip_index"]

    def linear(k, din, dout):
        kw, kb = jax.random.split(k)
        a = math.sqrt(6.0 / (din + dout))          # xavier_uniform_
        w = jax.random.uniform(kw, (din, dout), jnp.float32, -a, a)
        bound = 1.0 / math.sqrt(din)               # torch Linear default bias init
        b = jax.random.uniform(kb, (1, dout), jnp.float32, -bound, bound)
        return w, b

    keys = list(jax.random.split(key, depth + depth_cond + 3))
    ki = 0
    trunk = []
    for i in range(depth):
        takes_skip = (i > 1) and ((i - 1) % skip == 0)
        din = xyz_dim if i == 0 else ((W + xyz_dim) if takes_skip else W)
        trunk.append(linear(keys[ki], din, W)); ki += 1
    w_density, b_density = linear(keys[ki], W, cfg["mlp_num_density_channels"]); ki += 1
    w_extra, b_extra = linear(keys[ki], W, W); ki += 1
    view = []
    for j in range(depth_cond):
        din = (W + view_dim) if j == 0 else Wc
        view.append(linear(keys[ki], din, Wc)); ki += 1
    w_color, b_color = linear(keys[ki], Wc, cfg["mlp_num_rgb_channels"]); ki += 1
    return dict(trunk=trunk, w_density=w_density, b_density=b_density,
                w_extra=w_extra, b_extra=b_extra, view=view,
                w_color=w_color, b_color=b_color)


def prepare_kernel_params(params, cfg, fuse_skip):
    """Flatten into the kernel's arg order; weights bf16, biases f32.

    * skip layer kept fused (v6e/v7x) or pre-split (v5 and older),
    * density + bottleneck heads fused into one [W, W+1] weight,
    * first conditioning layer split: in-kernel (W, Wc) part + hoisted
      view-direction (view_dim, Wc) part (kept f32 for the wrapper matmul),
    * color weight/bias zero-padded to OUT_WIDTH columns (lane-dense store).
    """
    bf16 = jnp.bfloat16
    W = cfg["mlp_net_width"]
    skip = cfg["mlp_skip_index"]
    n_rgb = cfg["mlp_num_rgb_channels"]

    flat = []
    for i, (w, b) in enumerate(params["trunk"]):
        takes_skip = (i > 1) and ((i - 1) % skip == 0)
        if takes_skip and not fuse_skip:
            flat += [w[:W].astype(bf16), w[W:].astype(bf16), b]
        else:
            flat += [w.astype(bf16), b]

    w_db = jnp.concatenate([params["w_extra"], params["w_density"]], axis=1)
    b_db = jnp.concatenate([params["b_extra"], params["b_density"]], axis=1)
    flat += [w_db.astype(bf16), b_db]

    w_view = None
    for j, (w, b) in enumerate(params["view"]):
        if j == 0:
            flat += [w[:W].astype(bf16), b]
            w_view = w[W:]                          # hoisted viewdir part (f32)
        else:
            flat += [w.astype(bf16), b]

    Wc = params["w_color"].shape[0]
    wc8 = jnp.zeros((Wc, OUT_WIDTH), jnp.float32).at[:, :n_rgb].set(params["w_color"])
    bc8 = jnp.zeros((1, OUT_WIDTH), jnp.float32).at[:, :n_rgb].set(params["b_color"])
    flat += [wc8.astype(bf16), bc8]
    return flat, w_view


# --------------------------------------------------------------------------
# Dense f32 reference MLP (mirrors the torch module) for a unit check.
# --------------------------------------------------------------------------
def reference_mlp(samples_enc, viewdirs_enc, params, cfg):
    B, S, _ = samples_enc.shape
    skip = cfg["mlp_skip_index"]
    x = samples_enc
    inputs = samples_enc
    for i, (w, b) in enumerate(params["trunk"]):
        x = jnp.maximum(jnp.dot(x, w) + b, 0.0)
        if i % skip == 0 and i > 0:
            x = jnp.concatenate([x, inputs], axis=-1)
    raw_density = jnp.dot(x, params["w_density"]) + params["b_density"]
    bottleneck = jnp.dot(x, params["w_extra"]) + params["b_extra"]
    vd = jnp.broadcast_to(viewdirs_enc[:, None, :],
                          (B, S, viewdirs_enc.shape[-1]))
    h = jnp.concatenate([bottleneck, vd], axis=-1)
    for (w, b) in params["view"]:
        h = jnp.maximum(jnp.dot(h, w) + b, 0.0)
    raw_rgb = jnp.dot(h, params["w_color"]) + params["b_color"]
    rgb = jax.nn.sigmoid(raw_rgb)
    rgb = rgb * (1.0 + 2.0 * cfg["rgb_padding"]) - cfg["rgb_padding"]
    density = jax.nn.softplus(raw_density + cfg["density_bias"])
    return rgb, density


# --------------------------------------------------------------------------
# Plain-JAX glue: ray casting, encodings, resampling, volumetric rendering.
# --------------------------------------------------------------------------
def lift_gaussian(directions, t_mean, t_var, r_var):
    mean = directions[..., None, :] * t_mean[..., None]
    d_norm_denominator = jnp.sum(directions ** 2, axis=-1, keepdims=True) + 1e-10
    d_outer_diag = directions ** 2
    null_outer_diag = 1.0 - d_outer_diag / d_norm_denominator
    t_cov_diag = t_var[..., None] * d_outer_diag[..., None, :]
    xy_cov_diag = r_var[..., None] * null_outer_diag[..., None, :]
    return mean, t_cov_diag + xy_cov_diag


def conical_frustum_to_gaussian(directions, t0, t1, base_radius):
    mu = (t0 + t1) / 2.0
    hw = (t1 - t0) / 2.0
    t_mean = mu + (2.0 * mu * hw ** 2) / (3.0 * mu ** 2 + hw ** 2)
    t_var = hw ** 2 / 3.0 - (4.0 / 15.0) * (
        (hw ** 4 * (12.0 * mu ** 2 - hw ** 2)) / (3.0 * mu ** 2 + hw ** 2) ** 2)
    r_var = base_radius ** 2 * (
        mu ** 2 / 4.0 + (5.0 / 12.0) * hw ** 2
        - (4.0 / 15.0) * (hw ** 4) / (3.0 * mu ** 2 + hw ** 2))
    return lift_gaussian(directions, t_mean, t_var, r_var)


def cast_rays(t_samples, origins, directions, radii, ray_shape):
    assert ray_shape == "cone"
    t0 = t_samples[..., :-1]
    t1 = t_samples[..., 1:]
    means, covs = conical_frustum_to_gaussian(directions, t0, t1, radii)
    means = means + origins[..., None, :]
    return means, covs


def sample_along_rays(origins, directions, radii, num_samples, near, far,
                      randomized, disparity, ray_shape):
    batch_size = origins.shape[0]
    t = jnp.linspace(0.0, 1.0, num_samples + 1, dtype=jnp.float32)
    if disparity:
        t_samples = 1.0 / (1.0 / near * (1.0 - t) + 1.0 / far * t)
    else:
        t_samples = near * (1.0 - t) + far * t
    # randomized stratified sampling intentionally omitted (see TODO at top)
    t_samples = jnp.broadcast_to(t_samples, (batch_size, num_samples + 1))
    means, covs = cast_rays(t_samples, origins, directions, radii, ray_shape)
    return t_samples, (means, covs)


def sorted_piecewise_constant_pdf(bins, weights, num_samples, randomized):
    eps = 1e-5
    weight_sum = jnp.sum(weights, axis=-1, keepdims=True)
    padding = jnp.maximum(jnp.zeros_like(weight_sum), eps - weight_sum)
    weights = weights + padding / weights.shape[-1]
    weight_sum = weight_sum + padding
    pdf = weights / weight_sum
    cdf = jnp.minimum(1.0, jnp.cumsum(pdf[..., :-1], axis=-1))
    cdf = jnp.concatenate(
        [jnp.zeros(cdf.shape[:-1] + (1,)), cdf, jnp.ones(cdf.shape[:-1] + (1,))], axis=-1)

    feps = jnp.finfo(jnp.float32).eps
    u = jnp.linspace(0.0, 1.0 - feps, num_samples, dtype=jnp.float32)
    u = jnp.broadcast_to(u, cdf.shape[:-1] + (num_samples,))

    mask = u[..., None, :] >= cdf[..., :, None]

    def find_interval(x):
        x0 = jnp.max(jnp.where(mask, x[..., None], x[..., :1, None]), axis=-2)
        x1 = jnp.min(jnp.where(~mask, x[..., None], x[..., -1:, None]), axis=-2)
        return x0, x1

    bins_g0, bins_g1 = find_interval(bins)
    cdf_g0, cdf_g1 = find_interval(cdf)

    t = jnp.clip(jnp.nan_to_num((u - cdf_g0) / (cdf_g1 - cdf_g0), nan=0.0), 0.0, 1.0)
    return bins_g0 + t * (bins_g1 - bins_g0)


def resample_along_rays(origins, directions, radii, t_samples, weights,
                        randomized, ray_shape, stop_grad, resample_padding):
    if stop_grad:
        t_samples = lax.stop_gradient(t_samples)
        weights = lax.stop_gradient(weights)
    weights_pad = jnp.concatenate([weights[..., :1], weights, weights[..., -1:]], axis=-1)
    weights_max = jnp.maximum(weights_pad[..., :-1], weights_pad[..., 1:])
    weights_blur = 0.5 * (weights_max[..., :-1] + weights_max[..., 1:])
    weights = weights_blur + resample_padding
    new_t_vals = sorted_piecewise_constant_pdf(
        t_samples, weights, t_samples.shape[-1], randomized)
    if stop_grad:
        new_t_vals = lax.stop_gradient(new_t_vals)
    means, covs = cast_rays(new_t_vals, origins, directions, radii, ray_shape)
    return new_t_vals, (means, covs)


def integrated_pos_enc(means_covs, min_deg, max_deg):
    means, covs_diag = means_covs
    scales = jnp.array([2.0 ** i for i in range(min_deg, max_deg)], jnp.float32)
    shape = means.shape[:-1] + (-1,)
    y = (means[..., None, :] * scales[:, None]).reshape(shape)
    y_var = (covs_diag[..., None, :] * scales[:, None] ** 2).reshape(shape)
    x = jnp.concatenate([y, y + 0.5 * jnp.pi], axis=-1)
    x_var = jnp.concatenate([y_var, y_var], axis=-1)
    return jnp.exp(-0.5 * x_var) * jnp.sin(x)


def pos_enc(x, min_deg, max_deg, append_identity=True):
    scales = jnp.array([2.0 ** i for i in range(min_deg, max_deg)], jnp.float32)
    shape = x.shape[:-1] + (-1,)
    xb = (x[..., None, :] * scales[:, None]).reshape(shape)
    four_feat = jnp.sin(jnp.concatenate([xb, xb + 0.5 * jnp.pi], axis=-1))
    if append_identity:
        return jnp.concatenate([x, four_feat], axis=-1)
    return four_feat


def volumetric_rendering(rgb, density, t_samples, dirs, white_bkgd):
    t_mids = 0.5 * (t_samples[..., :-1] + t_samples[..., 1:])
    t_interval = t_samples[..., 1:] - t_samples[..., :-1]
    delta = t_interval * jnp.linalg.norm(dirs[..., None, :], axis=-1)
    density_delta = density[..., 0] * delta
    alpha = 1.0 - jnp.exp(-density_delta)
    trans = jnp.exp(-jnp.concatenate(
        [jnp.zeros_like(density_delta[..., :1]),
         jnp.cumsum(density_delta[..., :-1], axis=-1)], axis=-1))
    weights = alpha * trans
    comp_rgb = (weights[..., None] * rgb).sum(axis=-2)
    acc = weights.sum(axis=-1)
    distance = (weights * t_mids).sum(axis=-1) / acc
    distance = jnp.clip(
        jnp.nan_to_num(distance, nan=jnp.finfo(jnp.float32).max),
        t_samples[:, 0], t_samples[:, -1])
    if white_bkgd:
        comp_rgb = comp_rgb + (1.0 - acc[..., None])
    return comp_rgb, distance, acc, weights


def mip_nerf_forward(rays, flat_params, w_view, cfg, fuse_skip,
                     randomized=False, white_bkgd=True):
    ret = []
    t_samples, weights = None, None
    viewdirs_enc = pos_enc(rays.viewdirs, 0, cfg["deg_view"], append_identity=True)
    for i_level in range(cfg["num_levels"]):
        if i_level == 0:
            t_samples, means_covs = sample_along_rays(
                rays.origins, rays.directions, rays.radii, cfg["num_samples"],
                rays.near, rays.far, randomized, cfg["disparity"], cfg["ray_shape"])
        else:
            t_samples, means_covs = resample_along_rays(
                rays.origins, rays.directions, rays.radii, t_samples, weights,
                randomized, cfg["ray_shape"], cfg["stop_resample_grad"],
                cfg["resample_padding"])
        if cfg["disable_integration"]:
            means_covs = (means_covs[0], jnp.zeros_like(means_covs[1]))
        samples_enc = integrated_pos_enc(
            means_covs, cfg["min_deg_point"], cfg["max_deg_point"])
        rgb, density = mlp_forward(samples_enc, viewdirs_enc, flat_params,
                                   w_view, cfg, fuse_skip)
        comp_rgb, distance, acc, weights = volumetric_rendering(
            rgb, density, t_samples, rays.directions, white_bkgd=white_bkgd)
        ret.append((comp_rgb, distance, acc, weights, t_samples))
    return ret


if __name__ == "__main__":
    key = jax.random.PRNGKey(0)
    k_o, k_d, k_p = jax.random.split(key, 3)

    num_rays = 4
    origins = jax.random.normal(k_o, (num_rays, 3), jnp.float32)
    directions = jax.random.normal(k_d, (num_rays, 3), jnp.float32)
    viewdirs = directions / (jnp.linalg.norm(directions, axis=-1, keepdims=True) + 1e-10)
    radii = jnp.full((num_rays, 1), 0.0125, jnp.float32)
    near = jnp.full((num_rays, 1), 2.0, jnp.float32)
    far = jnp.full((num_rays, 1), 6.0, jnp.float32)
    rays = Rays(origins, directions, viewdirs, radii, near, far)

    fuse_skip = _default_fuse_skip()
    params = init_mlp_params(k_p, CFG)
    flat_params, w_view = prepare_kernel_params(params, CFG, fuse_skip)

    # Unit check: Pallas MLP (bf16 matmuls, f32 accum) vs dense f32 reference.
    # Loose tolerances account only for bf16 rounding; they would still catch
    # any wiring bug (skip index, fused heads, hoisted view matmul).
    t0, mc0 = sample_along_rays(
        origins, directions, radii, CFG["num_samples"], near, far,
        False, CFG["disparity"], CFG["ray_shape"])
    samples_enc = integrated_pos_enc(mc0, CFG["min_deg_point"], CFG["max_deg_point"])
    viewdirs_enc = pos_enc(viewdirs, 0, CFG["deg_view"], append_identity=True)
    rgb_k, dens_k = mlp_forward(samples_enc, viewdirs_enc, flat_params, w_view,
                                CFG, fuse_skip)
    rgb_r, dens_r = reference_mlp(samples_enc, viewdirs_enc, params, CFG)
    rgb_err = float(jnp.max(jnp.abs(rgb_k - rgb_r)))
    dens_err = float(jnp.max(jnp.abs(dens_k - dens_r)))
    assert rgb_err < 0.1 and dens_err < 0.25, (rgb_err, dens_err)

    # Full two-level forward, jitted so the plain-JAX glue fuses around the
    # two pallas_call launches.
    forward = jax.jit(lambda r, fp, wv: mip_nerf_forward(
        r, fp, wv, CFG, fuse_skip, randomized=False, white_bkgd=True))
    ret = forward(rays, flat_params, w_view)
    for leaf in jax.tree_util.tree_leaves(ret):
        jax.block_until_ready(leaf)

    print("KERNEL_OK")
</pallas_src>

<mosaic_0001>
module attributes {stable_mosaic.version = 11 : i64} {
  func.func @_mlp_kernel(%arg0: i32, %arg1: memref<128x96xbf16, #tpu.memory_space<vmem>>, %arg2: memref<4x64xf32, #tpu.memory_space<vmem>>, %arg3: memref<96x128xbf16, #tpu.memory_space<vmem>>, %arg4: memref<1x128xf32, #tpu.memory_space<vmem>>, %arg5: memref<128x128xbf16, #tpu.memory_space<vmem>>, %arg6: memref<1x128xf32, #tpu.memory_space<vmem>>, %arg7: memref<128x128xbf16, #tpu.memory_space<vmem>>, %arg8: memref<1x128xf32, #tpu.memory_space<vmem>>, %arg9: memref<128x128xbf16, #tpu.memory_space<vmem>>, %arg10: memref<1x128xf32, #tpu.memory_space<vmem>>, %arg11: memref<128x128xbf16, #tpu.memory_space<vmem>>, %arg12: memref<1x128xf32, #tpu.memory_space<vmem>>, %arg13: memref<224x128xbf16, #tpu.memory_space<vmem>>, %arg14: memref<1x128xf32, #tpu.memory_space<vmem>>, %arg15: memref<128x128xbf16, #tpu.memory_space<vmem>>, %arg16: memref<1x128xf32, #tpu.memory_space<vmem>>, %arg17: memref<128x128xbf16, #tpu.memory_space<vmem>>, %arg18: memref<1x128xf32, #tpu.memory_space<vmem>>, %arg19: memref<128x129xbf16, #tpu.memory_space<vmem>>, %arg20: memref<1x129xf32, #tpu.memory_space<vmem>>, %arg21: memref<128x64xbf16, #tpu.memory_space<vmem>>, %arg22: memref<1x64xf32, #tpu.memory_space<vmem>>, %arg23: memref<64x8xbf16, #tpu.memory_space<vmem>>, %arg24: memref<1x8xf32, #tpu.memory_space<vmem>>, %arg25: memref<128x8xf32, #tpu.memory_space<vmem>>) attributes {dimension_semantics = [#tpu.dimension_semantics<parallel>], iteration_bounds = array<i64: 1>, scalar_prefetch = 0 : i64, scratch_operands = 0 : i64, tpu.core_type = #tpu.core_type<tc>, window_params = [{transform_indices = @transform_0, window_bounds = array<i64: 128, 96>}, {transform_indices = @transform_1, window_bounds = array<i64: 4, 64>}, {pipeline_mode = #tpu.pipeline_mode<synchronous>, transform_indices = @transform_2, window_bounds = array<i64: 96, 128>}, {pipeline_mode = #tpu.pipeline_mode<synchronous>, transform_indices = @transform_3, window_bounds = array<i64: 1, 128>}, {pipeline_mode = #tpu.pipeline_mode<synchronous>, transform_indices = @transform_4, window_bounds = array<i64: 128, 128>}, {pipeline_mode = #tpu.pipeline_mode<synchronous>, transform_indices = @transform_5, window_bounds = array<i64: 1, 128>}, {pipeline_mode = #tpu.pipeline_mode<synchronous>, transform_indices = @transform_6, window_bounds = array<i64: 128, 128>}, {pipeline_mode = #tpu.pipeline_mode<synchronous>, transform_indices = @transform_7, window_bounds = array<i64: 1, 128>}, {pipeline_mode = #tpu.pipeline_mode<synchronous>, transform_indices = @transform_8, window_bounds = array<i64: 128, 128>}, {pipeline_mode = #tpu.pipeline_mode<synchronous>, transform_indices = @transform_9, window_bounds = array<i64: 1, 128>}, {pipeline_mode = #tpu.pipeline_mode<synchronous>, transform_indices = @transform_10, window_bounds = array<i64: 128, 128>}, {pipeline_mode = #tpu.pipeline_mode<synchronous>, transform_indices = @transform_11, window_bounds = array<i64: 1, 128>}, {pipeline_mode = #tpu.pipeline_mode<synchronous>, transform_indices = @transform_12, window_bounds = array<i64: 224, 128>}, {pipeline_mode = #tpu.pipeline_mode<synchronous>, transform_indices = @transform_13, window_bounds = array<i64: 1, 128>}, {pipeline_mode = #tpu.pipeline_mode<synchronous>, transform_indices = @transform_14, window_bounds = array<i64: 128, 128>}, {pipeline_mode = #tpu.pipeline_mode<synchronous>, transform_indices = @transform_15, window_bounds = array<i64: 1, 128>}, {pipeline_mode = #tpu.pipeline_mode<synchronous>, transform_indices = @transform_16, window_bounds = array<i64: 128, 128>}, {pipeline_mode = #tpu.pipeline_mode<synchronous>, transform_indices = @transform_17, window_bounds = array<i64: 1, 128>}, {pipeline_mode = #tpu.pipeline_mode<synchronous>, transform_indices = @transform_18, window_bounds = array<i64: 128, 129>}, {pipeline_mode = #tpu.pipeline_mode<synchronous>, transform_indices = @transform_19, window_bounds = array<i64: 1, 129>}, {pipeline_mode = #tpu.pipeline_mode<synchronous>, transform_indices = @transform_20, window_bounds = array<i64: 128, 64>}, {pipeline_mode = #tpu.pipeline_mode<synchronous>, transform_indices = @transform_21, window_bounds = array<i64: 1, 64>}, {pipeline_mode = #tpu.pipeline_mode<synchronous>, transform_indices = @transform_22, window_bounds = array<i64: 64, 8>}, {pipeline_mode = #tpu.pipeline_mode<synchronous>, transform_indices = @transform_23, window_bounds = array<i64: 1, 8>}, {transform_indices = @transform_24, window_bounds = array<i64: 128, 8>}]} {
    %c0 = arith.constant 0 : index
    %c0_0 = arith.constant 0 : index
    %0 = vector.load %arg1[%c0, %c0_0] : memref<128x96xbf16, #tpu.memory_space<vmem>>, vector<128x96xbf16>
    %c0_1 = arith.constant 0 : index
    %c0_2 = arith.constant 0 : index
    %1 = vector.load %arg3[%c0_1, %c0_2] : memref<96x128xbf16, #tpu.memory_space<vmem>>, vector<96x128xbf16>
    %c0_3 = arith.constant 0 : index
    %c0_4 = arith.constant 0 : index
    %2 = vector.load %arg4[%c0_3, %c0_4] : memref<1x128xf32, #tpu.memory_space<vmem>>, vector<1x128xf32>
    %cst = arith.constant dense<0.000000e+00> : vector<128x128xf32>
    %3 = tpu.matmul %0, %1, %cst {dimension_numbers = #tpu.dot_dimension_numbers<[1], [0], [0], [1], [0, 0, 1, 1], [], []>} : vector<128x96xbf16>, vector<96x128xbf16>, vector<128x128xf32> -> vector<128x128xf32>
    %4 = vector.broadcast %2 : vector<1x128xf32> to vector<128x128xf32>
    %5 = arith.addf %3, %4 : vector<128x128xf32>
    %cst_5 = arith.constant 0.000000e+00 : f32
    %6 = vector.broadcast %cst_5 : f32 to vector<128x128xf32>
    %7 = arith.maximumf %5, %6 : vector<128x128xf32>
    %8 = arith.truncf %7 : vector<128x128xf32> to vector<128x128xbf16>
    %c0_6 = arith.constant 0 : index
    %c0_7 = arith.constant 0 : index
    %9 = vector.load %arg5[%c0_6, %c0_7] : memref<128x128xbf16, #tpu.memory_space<vmem>>, vector<128x128xbf16>
    %c0_8 = arith.constant 0 : index
    %c0_9 = arith.constant 0 : index
    %10 = vector.load %arg6[%c0_8, %c0_9] : memref<1x128xf32, #tpu.memory_space<vmem>>, vector<1x128xf32>
    %cst_10 = arith.constant dense<0.000000e+00> : vector<128x128xf32>
    %11 = tpu.matmul %8, %9, %cst_10 {dimension_numbers = #tpu.dot_dimension_numbers<[1], [0], [0], [1], [0, 0, 1, 1], [], []>} : vector<128x128xbf16>, vector<128x128xbf16>, vector<128x128xf32> -> vector<128x128xf32>
    %12 = vector.broadcast %10 : vector<1x128xf32> to vector<128x128xf32>
    %13 = arith.addf %11, %12 : vector<128x128xf32>
    %cst_11 = arith.constant 0.000000e+00 : f32
    %14 = vector.broadcast %cst_11 : f32 to vector<128x128xf32>
    %15 = arith.maximumf %13, %14 : vector<128x128xf32>
    %16 = arith.truncf %15 : vector<128x128xf32> to vector<128x128xbf16>
    %c0_12 = arith.constant 0 : index
    %c0_13 = arith.constant 0 : index
    %17 = vector.load %arg7[%c0_12, %c0_13] : memref<128x128xbf16, #tpu.memory_space<vmem>>, vector<128x128xbf16>
    %c0_14 = arith.constant 0 : index
    %c0_15 = arith.constant 0 : index
    %18 = vector.load %arg8[%c0_14, %c0_15] : memref<1x128xf32, #tpu.memory_space<vmem>>, vector<1x128xf32>
    %cst_16 = arith.constant dense<0.000000e+00> : vector<128x128xf32>
    %19 = tpu.matmul %16, %17, %cst_16 {dimension_numbers = #tpu.dot_dimension_numbers<[1], [0], [0], [1], [0, 0, 1, 1], [], []>} : vector<128x128xbf16>, vector<128x128xbf16>, vector<128x128xf32> -> vector<128x128xf32>
    %20 = vector.broadcast %18 : vector<1x128xf32> to vector<128x128xf32>
    %21 = arith.addf %19, %20 : vector<128x128xf32>
    %cst_17 = arith.constant 0.000000e+00 : f32
    %22 = vector.broadcast %cst_17 : f32 to vector<128x128xf32>
    %23 = arith.maximumf %21, %22 : vector<128x128xf32>
    %24 = arith.truncf %23 : vector<128x128xf32> to vector<128x128xbf16>
    %c0_18 = arith.constant 0 : index
    %c0_19 = arith.constant 0 : index
    %25 = vector.load %arg9[%c0_18, %c0_19] : memref<128x128xbf16, #tpu.memory_space<vmem>>, vector<128x128xbf16>
    %c0_20 = arith.constant 0 : index
    %c0_21 = arith.constant 0 : index
    %26 = vector.load %arg10[%c0_20, %c0_21] : memref<1x128xf32, #tpu.memory_space<vmem>>, vector<1x128xf32>
    %cst_22 = arith.constant dense<0.000000e+00> : vector<128x128xf32>
    %27 = tpu.matmul %24, %25, %cst_22 {dimension_numbers = #tpu.dot_dimension_numbers<[1], [0], [0], [1], [0, 0, 1, 1], [], []>} : vector<128x128xbf16>, vector<128x128xbf16>, vector<128x128xf32> -> vector<128x128xf32>
    %28 = vector.broadcast %26 : vector<1x128xf32> to vector<128x128xf32>
    %29 = arith.addf %27, %28 : vector<128x128xf32>
    %cst_23 = arith.constant 0.000000e+00 : f32
    %30 = vector.broadcast %cst_23 : f32 to vector<128x128xf32>
    %31 = arith.maximumf %29, %30 : vector<128x128xf32>
    %32 = arith.truncf %31 : vector<128x128xf32> to vector<128x128xbf16>
    %c0_24 = arith.constant 0 : index
    %c0_25 = arith.constant 0 : index
    %33 = vector.load %arg11[%c0_24, %c0_25] : memref<128x128xbf16, #tpu.memory_space<vmem>>, vector<128x128xbf16>
    %c0_26 = arith.constant 0 : index
    %c0_27 = arith.constant 0 : index
    %34 = vector.load %arg12[%c0_26, %c0_27] : memref<1x128xf32, #tpu.memory_space<vmem>>, vector<1x128xf32>
    %cst_28 = arith.constant dense<0.000000e+00> : vector<128x128xf32>
    %35 = tpu.matmul %32, %33, %cst_28 {dimension_numbers = #tpu.dot_dimension_numbers<[1], [0], [0], [1], [0, 0, 1, 1], [], []>} : vector<128x128xbf16>, vector<128x128xbf16>, vector<128x128xf32> -> vector<128x128xf32>
    %36 = vector.broadcast %34 : vector<1x128xf32> to vector<128x128xf32>
    %37 = arith.addf %35, %36 : vector<128x128xf32>
    %cst_29 = arith.constant 0.000000e+00 : f32
    %38 = vector.broadcast %cst_29 : f32 to vector<128x128xf32>
    %39 = arith.maximumf %37, %38 : vector<128x128xf32>
    %40 = arith.truncf %39 : vector<128x128xf32> to vector<128x128xbf16>
    %c0_30 = arith.constant 0 : index
    %c0_31 = arith.constant 0 : index
    %41 = vector.load %arg13[%c0_30, %c0_31] : memref<224x128xbf16, #tpu.memory_space<vmem>>, vector<224x128xbf16>
    %c0_32 = arith.constant 0 : index
    %c0_33 = arith.constant 0 : index
    %42 = vector.load %arg14[%c0_32, %c0_33] : memref<1x128xf32, #tpu.memory_space<vmem>>, vector<1x128xf32>
    %43 = tpu.concatenate %40, %0 in 1 : vector<128x128xbf16>, vector<128x96xbf16> -> vector<128x224xbf16>
    %cst_34 = arith.constant dense<0.000000e+00> : vector<128x128xf32>
    %44 = tpu.matmul %43, %41, %cst_34 {dimension_numbers = #tpu.dot_dimension_numbers<[1], [0], [0], [1], [0, 0, 1, 1], [], []>} : vector<128x224xbf16>, vector<224x128xbf16>, vector<128x128xf32> -> vector<128x128xf32>
    %45 = vector.broadcast %42 : vector<1x128xf32> to vector<128x128xf32>
    %46 = arith.addf %44, %45 : vector<128x128xf32>
    %cst_35 = arith.constant 0.000000e+00 : f32
    %47 = vector.broadcast %cst_35 : f32 to vector<128x128xf32>
    %48 = arith.maximumf %46, %47 : vector<128x128xf32>
    %49 = arith.truncf %48 : vector<128x128xf32> to vector<128x128xbf16>
    %c0_36 = arith.constant 0 : index
    %c0_37 = arith.constant 0 : index
    %50 = vector.load %arg15[%c0_36, %c0_37] : memref<128x128xbf16, #tpu.memory_space<vmem>>, vector<128x128xbf16>
    %c0_38 = arith.constant 0 : index
    %c0_39 = arith.constant 0 : index
    %51 = vector.load %arg16[%c0_38, %c0_39] : memref<1x128xf32, #tpu.memory_space<vmem>>, vector<1x128xf32>
    %cst_40 = arith.constant dense<0.000000e+00> : vector<128x128xf32>
    %52 = tpu.matmul %49, %50, %cst_40 {dimension_numbers = #tpu.dot_dimension_numbers<[1], [0], [0], [1], [0, 0, 1, 1], [], []>} : vector<128x128xbf16>, vector<128x128xbf16>, vector<128x128xf32> -> vector<128x128xf32>
    %53 = vector.broadcast %51 : vector<1x128xf32> to vector<128x128xf32>
    %54 = arith.addf %52, %53 : vector<128x128xf32>
    %cst_41 = arith.constant 0.000000e+00 : f32
    %55 = vector.broadcast %cst_41 : f32 to vector<128x128xf32>
    %56 = arith.maximumf %54, %55 : vector<128x128xf32>
    %57 = arith.truncf %56 : vector<128x128xf32> to vector<128x128xbf16>
    %c0_42 = arith.constant 0 : index
    %c0_43 = arith.constant 0 : index
    %58 = vector.load %arg17[%c0_42, %c0_43] : memref<128x128xbf16, #tpu.memory_space<vmem>>, vector<128x128xbf16>
    %c0_44 = arith.constant 0 : index
    %c0_45 = arith.constant 0 : index
    %59 = vector.load %arg18[%c0_44, %c0_45] : memref<1x128xf32, #tpu.memory_space<vmem>>, vector<1x128xf32>
    %cst_46 = arith.constant dense<0.000000e+00> : vector<128x128xf32>
    %60 = tpu.matmul %57, %58, %cst_46 {dimension_numbers = #tpu.dot_dimension_numbers<[1], [0], [0], [1], [0, 0, 1, 1], [], []>} : vector<128x128xbf16>, vector<128x128xbf16>, vector<128x128xf32> -> vector<128x128xf32>
    %61 = vector.broadcast %59 : vector<1x128xf32> to vector<128x128xf32>
    %62 = arith.addf %60, %61 : vector<128x128xf32>
    %cst_47 = arith.constant 0.000000e+00 : f32
    %63 = vector.broadcast %cst_47 : f32 to vector<128x128xf32>
    %64 = arith.maximumf %62, %63 : vector<128x128xf32>
    %65 = arith.truncf %64 : vector<128x128xf32> to vector<128x128xbf16>
    %c0_48 = arith.constant 0 : index
    %c0_49 = arith.constant 0 : index
    %66 = vector.load %arg19[%c0_48, %c0_49] : memref<128x129xbf16, #tpu.memory_space<vmem>>, vector<128x129xbf16>
    %c0_50 = arith.constant 0 : index
    %c0_51 = arith.constant 0 : index
    %67 = vector.load %arg20[%c0_50, %c0_51] : memref<1x129xf32, #tpu.memory_space<vmem>>, vector<1x129xf32>
    %cst_52 = arith.constant dense<0.000000e+00> : vector<128x129xf32>
    %68 = tpu.matmul %65, %66, %cst_52 {dimension_numbers = #tpu.dot_dimension_numbers<[1], [0], [0], [1], [0, 0, 1, 1], [], []>} : vector<128x128xbf16>, vector<128x129xbf16>, vector<128x129xf32> -> vector<128x129xf32>
    %69 = vector.broadcast %67 : vector<1x129xf32> to vector<128x129xf32>
    %70 = arith.addf %68, %69 : vector<128x129xf32>
    %71 = vector.extract_strided_slice %70 {offsets = [0, 0], sizes = [128, 128], strides = [1, 1]} : vector<128x129xf32> to vector<128x128xf32>
    %72 = arith.truncf %71 : vector<128x128xf32> to vector<128x128xbf16>
    %73 = vector.extract_strided_slice %70 {offsets = [0, 128], sizes = [128, 1], strides = [1, 1]} : vector<128x129xf32> to vector<128x1xf32>
    %c0_53 = arith.constant 0 : index
    %c0_54 = arith.constant 0 : index
    %74 = vector.load %arg2[%c0_53, %c0_54] : memref<4x64xf32, #tpu.memory_space<vmem>>, vector<4x64xf32>
    %75 = vector.shape_cast %74 : vector<4x64xf32> to vector<4x1x64xf32>
    %76 = vector.shape_cast %75 : vector<4x1x64xf32> to vector<4x1x64xf32>
    %77 = vector.broadcast %76 : vector<4x1x64xf32> to vector<4x32x64xf32>
    %78 = vector.shape_cast %77 : vector<4x32x64xf32> to vector<128x64xf32>
    %c0_55 = arith.constant 0 : index
    %c0_56 = arith.constant 0 : index
    %79 = vector.load %arg21[%c0_55, %c0_56] : memref<128x64xbf16, #tpu.memory_space<vmem>>, vector<128x64xbf16>
    %c0_57 = arith.constant 0 : index
    %c0_58 = arith.constant 0 : index
    %80 = vector.load %arg22[%c0_57, %c0_58] : memref<1x64xf32, #tpu.memory_space<vmem>>, vector<1x64xf32>
    %cst_59 = arith.constant dense<0.000000e+00> : vector<128x64xf32>
    %81 = tpu.matmul %72, %79, %cst_59 {dimension_numbers = #tpu.dot_dimension_numbers<[1], [0], [0], [1], [0, 0, 1, 1], [], []>} : vector<128x128xbf16>, vector<128x64xbf16>, vector<128x64xf32> -> vector<128x64xf32>
    %82 = vector.broadcast %80 : vector<1x64xf32> to vector<128x64xf32>
    %83 = arith.addf %81, %82 : vector<128x64xf32>
    %84 = arith.addf %83, %78 : vector<128x64xf32>
    %cst_60 = arith.constant 0.000000e+00 : f32
    %85 = vector.broadcast %cst_60 : f32 to vector<128x64xf32>
    %86 = arith.maximumf %84, %85 : vector<128x64xf32>
    %87 = arith.truncf %86 : vector<128x64xf32> to vector<128x64xbf16>
    %c0_61 = arith.constant 0 : index
    %c0_62 = arith.constant 0 : index
    %88 = vector.load %arg23[%c0_61, %c0_62] : memref<64x8xbf16, #tpu.memory_space<vmem>>, vector<64x8xbf16>
    %c0_63 = arith.constant 0 : index
    %c0_64 = arith.constant 0 : index
    %89 = vector.load %arg24[%c0_63, %c0_64] : memref<1x8xf32, #tpu.memory_space<vmem>>, vector<1x8xf32>
    %cst_65 = arith.constant dense<0.000000e+00> : vector<128x8xf32>
    %90 = tpu.matmul %87, %88, %cst_65 {dimension_numbers = #tpu.dot_dimension_numbers<[1], [0], [0], [1], [0, 0, 1, 1], [], []>} : vector<128x64xbf16>, vector<64x8xbf16>, vector<128x8xf32> -> vector<128x8xf32>
    %91 = vector.broadcast %89 : vector<1x8xf32> to vector<128x8xf32>
    %92 = arith.addf %90, %91 : vector<128x8xf32>
    %cst_66 = arith.constant 0.000000e+00 : f32
    %93 = vector.broadcast %cst_66 : f32 to vector<128x8xf32>
    %94 = arith.subf %93, %92 : vector<128x8xf32>
    %95 = math.exp %94 : vector<128x8xf32>
    %cst_67 = arith.constant 1.000000e+00 : f32
    %96 = vector.broadcast %cst_67 : f32 to vector<128x8xf32>
    %97 = arith.addf %96, %95 : vector<128x8xf32>
    %cst_68 = arith.constant 1.000000e+00 : f32
    %98 = vector.broadcast %cst_68 : f32 to vector<128x8xf32>
    %99 = arith.divf %98, %97 : vector<128x8xf32>
    %cst_69 = arith.constant 1.002000e+00 : f32
    %100 = vector.broadcast %cst_69 : f32 to vector<128x8xf32>
    %101 = arith.mulf %99, %100 : vector<128x8xf32>
    %cst_70 = arith.constant 1.000000e-03 : f32
    %102 = vector.broadcast %cst_70 : f32 to vector<128x8xf32>
    %103 = arith.subf %101, %102 : vector<128x8xf32>
    %cst_71 = arith.constant -1.000000e+00 : f32
    %104 = vector.broadcast %cst_71 : f32 to vector<128x1xf32>
    %105 = arith.addf %73, %104 : vector<128x1xf32>
    %cst_72 = arith.constant 0.000000e+00 : f32
    %106 = vector.broadcast %cst_72 : f32 to vector<128x1xf32>
    %107 = arith.maximumf %105, %106 : vector<128x1xf32>
    %108 = math.absf %105 : vector<128x1xf32>
    %cst_73 = arith.constant 0.000000e+00 : f32
    %109 = vector.broadcast %cst_73 : f32 to vector<128x1xf32>
    %110 = arith.subf %109, %108 : vector<128x1xf32>
    %111 = math.exp %110 : vector<128x1xf32>
    %cst_74 = arith.constant 1.000000e+00 : f32
    %112 = vector.broadcast %cst_74 : f32 to vector<128x1xf32>
    %113 = arith.addf %112, %111 : vector<128x1xf32>
    %114 = math.log %113 : vector<128x1xf32>
    %115 = arith.addf %107, %114 : vector<128x1xf32>
    %116 = tpu.iota {dimensions = array<i32: 1>} : vector<128x8xi32>
    %c3_i32 = arith.constant 3 : i32
    %117 = vector.broadcast %c3_i32 : i32 to vector<128x8xi32>
    %118 = arith.cmpi eq, %116, %117 : vector<128x8xi32>
    %119 = vector.shape_cast %115 : vector<128x1xf32> to vector<128x1xf32>
    %120 = vector.broadcast %119 : vector<128x1xf32> to vector<128x8xf32>
    %121 = arith.select %118, %120, %103 : vector<128x8xi1>, vector<128x8xf32>
    %c0_75 = arith.constant 0 : index
    %c0_76 = arith.constant 0 : index
    %122 = vector.load %arg25[%c0_75, %c0_76] : memref<128x8xf32, #tpu.memory_space<vmem>>, vector<128x8xf32>
    tpu.vector_store %arg25[%c0_75, %c0_76], %121 {strides = array<i32>} : memref<128x8xf32, #tpu.memory_space<vmem>>, vector<128x8xf32>,
    return
  }
  func.func @transform_0(%arg0: i32) -> (i32, i32) {
    %c0_i32 = arith.constant 0 : i32
    %c0_i32_0 = arith.constant 0 : i32
    return %arg0, %c0_i32 : i32, i32
  }
  func.func @transform_1(%arg0: i32) -> (i32, i32) {
    %c0_i32 = arith.constant 0 : i32
    %c0_i32_0 = arith.constant 0 : i32
    return %arg0, %c0_i32 : i32, i32
  }
  func.func @transform_2(%arg0: i32) -> (i32, i32) {
    %c0_i32 = arith.constant 0 : i32
    %c0_i32_0 = arith.constant 0 : i32
    %c0_i32_1 = arith.constant 0 : i32
    return %c0_i32, %c0_i32_0 : i32, i32
  }
  func.func @transform_3(%arg0: i32) -> (i32, i32) {
    %c0_i32 = arith.constant 0 : i32
    %c0_i32_0 = arith.constant 0 : i32
    %c0_i32_1 = arith.constant 0 : i32
    return %c0_i32, %c0_i32_0 : i32, i32
  }
  func.func @transform_4(%arg0: i32) -> (i32, i32) {
    %c0_i32 = arith.constant 0 : i32
    %c0_i32_0 = arith.constant 0 : i32
    %c0_i32_1 = arith.constant 0 : i32
    return %c0_i32, %c0_i32_0 : i32, i32
  }
  func.func @transform_5(%arg0: i32) -> (i32, i32) {
    %c0_i32 = arith.constant 0 : i32
    %c0_i32_0 = arith.constant 0 : i32
    %c0_i32_1 = arith.constant 0 : i32
    return %c0_i32, %c0_i32_0 : i32, i32
  }
  func.func @transform_6(%arg0: i32) -> (i32, i32) {
    %c0_i32 = arith.constant 0 : i32
    %c0_i32_0 = arith.constant 0 : i32
    %c0_i32_1 = arith.constant 0 : i32
    return %c0_i32, %c0_i32_0 : i32, i32
  }
  func.func @transform_7(%arg0: i32) -> (i32, i32) {
    %c0_i32 = arith.constant 0 : i32
    %c0_i32_0 = arith.constant 0 : i32
    %c0_i32_1 = arith.constant 0 : i32
    return %c0_i32, %c0_i32_0 : i32, i32
  }
  func.func @transform_8(%arg0: i32) -> (i32, i32) {
    %c0_i32 = arith.constant 0 : i32
    %c0_i32_0 = arith.constant 0 : i32
    %c0_i32_1 = arith.constant 0 : i32
    return %c0_i32, %c0_i32_0 : i32, i32
  }
  func.func @transform_9(%arg0: i32) -> (i32, i32) {
    %c0_i32 = arith.constant 0 : i32
    %c0_i32_0 = arith.constant 0 : i32
    %c0_i32_1 = arith.constant 0 : i32
    return %c0_i32, %c0_i32_0 : i32, i32
  }
  func.func @transform_10(%arg0: i32) -> (i32, i32) {
    %c0_i32 = arith.constant 0 : i32
    %c0_i32_0 = arith.constant 0 : i32
    %c0_i32_1 = arith.constant 0 : i32
    return %c0_i32, %c0_i32_0 : i32, i32
  }
  func.func @transform_11(%arg0: i32) -> (i32, i32) {
    %c0_i32 = arith.constant 0 : i32
    %c0_i32_0 = arith.constant 0 : i32
    %c0_i32_1 = arith.constant 0 : i32
    return %c0_i32, %c0_i32_0 : i32, i32
  }
  func.func @transform_12(%arg0: i32) -> (i32, i32) {
    %c0_i32 = arith.constant 0 : i32
    %c0_i32_0 = arith.constant 0 : i32
    %c0_i32_1 = arith.constant 0 : i32
    return %c0_i32, %c0_i32_0 : i32, i32
  }
  func.func @transform_13(%arg0: i32) -> (i32, i32) {
    %c0_i32 = arith.constant 0 : i32
    %c0_i32_0 = arith.constant 0 : i32
    %c0_i32_1 = arith.constant 0 : i32
    return %c0_i32, %c0_i32_0 : i32, i32
  }
  func.func @transform_14(%arg0: i32) -> (i32, i32) {
    %c0_i32 = arith.constant 0 : i32
    %c0_i32_0 = arith.constant 0 : i32
    %c0_i32_1 = arith.constant 0 : i32
    return %c0_i32, %c0_i32_0 : i32, i32
  }
  func.func @transform_15(%arg0: i32) -> (i32, i32) {
    %c0_i32 = arith.constant 0 : i32
    %c0_i32_0 = arith.constant 0 : i32
    %c0_i32_1 = arith.constant 0 : i32
    return %c0_i32, %c0_i32_0 : i32, i32
  }
  func.func @transform_16(%arg0: i32) -> (i32, i32) {
    %c0_i32 = arith.constant 0 : i32
    %c0_i32_0 = arith.constant 0 : i32
    %c0_i32_1 = arith.constant 0 : i32
    return %c0_i32, %c0_i32_0 : i32, i32
  }
  func.func @transform_17(%arg0: i32) -> (i32, i32) {
    %c0_i32 = arith.constant 0 : i32
    %c0_i32_0 = arith.constant 0 : i32
    %c0_i32_1 = arith.constant 0 : i32
    return %c0_i32, %c0_i32_0 : i32, i32
  }
  func.func @transform_18(%arg0: i32) -> (i32, i32) {
    %c0_i32 = arith.constant 0 : i32
    %c0_i32_0 = arith.constant 0 : i32
    %c0_i32_1 = arith.constant 0 : i32
    return %c0_i32, %c0_i32_0 : i32, i32
  }
  func.func @transform_19(%arg0: i32) -> (i32, i32) {
    %c0_i32 = arith.constant 0 : i32
    %c0_i32_0 = arith.constant 0 : i32
    %c0_i32_1 = arith.constant 0 : i32
    return %c0_i32, %c0_i32_0 : i32, i32
  }
  func.func @transform_20(%arg0: i32) -> (i32, i32) {
    %c0_i32 = arith.constant 0 : i32
    %c0_i32_0 = arith.constant 0 : i32
    %c0_i32_1 = arith.constant 0 : i32
    return %c0_i32, %c0_i32_0 : i32, i32
  }
  func.func @transform_21(%arg0: i32) -> (i32, i32) {
    %c0_i32 = arith.constant 0 : i32
    %c0_i32_0 = arith.constant 0 : i32
    %c0_i32_1 = arith.constant 0 : i32
    return %c0_i32, %c0_i32_0 : i32, i32
  }
  func.func @transform_22(%arg0: i32) -> (i32, i32) {
    %c0_i32 = arith.constant 0 : i32
    %c0_i32_0 = arith.constant 0 : i32
    %c0_i32_1 = arith.constant 0 : i32
    return %c0_i32, %c0_i32_0 : i32, i32
  }
  func.func @transform_23(%arg0: i32) -> (i32, i32) {
    %c0_i32 = arith.constant 0 : i32
    %c0_i32_0 = arith.constant 0 : i32
    %c0_i32_1 = arith.constant 0 : i32
    return %c0_i32, %c0_i32_0 : i32, i32
  }
  func.func @transform_24(%arg0: i32) -> (i32, i32) {
    %c0_i32 = arith.constant 0 : i32
    %c0_i32_0 = arith.constant 0 : i32
    return %arg0, %c0_i32 : i32, i32
  }
}

</mosaic_0001>

<llo_original>
// kernel: tpu_custom_call.1
$region0: #{tpu_custom_call.1}
  #allocation0 [shape = 'u32[]', space=smem, size = 0x4, offset = 0x4, fixed_abs, tag = 'smem constant byte address 0x4 - core index']
  #allocation1 [shape = 'u32[144,128]{1,0:T(1,128)}', space=vmem, size = 0x12000, scoped, tag = 'internal scratch']
  %s0 = inlined_call_operand.vmem [shape: bf16[128,96], index: 0, kind: input, shape index: {}]
  %s1 = inlined_call_operand.vmem [shape: f32[4,64], index: 1, kind: input, shape index: {}]
  %s2 = inlined_call_operand.hbm [shape: bf16[96,128], index: 2, kind: input, shape index: {}]
  %s3 = inlined_call_operand.vmem [shape: f32[1,128], index: 3, kind: input, shape index: {}]
  %s4 = inlined_call_operand.vmem [shape: bf16[128,128], index: 4, kind: input, shape index: {}]
  %s5 = inlined_call_operand.vmem [shape: f32[1,128], index: 5, kind: input, shape index: {}]
  %s6 = inlined_call_operand.vmem [shape: bf16[128,128], index: 6, kind: input, shape index: {}]
  %s7 = inlined_call_operand.vmem [shape: f32[1,128], index: 7, kind: input, shape index: {}]
  %s8 = inlined_call_operand.vmem [shape: bf16[128,128], index: 8, kind: input, shape index: {}]
  %s9 = inlined_call_operand.vmem [shape: f32[1,128], index: 9, kind: input, shape index: {}]
  %s10 = inlined_call_operand.vmem [shape: bf16[128,128], index: 10, kind: input, shape index: {}]
  %s11 = inlined_call_operand.vmem [shape: f32[1,128], index: 11, kind: input, shape index: {}]
  %s12 = inlined_call_operand.vmem [shape: bf16[224,128], index: 12, kind: input, shape index: {}]
  %s13 = inlined_call_operand.vmem [shape: f32[1,128], index: 13, kind: input, shape index: {}]
  %s14 = inlined_call_operand.hbm [shape: bf16[128,128], index: 14, kind: input, shape index: {}]
  %s15 = inlined_call_operand.vmem [shape: f32[1,128], index: 15, kind: input, shape index: {}]
  %s16 = inlined_call_operand.hbm [shape: bf16[128,128], index: 16, kind: input, shape index: {}]
  %s17 = inlined_call_operand.vmem [shape: f32[1,128], index: 17, kind: input, shape index: {}]
  %s18 = inlined_call_operand.vmem [shape: bf16[128,129], index: 18, kind: input, shape index: {}]
  %s19 = inlined_call_operand.vmem [shape: f32[1,129], index: 19, kind: input, shape index: {}]
  %s20 = inlined_call_operand.vmem [shape: bf16[128,64], index: 20, kind: input, shape index: {}]
  %s21 = inlined_call_operand.vmem [shape: f32[1,64], index: 21, kind: input, shape index: {}]
  %s22 = inlined_call_operand.vmem [shape: bf16[64,8], index: 22, kind: input, shape index: {}]
  %s23 = inlined_call_operand.vmem [shape: f32[1,8], index: 23, kind: input, shape index: {}]
  %s24 = inlined_call_operand.vmem [shape: f32[128,8], index: 24, kind: output, shape index: {}]
  %s25 = sld [smem:[#allocation0]]
  $region118: #{tpu_custom_call.1} parent=0
    _
  %s27 = ssub.s32 1, %s25
  %s28 = scalar_select 0, %s27, %s25
  $region1: #{tpu_custom_call.1} parent=0
    #allocation2 [shape = 'u8[24576]{0}', space=vmem, size = 0x6000, scoped, tag = 'input window, operand 2, single buffered']
    #allocation3 [shape = 's32[1]{0}', space=sflag, size = 0x4, scoped, tag = 'scoped memory for tpu_custom_call.1']
    #allocation4 [shape = 'u8[32768]{0}', space=vmem, size = 0x8000, scoped, tag = 'input window, operand 14, single buffered']
    #allocation5 [shape = 's32[1]{0}', space=sflag, size = 0x4, scoped, tag = 'scoped memory for tpu_custom_call.1']
    #allocation6 [shape = 'u8[32768]{0}', space=vmem, size = 0x8000, scoped, tag = 'input window, operand 16, single buffered']
    %29 = vsyncpa [#allocation3], 0
    %30 = vsyncpa [#allocation5], 0
    // Predicated region
    $region2: #{tpu_custom_call.1} parent=1 // pred_check
      _
    $region3: #{tpu_custom_call.1} parent=1 // pred_check_branch
      %32 = sbr.rel (0) target = $region5
    $region4: #{tpu_custom_call.1} parent=1 // pred_region
      _
    $region5: #{tpu_custom_call.1} parent=1 // pred_fallthru
      _
    // Predicated region
    $region6: #{tpu_custom_call.1} parent=1 // pred_check
      _
    $region7: #{tpu_custom_call.1} parent=1 // pred_check_branch
      %34 = sbr.rel (0) target = $region9
    $region8: #{tpu_custom_call.1} parent=1 // pred_region
      _
    $region9: #{tpu_custom_call.1} parent=1 // pred_fallthru
      _
    // Predicated region
    $region10: #{tpu_custom_call.1} parent=1 // pred_check
      _
    $region11: #{tpu_custom_call.1} parent=1 // pred_check_branch
      %36 = sbr.rel (0) target = $region13
    $region12: #{tpu_custom_call.1} parent=1 // pred_region
      %s38 = ssub.s32 768, 768
      %39 = vsyncadd [#allocation3], %s38
      %s40 = sshll.u32 [#allocation2], 4
      %s41 = int_to_ptr.vmem [resolvable:$true] %s40
      %46 = dma.hbm_to_vmem [thread:$0]  %s2, 768, %s41, [#allocation3], 64, 64, 4
    $region13: #{tpu_custom_call.1} parent=1 // pred_fallthru
      _
    // Predicated region
    $region14: #{tpu_custom_call.1} parent=1 // pred_check
      _
    $region15: #{tpu_custom_call.1} parent=1 // pred_check_branch
      %48 = sbr.rel (0) target = $region17
    $region16: #{tpu_custom_call.1} parent=1 // pred_region
      _
    $region17: #{tpu_custom_call.1} parent=1 // pred_fallthru
      _
    // Predicated region
    $region18: #{tpu_custom_call.1} parent=1 // pred_check
      _
    $region19: #{tpu_custom_call.1} parent=1 // pred_check_branch
      %50 = sbr.rel (0) target = $region21
    $region20: #{tpu_custom_call.1} parent=1 // pred_region
      _
    $region21: #{tpu_custom_call.1} parent=1 // pred_fallthru
      _
    // Predicated region
    $region22: #{tpu_custom_call.1} parent=1 // pred_check
      _
    $region23: #{tpu_custom_call.1} parent=1 // pred_check_branch
      %52 = sbr.rel (0) target = $region25
    $region24: #{tpu_custom_call.1} parent=1 // pred_region
      _
    $region25: #{tpu_custom_call.1} parent=1 // pred_fallthru
      _
    // Predicated region
    $region26: #{tpu_custom_call.1} parent=1 // pred_check
      _
    $region27: #{tpu_custom_call.1} parent=1 // pred_check_branch
      %54 = sbr.rel (0) target = $region29
    $region28: #{tpu_custom_call.1} parent=1 // pred_region
      _
    $region29: #{tpu_custom_call.1} parent=1 // pred_fallthru
      _
    // Predicated region
    $region30: #{tpu_custom_call.1} parent=1 // pred_check
      _
    $region31: #{tpu_custom_call.1} parent=1 // pred_check_branch
      %56 = sbr.rel (0) target = $region33
    $region32: #{tpu_custom_call.1} parent=1 // pred_region
      _
    $region33: #{tpu_custom_call.1} parent=1 // pred_fallthru
      _
    // Predicated region
    $region34: #{tpu_custom_call.1} parent=1 // pred_check
      _
    $region35: #{tpu_custom_call.1} parent=1 // pred_check_branch
      %58 = sbr.rel (0) target = $region37
    $region36: #{tpu_custom_call.1} parent=1 // pred_region
      _
    $region37: #{tpu_custom_call.1} parent=1 // pred_fallthru
      _
    // Predicated region
    $region38: #{tpu_custom_call.1} parent=1 // pred_check
      _
    $region39: #{tpu_custom_call.1} parent=1 // pred_check_branch
      %60 = sbr.rel (0) target = $region41
    $region40: #{tpu_custom_call.1} parent=1 // pred_region
      _
    $region41: #{tpu_custom_call.1} parent=1 // pred_fallthru
      _
    // Predicated region
    $region42: #{tpu_custom_call.1} parent=1 // pred_check
      _
    $region43: #{tpu_custom_call.1} parent=1 // pred_check_branch
      %62 = sbr.rel (0) target = $region45
    $region44: #{tpu_custom_call.1} parent=1 // pred_region
      _
    $region45: #{tpu_custom_call.1} parent=1 // pred_fallthru
      _
    // Predicated region
    $region46: #{tpu_custom_call.1} parent=1 // pred_check
      _
    $region47: #{tpu_custom_call.1} parent=1 // pred_check_branch
      %64 = sbr.rel (0) target = $region49
    $region48: #{tpu_custom_call.1} parent=1 // pred_region
      _
    $region49: #{tpu_custom_call.1} parent=1 // pred_fallthru
      _
    // Predicated region
    $region50: #{tpu_custom_call.1} parent=1 // pred_check
      _
    $region51: #{tpu_custom_call.1} parent=1 // pred_check_branch
      %66 = sbr.rel (0) target = $region53
    $region52: #{tpu_custom_call.1} parent=1 // pred_region
      _
    $region53: #{tpu_custom_call.1} parent=1 // pred_fallthru
      _
    // Predicated region
    $region54: #{tpu_custom_call.1} parent=1 // pred_check
      _
    $region55: #{tpu_custom_call.1} parent=1 // pred_check_branch
      %68 = sbr.rel (0) target = $region57
    $region56: #{tpu_custom_call.1} parent=1 // pred_region
      _
    $region57: #{tpu_custom_call.1} parent=1 // pred_fallthru
      _
    // Predicated region
    $region58: #{tpu_custom_call.1} parent=1 // pred_check
      _
    $region59: #{tpu_custom_call.1} parent=1 // pred_check_branch
      %70 = sbr.rel (0) target = $region61
    $region60: #{tpu_custom_call.1} parent=1 // pred_region
      %s72 = ssub.s32 1024, 1024
      %73 = vsyncadd [#allocation5], %s72
      %s74 = sshll.u32 [#allocation4], 4
      %s75 = int_to_ptr.vmem [resolvable:$true] %s74
      %80 = dma.hbm_to_vmem [thread:$0]  %s14, 1024, %s75, [#allocation5], 64, 64, 4
    $region61: #{tpu_custom_call.1} parent=1 // pred_fallthru
      _
    // Predicated region
    $region62: #{tpu_custom_call.1} parent=1 // pred_check
      _
    $region63: #{tpu_custom_call.1} parent=1 // pred_check_branch
      %82 = sbr.rel (0) target = $region65
    $region64: #{tpu_custom_call.1} parent=1 // pred_region
      _
    $region65: #{tpu_custom_call.1} parent=1 // pred_fallthru
      _
    // Predicated region
    $region66: #{tpu_custom_call.1} parent=1 // pred_check
      _
    $region67: #{tpu_custom_call.1} parent=1 // pred_check_branch
      %84 = sbr.rel (0) target = $region69
    $region68: #{tpu_custom_call.1} parent=1 // pred_region
      %s86 = ssub.s32 1024, 1024
      %87 = vsyncadd [#allocation5], %s86
      %s88 = sshll.u32 [#allocation6], 4
      %s89 = int_to_ptr.vmem [resolvable:$true] %s88
      %94 = dma.hbm_to_vmem [thread:$0]  %s16, 1024, %s89, [#allocation5], 64, 64, 4
    $region69: #{tpu_custom_call.1} parent=1 // pred_fallthru
      _
    // Predicated region
    $region70: #{tpu_custom_call.1} parent=1 // pred_check
      _
    $region71: #{tpu_custom_call.1} parent=1 // pred_check_branch
      %96 = sbr.rel (0) target = $region73
    $region72: #{tpu_custom_call.1} parent=1 // pred_region
      _
    $region73: #{tpu_custom_call.1} parent=1 // pred_fallthru
      _
    // Predicated region
    $region74: #{tpu_custom_call.1} parent=1 // pred_check
      _
    $region75: #{tpu_custom_call.1} parent=1 // pred_check_branch
      %98 = sbr.rel (0) target = $region77
    $region76: #{tpu_custom_call.1} parent=1 // pred_region
      _
    $region77: #{tpu_custom_call.1} parent=1 // pred_fallthru
      _
    // Predicated region
    $region78: #{tpu_custom_call.1} parent=1 // pred_check
      _
    $region79: #{tpu_custom_call.1} parent=1 // pred_check_branch
      %100 = sbr.rel (0) target = $region81
    $region80: #{tpu_custom_call.1} parent=1 // pred_region
      _
    $region81: #{tpu_custom_call.1} parent=1 // pred_fallthru
      _
    // Predicated region
    $region82: #{tpu_custom_call.1} parent=1 // pred_check
      _
    $region83: #{tpu_custom_call.1} parent=1 // pred_check_branch
      %102 = sbr.rel (0) target = $region85
    $region84: #{tpu_custom_call.1} parent=1 // pred_region
      _
    $region85: #{tpu_custom_call.1} parent=1 // pred_fallthru
      _
    // Predicated region
    $region86: #{tpu_custom_call.1} parent=1 // pred_check
      _
    $region87: #{tpu_custom_call.1} parent=1 // pred_check_branch
      %104 = sbr.rel (0) target = $region89
    $region88: #{tpu_custom_call.1} parent=1 // pred_region
      _
    $region89: #{tpu_custom_call.1} parent=1 // pred_fallthru
      _
    // Predicated region
    $region90: #{tpu_custom_call.1} parent=1 // pred_check
      _
    $region91: #{tpu_custom_call.1} parent=1 // pred_check_branch
      %106 = sbr.rel (0) target = $region93
    $region92: #{tpu_custom_call.1} parent=1 // pred_region
      _
    $region93: #{tpu_custom_call.1} parent=1 // pred_fallthru
      _
    // Predicated region
    $region94: #{tpu_custom_call.1} parent=1 // pred_check
      _
    $region95: #{tpu_custom_call.1} parent=1 // pred_check_branch
      %108 = sbr.rel (0) target = $region97
    $region96: #{tpu_custom_call.1} parent=1 // pred_region
      _
    $region97: #{tpu_custom_call.1} parent=1 // pred_fallthru
      _
    // Predicated region
    $region98: #{tpu_custom_call.1} parent=1 // pred_check
      _
    $region99: #{tpu_custom_call.1} parent=1 // pred_check_branch
      %110 = sbr.rel (0) target = $region101
    $region100: #{tpu_custom_call.1} parent=1 // pred_region
      %111 = dma.done [#allocation3], 768
    $region101: #{tpu_custom_call.1} parent=1 // pred_fallthru
      _
    // Predicated region
    $region102: #{tpu_custom_call.1} parent=1 // pred_check
      _
    $region103: #{tpu_custom_call.1} parent=1 // pred_check_branch
      %113 = sbr.rel (0) target = $region105
    $region104: #{tpu_custom_call.1} parent=1 // pred_region
      %114 = dma.done [#allocation5], 1024
    $region105: #{tpu_custom_call.1} parent=1 // pred_fallthru
      _
    // Predicated region
    $region106: #{tpu_custom_call.1} parent=1 // pred_check
      _
    $region107: #{tpu_custom_call.1} parent=1 // pred_check_branch
      %116 = sbr.rel (0) target = $region109
    $region108: #{tpu_custom_call.1} parent=1 // pred_region
      %117 = dma.done [#allocation5], 1024
    $region109: #{tpu_custom_call.1} parent=1 // pred_fallthru
      _
    %v119 = vld [vmem:[%s0] sm:$0xf]
    %v120 = vld [vmem:[%s0 + $0x4] sm:$0xf]
    %v121 = vld [vmem:[%s0 + $0x8] sm:$0xf]
    %v122 = vld [vmem:[%s0 + $0xc] sm:$0xf]
    %v123 = vld [vmem:[%s0 + $0x10] sm:$0xf]
    %v124 = vld [vmem:[%s0 + $0x14] sm:$0xf]
    %v125 = vld [vmem:[%s0 + $0x18] sm:$0xf]
    %v126 = vld [vmem:[%s0 + $0x1c] sm:$0xf]
    %v127 = vld [vmem:[%s0 + $0x20] sm:$0xf]
    %v128 = vld [vmem:[%s0 + $0x24] sm:$0xf]
    %v129 = vld [vmem:[%s0 + $0x28] sm:$0xf]
    %v130 = vld [vmem:[%s0 + $0x2c] sm:$0xf]
    %v131 = vld [vmem:[%s0 + $0x30] sm:$0xf]
    %v132 = vld [vmem:[%s0 + $0x34] sm:$0xf]
    %v133 = vld [vmem:[%s0 + $0x38] sm:$0xf]
    %v134 = vld [vmem:[%s0 + $0x3c] sm:$0xf]
    %v135 = vld [vmem:[#allocation2] sm:$0xf]
    %v136 = vld [vmem:[#allocation2 + $0x4] sm:$0xf]
    %v137 = vld [vmem:[#allocation2 + $0x8] sm:$0xf]
    %v138 = vld [vmem:[#allocation2 + $0xc] sm:$0xf]
    %v139 = vld [vmem:[#allocation2 + $0x10] sm:$0xf]
    %v140 = vld [vmem:[#allocation2 + $0x14] sm:$0xf]
    %v141 = vld [vmem:[#allocation2 + $0x18] sm:$0xf]
    %v142 = vld [vmem:[#allocation2 + $0x1c] sm:$0xf]
    %v143 = vld [vmem:[#allocation2 + $0x20] sm:$0xf]
    %v144 = vld [vmem:[#allocation2 + $0x24] sm:$0xf]
    %v145 = vld [vmem:[#allocation2 + $0x28] sm:$0xf]
    %v146 = vld [vmem:[#allocation2 + $0x2c] sm:$0xf]
    %v147 = vld [vmem:[%s3] sm:$0x1]
    %v149 = vlaneseq
    %v150 = vshrl.u32 %v149, 7
    %v151 = vsub.s32 0, %v150
    %v152 = vrot.slane %v147, %v151
    %v170 = vunpack.c.l.b16 %v119
    %v171 = vunpack.c.l.b16 %v120
    %v172 = vunpack.c.l.b16 %v121
    %v173 = vunpack.c.l.b16 %v122
    %v174 = vunpack.c.l.b16 %v123
    %v175 = vunpack.c.l.b16 %v124
    %v176 = vunpack.c.l.b16 %v125
    %v177 = vunpack.c.l.b16 %v126
    %v178 = vunpack.c.l.b16 %v127
    %v179 = vunpack.c.l.b16 %v128
    %v180 = vunpack.c.l.b16 %v129
    %v181 = vunpack.c.l.b16 %v130
    %v182 = vunpack.c.l.b16 %v131
    %v183 = vunpack.c.l.b16 %v132
    %v184 = vunpack.c.l.b16 %v133
    %v185 = vunpack.c.l.b16 %v134
    %v186 = vpack.c.b16 %v171, %v170
    %v187 = vpack.c.b16 %v173, %v172
    %v188 = vpack.c.b16 %v175, %v174
    %v189 = vpack.c.b16 %v177, %v176
    %v190 = vpack.c.b16 %v179, %v178
    %v191 = vpack.c.b16 %v181, %v180
    %v192 = vpack.c.b16 %v183, %v182
    %v193 = vpack.c.b16 %v185, %v184
    %v206 = vunpack.c.l.b16 %v135
    %v207 = vunpack.c.l.b16 %v136
    %v208 = vunpack.c.l.b16 %v137
    %v209 = vunpack.c.l.b16 %v138
    %v210 = vunpack.c.l.b16 %v139
    %v211 = vunpack.c.l.b16 %v140
    %v212 = vunpack.c.l.b16 %v141
    %v213 = vunpack.c.l.b16 %v142
    %v214 = vunpack.c.l.b16 %v143
    %v215 = vunpack.c.l.b16 %v144
    %v216 = vunpack.c.l.b16 %v145
    %v217 = vunpack.c.l.b16 %v146
    %v218 = vpack.c.b16 %v207, %v206
    %v219 = vpack.c.b16 %v209, %v208
    %v220 = vpack.c.b16 %v211, %v210
    %v221 = vpack.c.b16 %v213, %v212
    %v222 = vpack.c.b16 %v215, %v214
    %v223 = vpack.c.b16 %v217, %v216
    %vm230 = vcmask 785408
    %v232 = vsel %vm230, %v186, 0
    %v235 = vsel %vm230, %v187, 0
    %v238 = vsel %vm230, %v188, 0
    %v241 = vsel %vm230, %v189, 0
    %v244 = vsel %vm230, %v190, 0
    %v247 = vsel %vm230, %v191, 0
    %v250 = vsel %vm230, %v192, 0
    %v253 = vsel %vm230, %v193, 0
    %255 = vmatprep.subr.bf16.mxu0 0
    %256 = vmatpush1.bf16.msra.mxu0 %v218
    %257 = vmatprep.subr.bf16.mxu0 0
    %258 = vmatpush1.bf16.msra.mxu0 %v219
    %259 = vmatprep.subr.bf16.mxu0 0
    %260 = vmatpush1.bf16.msra.mxu0 %v220
    %261 = vmatprep.subr.bf16.mxu0 0
    %262 = vmatpush1.bf16.msra.mxu0 %v221
    %263 = vmatprep.subr.bf16.mxu0 0
    %264 = vmatpush1.bf16.msra.mxu0 %v222
    %265 = vmatprep.subr.bf16.mxu0 0
    %266 = vmatpush1.bf16.msra.mxu0 %v223
    %267 = vmatprep.subr.bf16.mxu0 0
    %268 = vmatpush1.bf16.msra.mxu0 0
    %269 = vmatprep.subr.bf16.mxu0 0
    %270 = vmatpush1.bf16.msra.mxu0 0
    %271 = vmatprep.subr.bf16.mxu0 0
    %272 = vmatpush1.bf16.msra.mxu0 0
    %273 = vmatprep.subr.bf16.mxu0 0
    %274 = vmatpush1.bf16.msra.mxu0 0
    %275 = vmatprep.subr.bf16.mxu0 0
    %276 = vmatpush1.bf16.msra.mxu0 0
    %277 = vmatprep.subr.bf16.mxu0 0
    %278 = vmatpush1.bf16.msra.mxu0 0
    %279 = vmatprep.subr.bf16.mxu0 0
    %280 = vmatpush1.bf16.msra.mxu0 0
    %281 = vmatprep.subr.bf16.mxu0 0
    %282 = vmatpush1.bf16.msra.mxu0 0
    %283 = vmatprep.subr.bf16.mxu0 0
    %284 = vmatpush1.bf16.msra.mxu0 0
    %285 = vmatprep.subr.bf16.mxu0 0
    %286 = vmatpush1.bf16.msra.mxu0 0
    %287 = vmatprep.mubr.bf16.mxu0 0
    %288 = vmatmul.mubr.bf16.gmra.mrb[0].mxu0 %v232
    %v289 = vpop.f32.mrb[0].mxu0
    %v290 = vadd.f32 %v152, %v289
    %v291 = vpop.f32.mrb[0].mxu0
    %v292 = vpop.f32.mrb[0].mxu0
    %v293 = vadd.f32 %v152, %v292
    %v294 = vpop.f32.mrb[0].mxu0
    %295 = vmatprep.mubr.bf16.mxu0 0
    %296 = vmatmul.mubr.bf16.gmra.mrb[0].mxu0 %v235
    %v297 = vpop.f32.mrb[0].mxu0
    %v298 = vadd.f32 %v152, %v297
    %v299 = vpop.f32.mrb[0].mxu0
    %v300 = vpop.f32.mrb[0].mxu0
    %v301 = vadd.f32 %v152, %v300
    %v302 = vpop.f32.mrb[0].mxu0
    %303 = vmatprep.mubr.bf16.mxu0 0
    %304 = vmatmul.mubr.bf16.gmra.mrb[0].mxu0 %v238
    %v305 = vpop.f32.mrb[0].mxu0
    %v306 = vadd.f32 %v152, %v305
    %v307 = vpop.f32.mrb[0].mxu0
    %v308 = vpop.f32.mrb[0].mxu0
    %v309 = vadd.f32 %v152, %v308
    %v310 = vpop.f32.mrb[0].mxu0
    %311 = vmatprep.mubr.bf16.mxu0 0
    %312 = vmatmul.mubr.bf16.gmra.mrb[0].mxu0 %v241
    %v313 = vpop.f32.mrb[0].mxu0
    %v314 = vadd.f32 %v152, %v313
    %v315 = vpop.f32.mrb[0].mxu0
    %v316 = vpop.f32.mrb[0].mxu0
    %v317 = vadd.f32 %v152, %v316
    %v318 = vpop.f32.mrb[0].mxu0
    %319 = vmatprep.mubr.bf16.mxu0 0
    %320 = vmatmul.mubr.bf16.gmra.mrb[0].mxu0 %v244
    %v321 = vpop.f32.mrb[0].mxu0
    %v322 = vadd.f32 %v152, %v321
    %v323 = vpop.f32.mrb[0].mxu0
    %v324 = vpop.f32.mrb[0].mxu0
    %v325 = vadd.f32 %v152, %v324
    %v326 = vpop.f32.mrb[0].mxu0
    %327 = vmatprep.mubr.bf16.mxu0 0
    %328 = vmatmul.mubr.bf16.gmra.mrb[0].mxu0 %v247
    %v329 = vpop.f32.mrb[0].mxu0
    %v330 = vadd.f32 %v152, %v329
    %v331 = vpop.f32.mrb[0].mxu0
    %v332 = vpop.f32.mrb[0].mxu0
    %v333 = vadd.f32 %v152, %v332
    %v334 = vpop.f32.mrb[0].mxu0
    %335 = vmatprep.mubr.bf16.mxu0 0
    %336 = vmatmul.mubr.bf16.gmra.mrb[0].mxu0 %v250
    %v337 = vpop.f32.mrb[0].mxu0
    %v338 = vadd.f32 %v152, %v337
    %v339 = vpop.f32.mrb[0].mxu0
    %v340 = vpop.f32.mrb[0].mxu0
    %v341 = vadd.f32 %v152, %v340
    %v342 = vpop.f32.mrb[0].mxu0
    %343 = vmatprep.mubr.bf16.mxu0 0
    %344 = vmatmul.mubr.bf16.gmra.mrb[0].mxu0 %v253
    %v345 = vpop.f32.mrb[0].mxu0
    %v346 = vadd.f32 %v152, %v345
    %v347 = vpop.f32.mrb[0].mxu0
    %v348 = vpop.f32.mrb[0].mxu0
    %v349 = vadd.f32 %v152, %v348
    %v350 = vpop.f32.mrb[0].mxu0
    %351 = vdwg.mxu0
    %v352 = vmax.f32 %v290, 0.0
    %v353 = vmax.f32 %v293, 0.0
    %v354 = vmax.f32 %v298, 0.0
    %v355 = vmax.f32 %v301, 0.0
    %v356 = vmax.f32 %v306, 0.0
    %v357 = vmax.f32 %v309, 0.0
    %v358 = vmax.f32 %v314, 0.0
    %v359 = vmax.f32 %v317, 0.0
    %v360 = vmax.f32 %v322, 0.0
    %v361 = vmax.f32 %v325, 0.0
    %v362 = vmax.f32 %v330, 0.0
    %v363 = vmax.f32 %v333, 0.0
    %v364 = vmax.f32 %v338, 0.0
    %v365 = vmax.f32 %v341, 0.0
    %v366 = vmax.f32 %v346, 0.0
    %v367 = vmax.f32 %v349, 0.0
    %v368 = vpack.c.bf16 %v353, %v352
    %v369 = vpack.c.bf16 %v355, %v354
    %v370 = vpack.c.bf16 %v357, %v356
    %v371 = vpack.c.bf16 %v359, %v358
    %v372 = vpack.c.bf16 %v361, %v360
    %v373 = vpack.c.bf16 %v363, %v362
    %v374 = vpack.c.bf16 %v365, %v364
    %v375 = vpack.c.bf16 %v367, %v366
    %v376 = vld [vmem:[%s4] sm:$0xf]
    %v377 = vld [vmem:[%s4 + $0x4] sm:$0xf]
    %v378 = vld [vmem:[%s4 + $0x8] sm:$0xf]
    %v379 = vld [vmem:[%s4 + $0xc] sm:$0xf]
    %v380 = vld [vmem:[%s4 + $0x10] sm:$0xf]
    %v381 = vld [vmem:[%s4 + $0x14] sm:$0xf]
    %v382 = vld [vmem:[%s4 + $0x18] sm:$0xf]
    %v383 = vld [vmem:[%s4 + $0x1c] sm:$0xf]
    %v384 = vld [vmem:[%s4 + $0x20] sm:$0xf]
    %v385 = vld [vmem:[%s4 + $0x24] sm:$0xf]
    %v386 = vld [vmem:[%s4 + $0x28] sm:$0xf]
    %v387 = vld [vmem:[%s4 + $0x2c] sm:$0xf]
    %v388 = vld [vmem:[%s4 + $0x30] sm:$0xf]
    %v389 = vld [vmem:[%s4 + $0x34] sm:$0xf]
    %v390 = vld [vmem:[%s4 + $0x38] sm:$0xf]
    %v391 = vld [vmem:[%s4 + $0x3c] sm:$0xf]
    %v392 = vld [vmem:[%s5] sm:$0x1]
    %v394 = vlaneseq
    %v395 = vshrl.u32 %v394, 7
    %v396 = vsub.s32 0, %v395
    %v397 = vrot.slane %v392, %v396
    %v415 = vunpack.c.l.b16 %v376
    %v416 = vunpack.c.l.b16 %v377
    %v417 = vunpack.c.l.b16 %v378
    %v418 = vunpack.c.l.b16 %v379
    %v419 = vunpack.c.l.b16 %v380
    %v420 = vunpack.c.l.b16 %v381
    %v421 = vunpack.c.l.b16 %v382
    %v422 = vunpack.c.l.b16 %v383
    %v423 = vunpack.c.l.b16 %v384
    %v424 = vunpack.c.l.b16 %v385
    %v425 = vunpack.c.l.b16 %v386
    %v426 = vunpack.c.l.b16 %v387
    %v427 = vunpack.c.l.b16 %v388
    %v428 = vunpack.c.l.b16 %v389
    %v429 = vunpack.c.l.b16 %v390
    %v430 = vunpack.c.l.b16 %v391
    %v431 = vpack.c.b16 %v416, %v415
    %v432 = vpack.c.b16 %v418, %v417
    %v433 = vpack.c.b16 %v420, %v419
    %v434 = vpack.c.b16 %v422, %v421
    %v435 = vpack.c.b16 %v424, %v423
    %v436 = vpack.c.b16 %v426, %v425
    %v437 = vpack.c.b16 %v428, %v427
    %v438 = vpack.c.b16 %v430, %v429
    %447 = vmatprep.subr.bf16.mxu0 0
    %448 = vmatpush1.bf16.msra.mxu0 %v431
    %449 = vmatprep.subr.bf16.mxu0 0
    %450 = vmatpush1.bf16.msra.mxu0 %v432
    %451 = vmatprep.subr.bf16.mxu0 0
    %452 = vmatpush1.bf16.msra.mxu0 %v433
    %453 = vmatprep.subr.bf16.mxu0 0
    %454 = vmatpush1.bf16.msra.mxu0 %v434
    %455 = vmatprep.subr.bf16.mxu0 0
    %456 = vmatpush1.bf16.msra.mxu0 %v435
    %457 = vmatprep.subr.bf16.mxu0 0
    %458 = vmatpush1.bf16.msra.mxu0 %v436
    %459 = vmatprep.subr.bf16.mxu0 0
    %460 = vmatpush1.bf16.msra.mxu0 %v437
    %461 = vmatprep.subr.bf16.mxu0 0
    %462 = vmatpush1.bf16.msra.mxu0 %v438
    %463 = vmatprep.subr.bf16.mxu0 0
    %464 = vmatpush1.bf16.msra.mxu0 0
    %465 = vmatprep.subr.bf16.mxu0 0
    %466 = vmatpush1.bf16.msra.mxu0 0
    %467 = vmatprep.subr.bf16.mxu0 0
    %468 = vmatpush1.bf16.msra.mxu0 0
    %469 = vmatprep.subr.bf16.mxu0 0
    %470 = vmatpush1.bf16.msra.mxu0 0
    %471 = vmatprep.subr.bf16.mxu0 0
    %472 = vmatpush1.bf16.msra.mxu0 0
    %473 = vmatprep.subr.bf16.mxu0 0
    %474 = vmatpush1.bf16.msra.mxu0 0
    %475 = vmatprep.subr.bf16.mxu0 0
    %476 = vmatpush1.bf16.msra.mxu0 0
    %477 = vmatprep.subr.bf16.mxu0 0
    %478 = vmatpush1.bf16.msra.mxu0 0
    %479 = vmatprep.mubr.bf16.mxu0 0
    %480 = vmatmul.mubr.bf16.gmra.mrb[0].mxu0 %v368
    %v481 = vpop.f32.mrb[0].mxu0
    %v482 = vadd.f32 %v397, %v481
    %v483 = vpop.f32.mrb[0].mxu0
    %v484 = vpop.f32.mrb[0].mxu0
    %v485 = vadd.f32 %v397, %v484
    %v486 = vpop.f32.mrb[0].mxu0
    %487 = vmatprep.mubr.bf16.mxu0 0
    %488 = vmatmul.mubr.bf16.gmra.mrb[0].mxu0 %v369
    %v489 = vpop.f32.mrb[0].mxu0
    %v490 = vadd.f32 %v397, %v489
    %v491 = vpop.f32.mrb[0].mxu0
    %v492 = vpop.f32.mrb[0].mxu0
    %v493 = vadd.f32 %v397, %v492
    %v494 = vpop.f32.mrb[0].mxu0
    %495 = vmatprep.mubr.bf16.mxu0 0
    %496 = vmatmul.mubr.bf16.gmra.mrb[0].mxu0 %v370
    %v497 = vpop.f32.mrb[0].mxu0
    %v498 = vadd.f32 %v397, %v497
    %v499 = vpop.f32.mrb[0].mxu0
    %v500 = vpop.f32.mrb[0].mxu0
    %v501 = vadd.f32 %v397, %v500
    %v502 = vpop.f32.mrb[0].mxu0
    %503 = vmatprep.mubr.bf16.mxu0 0
    %504 = vmatmul.mubr.bf16.gmra.mrb[0].mxu0 %v371
    %v505 = vpop.f32.mrb[0].mxu0
    %v506 = vadd.f32 %v397, %v505
    %v507 = vpop.f32.mrb[0].mxu0
    %v508 = vpop.f32.mrb[0].mxu0
    %v509 = vadd.f32 %v397, %v508
    %v510 = vpop.f32.mrb[0].mxu0
    %511 = vmatprep.mubr.bf16.mxu0 0
    %512 = vmatmul.mubr.bf16.gmra.mrb[0].mxu0 %v372
    %v513 = vpop.f32.mrb[0].mxu0
    %v514 = vadd.f32 %v397, %v513
    %v515 = vpop.f32.mrb[0].mxu0
    %v516 = vpop.f32.mrb[0].mxu0
    %v517 = vadd.f32 %v397, %v516
    %v518 = vpop.f32.mrb[0].mxu0
    %519 = vmatprep.mubr.bf16.mxu0 0
    %520 = vmatmul.mubr.bf16.gmra.mrb[0].mxu0 %v373
    %v521 = vpop.f32.mrb[0].mxu0
    %v522 = vadd.f32 %v397, %v521
    %v523 = vpop.f32.mrb[0].mxu0
    %v524 = vpop.f32.mrb[0].mxu0
    %v525 = vadd.f32 %v397, %v524
    %v526 = vpop.f32.mrb[0].mxu0
    %527 = vmatprep.mubr.bf16.mxu0 0
    %528 = vmatmul.mubr.bf16.gmra.mrb[0].mxu0 %v374
    %v529 = vpop.f32.mrb[0].mxu0
    %v530 = vadd.f32 %v397, %v529
    %v531 = vpop.f32.mrb[0].mxu0
    %v532 = vpop.f32.mrb[0].mxu0
    %v533 = vadd.f32 %v397, %v532
    %v534 = vpop.f32.mrb[0].mxu0
    %535 = vmatprep.mubr.bf16.mxu0 0
    %536 = vmatmul.mubr.bf16.gmra.mrb[0].mxu0 %v375
    %v537 = vpop.f32.mrb[0].mxu0
    %v538 = vadd.f32 %v397, %v537
    %v539 = vpop.f32.mrb[0].mxu0
    %v540 = vpop.f32.mrb[0].mxu0
    %v541 = vadd.f32 %v397, %v540
    %v542 = vpop.f32.mrb[0].mxu0
    %543 = vdwg.mxu0
    %v544 = vmax.f32 %v482, 0.0
    %v545 = vmax.f32 %v485, 0.0
    %v546 = vmax.f32 %v490, 0.0
    %v547 = vmax.f32 %v493, 0.0
    %v548 = vmax.f32 %v498, 0.0
    %v549 = vmax.f32 %v501, 0.0
    %v550 = vmax.f32 %v506, 0.0
    %v551 = vmax.f32 %v509, 0.0
    %v552 = vmax.f32 %v514, 0.0
    %v553 = vmax.f32 %v517, 0.0
    %v554 = vmax.f32 %v522, 0.0
    %v555 = vmax.f32 %v525, 0.0
    %v556 = vmax.f32 %v530, 0.0
    %v557 = vmax.f32 %v533, 0.0
    %v558 = vmax.f32 %v538, 0.0
    %v559 = vmax.f32 %v541, 0.0
    %v560 = vpack.c.bf16 %v545, %v544
    %v561 = vpack.c.bf16 %v547, %v546
    %v562 = vpack.c.bf16 %v549, %v548
    %v563 = vpack.c.bf16 %v551, %v550
    %v564 = vpack.c.bf16 %v553, %v552
    %v565 = vpack.c.bf16 %v555, %v554
    %v566 = vpack.c.bf16 %v557, %v556
    %v567 = vpack.c.bf16 %v559, %v558
    %v568 = vld [vmem:[%s6] sm:$0xf]
    %v569 = vld [vmem:[%s6 + $0x4] sm:$0xf]
    %v570 = vld [vmem:[%s6 + $0x8] sm:$0xf]
    %v571 = vld [vmem:[%s6 + $0xc] sm:$0xf]
    %v572 = vld [vmem:[%s6 + $0x10] sm:$0xf]
    %v573 = vld [vmem:[%s6 + $0x14] sm:$0xf]
    %v574 = vld [vmem:[%s6 + $0x18] sm:$0xf]
    %v575 = vld [vmem:[%s6 + $0x1c] sm:$0xf]
    %v576 = vld [vmem:[%s6 + $0x20] sm:$0xf]
    %v577 = vld [vmem:[%s6 + $0x24] sm:$0xf]
    %v578 = vld [vmem:[%s6 + $0x28] sm:$0xf]
    %v579 = vld [vmem:[%s6 + $0x2c] sm:$0xf]
    %v580 = vld [vmem:[%s6 + $0x30] sm:$0xf]
    %v581 = vld [vmem:[%s6 + $0x34] sm:$0xf]
    %v582 = vld [vmem:[%s6 + $0x38] sm:$0xf]
    %v583 = vld [vmem:[%s6 + $0x3c] sm:$0xf]
    %v584 = vld [vmem:[%s7] sm:$0x1]
    %v586 = vlaneseq
    %v587 = vshrl.u32 %v586, 7
    %v588 = vsub.s32 0, %v587
    %v589 = vrot.slane %v584, %v588
    %v607 = vunpack.c.l.b16 %v568
    %v608 = vunpack.c.l.b16 %v569
    %v609 = vunpack.c.l.b16 %v570
    %v610 = vunpack.c.l.b16 %v571
    %v611 = vunpack.c.l.b16 %v572
    %v612 = vunpack.c.l.b16 %v573
    %v613 = vunpack.c.l.b16 %v574
    %v614 = vunpack.c.l.b16 %v575
    %v615 = vunpack.c.l.b16 %v576
    %v616 = vunpack.c.l.b16 %v577
    %v617 = vunpack.c.l.b16 %v578
    %v618 = vunpack.c.l.b16 %v579
    %v619 = vunpack.c.l.b16 %v580
    %v620 = vunpack.c.l.b16 %v581
    %v621 = vunpack.c.l.b16 %v582
    %v622 = vunpack.c.l.b16 %v583
    %v623 = vpack.c.b16 %v608, %v607
    %v624 = vpack.c.b16 %v610, %v609
    %v625 = vpack.c.b16 %v612, %v611
    %v626 = vpack.c.b16 %v614, %v613
    %v627 = vpack.c.b16 %v616, %v615
    %v628 = vpack.c.b16 %v618, %v617
    %v629 = vpack.c.b16 %v620, %v619
    %v630 = vpack.c.b16 %v622, %v621
    %639 = vmatprep.subr.bf16.mxu0 0
    %640 = vmatpush1.bf16.msra.mxu0 %v623
    %641 = vmatprep.subr.bf16.mxu0 0
    %642 = vmatpush1.bf16.msra.mxu0 %v624
    %643 = vmatprep.subr.bf16.mxu0 0
    %644 = vmatpush1.bf16.msra.mxu0 %v625
    %645 = vmatprep.subr.bf16.mxu0 0
    %646 = vmatpush1.bf16.msra.mxu0 %v626
    %647 = vmatprep.subr.bf16.mxu0 0
    %648 = vmatpush1.bf16.msra.mxu0 %v627
    %649 = vmatprep.subr.bf16.mxu0 0
    %650 = vmatpush1.bf16.msra.mxu0 %v628
    %651 = vmatprep.subr.bf16.mxu0 0
    %652 = vmatpush1.bf16.msra.mxu0 %v629
    %653 = vmatprep.subr.bf16.mxu0 0
    %654 = vmatpush1.bf16.msra.mxu0 %v630
    %655 = vmatprep.subr.bf16.mxu0 0
    %656 = vmatpush1.bf16.msra.mxu0 0
    %657 = vmatprep.subr.bf16.mxu0 0
    %658 = vmatpush1.bf16.msra.mxu0 0
    %659 = vmatprep.subr.bf16.mxu0 0
    %660 = vmatpush1.bf16.msra.mxu0 0
    %661 = vmatprep.subr.bf16.mxu0 0
    %662 = vmatpush1.bf16.msra.mxu0 0
    %663 = vmatprep.subr.bf16.mxu0 0
    %664 = vmatpush1.bf16.msra.mxu0 0
    %665 = vmatprep.subr.bf16.mxu0 0
    %666 = vmatpush1.bf16.msra.mxu0 0
    %667 = vmatprep.subr.bf16.mxu0 0
    %668 = vmatpush1.bf16.msra.mxu0 0
    %669 = vmatprep.subr.bf16.mxu0 0
    %670 = vmatpush1.bf16.msra.mxu0 0
    %671 = vmatprep.mubr.bf16.mxu0 0
    %672 = vmatmul.mubr.bf16.gmra.mrb[0].mxu0 %v560
    %v673 = vpop.f32.mrb[0].mxu0
    %v674 = vadd.f32 %v589, %v673
    %v675 = vpop.f32.mrb[0].mxu0
    %v676 = vpop.f32.mrb[0].mxu0
    %v677 = vadd.f32 %v589, %v676
    %v678 = vpop.f32.mrb[0].mxu0
    %679 = vmatprep.mubr.bf16.mxu0 0
    %680 = vmatmul.mubr.bf16.gmra.mrb[0].mxu0 %v561
    %v681 = vpop.f32.mrb[0].mxu0
    %v682 = vadd.f32 %v589, %v681
    %v683 = vpop.f32.mrb[0].mxu0
    %v684 = vpop.f32.mrb[0].mxu0
    %v685 = vadd.f32 %v589, %v684
    %v686 = vpop.f32.mrb[0].mxu0
    %687 = vmatprep.mubr.bf16.mxu0 0
    %688 = vmatmul.mubr.bf16.gmra.mrb[0].mxu0 %v562
    %v689 = vpop.f32.mrb[0].mxu0
    %v690 = vadd.f32 %v589, %v689
    %v691 = vpop.f32.mrb[0].mxu0
    %v692 = vpop.f32.mrb[0].mxu0
    %v693 = vadd.f32 %v589, %v692
    %v694 = vpop.f32.mrb[0].mxu0
    %695 = vmatprep.mubr.bf16.mxu0 0
    %696 = vmatmul.mubr.bf16.gmra.mrb[0].mxu0 %v563
    %v697 = vpop.f32.mrb[0].mxu0
    %v698 = vadd.f32 %v589, %v697
    %v699 = vpop.f32.mrb[0].mxu0
    %v700 = vpop.f32.mrb[0].mxu0
    %v701 = vadd.f32 %v589, %v700
    %v702 = vpop.f32.mrb[0].mxu0
    %703 = vmatprep.mubr.bf16.mxu0 0
    %704 = vmatmul.mubr.bf16.gmra.mrb[0].mxu0 %v564
    %v705 = vpop.f32.mrb[0].mxu0
    %v706 = vadd.f32 %v589, %v705
    %v707 = vpop.f32.mrb[0].mxu0
    %v708 = vpop.f32.mrb[0].mxu0
    %v709 = vadd.f32 %v589, %v708
    %v710 = vpop.f32.mrb[0].mxu0
    %711 = vmatprep.mubr.bf16.mxu0 0
    %712 = vmatmul.mubr.bf16.gmra.mrb[0].mxu0 %v565
    %v713 = vpop.f32.mrb[0].mxu0
    %v714 = vadd.f32 %v589, %v713
    %v715 = vpop.f32.mrb[0].mxu0
    %v716 = vpop.f32.mrb[0].mxu0
    %v717 = vadd.f32 %v589, %v716
    %v718 = vpop.f32.mrb[0].mxu0
    %719 = vmatprep.mubr.bf16.mxu0 0
    %720 = vmatmul.mubr.bf16.gmra.mrb[0].mxu0 %v566
    %v721 = vpop.f32.mrb[0].mxu0
    %v722 = vadd.f32 %v589, %v721
    %v723 = vpop.f32.mrb[0].mxu0
    %v724 = vpop.f32.mrb[0].mxu0
    %v725 = vadd.f32 %v589, %v724
    %v726 = vpop.f32.mrb[0].mxu0
    %727 = vmatprep.mubr.bf16.mxu0 0
    %728 = vmatmul.mubr.bf16.gmra.mrb[0].mxu0 %v567
    %v729 = vpop.f32.mrb[0].mxu0
    %v730 = vadd.f32 %v589, %v729
    %v731 = vpop.f32.mrb[0].mxu0
    %v732 = vpop.f32.mrb[0].mxu0
    %v733 = vadd.f32 %v589, %v732
    %v734 = vpop.f32.mrb[0].mxu0
    %735 = vdwg.mxu0
    %v736 = vmax.f32 %v674, 0.0
    %v737 = vmax.f32 %v677, 0.0
    %v738 = vmax.f32 %v682, 0.0
    %v739 = vmax.f32 %v685, 0.0
    %v740 = vmax.f32 %v690, 0.0
    %v741 = vmax.f32 %v693, 0.0
    %v742 = vmax.f32 %v698, 0.0
    %v743 = vmax.f32 %v701, 0.0
    %v744 = vmax.f32 %v706, 0.0
    %v745 = vmax.f32 %v709, 0.0
    %v746 = vmax.f32 %v714, 0.0
    %v747 = vmax.f32 %v717, 0.0
    %v748 = vmax.f32 %v722, 0.0
    %v749 = vmax.f32 %v725, 0.0
    %v750 = vmax.f32 %v730, 0.0
    %v751 = vmax.f32 %v733, 0.0
    %v752 = vpack.c.bf16 %v737, %v736
    %v753 = vpack.c.bf16 %v739, %v738
    %v754 = vpack.c.bf16 %v741, %v740
    %v755 = vpack.c.bf16 %v743, %v742
    %v756 = vpack.c.bf16 %v745, %v744
    %v757 = vpack.c.bf16 %v747, %v746
    %v758 = vpack.c.bf16 %v749, %v748
    %v759 = vpack.c.bf16 %v751, %v750
    %v760 = vld [vmem:[%s8] sm:$0xf]
    %v761 = vld [vmem:[%s8 + $0x4] sm:$0xf]
    %v762 = vld [vmem:[%s8 + $0x8] sm:$0xf]
    %v763 = vld [vmem:[%s8 + $0xc] sm:$0xf]
    %v764 = vld [vmem:[%s8 + $0x10] sm:$0xf]
    %v765 = vld [vmem:[%s8 + $0x14] sm:$0xf]
    %v766 = vld [vmem:[%s8 + $0x18] sm:$0xf]
    %v767 = vld [vmem:[%s8 + $0x1c] sm:$0xf]
    %v768 = vld [vmem:[%s8 + $0x20] sm:$0xf]
    %v769 = vld [vmem:[%s8 + $0x24] sm:$0xf]
    %v770 = vld [vmem:[%s8 + $0x28] sm:$0xf]
    %v771 = vld [vmem:[%s8 + $0x2c] sm:$0xf]
    %v772 = vld [vmem:[%s8 + $0x30] sm:$0xf]
    %v773 = vld [vmem:[%s8 + $0x34] sm:$0xf]
    %v774 = vld [vmem:[%s8 + $0x38] sm:$0xf]
    %v775 = vld [vmem:[%s8 + $0x3c] sm:$0xf]
    %v776 = vld [vmem:[%s9] sm:$0x1]
    %v778 = vlaneseq
    %v779 = vshrl.u32 %v778, 7
    %v780 = vsub.s32 0, %v779
    %v781 = vrot.slane %v776, %v780
    %v799 = vunpack.c.l.b16 %v760
    %v800 = vunpack.c.l.b16 %v761
    %v801 = vunpack.c.l.b16 %v762
    %v802 = vunpack.c.l.b16 %v763
    %v803 = vunpack.c.l.b16 %v764
    %v804 = vunpack.c.l.b16 %v765
    %v805 = vunpack.c.l.b16 %v766
    %v806 = vunpack.c.l.b16 %v767
    %v807 = vunpack.c.l.b16 %v768
    %v808 = vunpack.c.l.b16 %v769
    %v809 = vunpack.c.l.b16 %v770
    %v810 = vunpack.c.l.b16 %v771
    %v811 = vunpack.c.l.b16 %v772
    %v812 = vunpack.c.l.b16 %v773
    %v813 = vunpack.c.l.b16 %v774
    %v814 = vunpack.c.l.b16 %v775
    %v815 = vpack.c.b16 %v800, %v799
    %v816 = vpack.c.b16 %v802, %v801
    %v817 = vpack.c.b16 %v804, %v803
    %v818 = vpack.c.b16 %v806, %v805
    %v819 = vpack.c.b16 %v808, %v807
    %v820 = vpack.c.b16 %v810, %v809
    %v821 = vpack.c.b16 %v812, %v811
    %v822 = vpack.c.b16 %v814, %v813
    %831 = vmatprep.subr.bf16.mxu0 0
    %832 = vmatpush1.bf16.msra.mxu0 %v815
    %833 = vmatprep.subr.bf16.mxu0 0
    %834 = vmatpush1.bf16.msra.mxu0 %v816
    %835 = vmatprep.subr.bf16.mxu0 0
    %836 = vmatpush1.bf16.msra.mxu0 %v817
    %837 = vmatprep.subr.bf16.mxu0 0
    %838 = vmatpush1.bf16.msra.mxu0 %v818
    %839 = vmatprep.subr.bf16.mxu0 0
    %840 = vmatpush1.bf16.msra.mxu0 %v819
    %841 = vmatprep.subr.bf16.mxu0 0
    %842 = vmatpush1.bf16.msra.mxu0 %v820
    %843 = vmatprep.subr.bf16.mxu0 0
    %844 = vmatpush1.bf16.msra.mxu0 %v821
    %845 = vmatprep.subr.bf16.mxu0 0
    %846 = vmatpush1.bf16.msra.mxu0 %v822
    %847 = vmatprep.subr.bf16.mxu0 0
    %848 = vmatpush1.bf16.msra.mxu0 0
    %849 = vmatprep.subr.bf16.mxu0 0
    %850 = vmatpush1.bf16.msra.mxu0 0
    %851 = vmatprep.subr.bf16.mxu0 0
    %852 = vmatpush1.bf16.msra.mxu0 0
    %853 = vmatprep.subr.bf16.mxu0 0
    %854 = vmatpush1.bf16.msra.mxu0 0
    %855 = vmatprep.subr.bf16.mxu0 0
    %856 = vmatpush1.bf16.msra.mxu0 0
    %857 = vmatprep.subr.bf16.mxu0 0
    %858 = vmatpush1.bf16.msra.mxu0 0
    %859 = vmatprep.subr.bf16.mxu0 0
    %860 = vmatpush1.bf16.msra.mxu0 0
    %861 = vmatprep.subr.bf16.mxu0 0
    %862 = vmatpush1.bf16.msra.mxu0 0
    %863 = vmatprep.mubr.bf16.mxu0 0
    %864 = vmatmul.mubr.bf16.gmra.mrb[0].mxu0 %v752
    %v865 = vpop.f32.mrb[0].mxu0
    %v866 = vadd.f32 %v781, %v865
    %v867 = vpop.f32.mrb[0].mxu0
    %v868 = vpop.f32.mrb[0].mxu0
    %v869 = vadd.f32 %v781, %v868
    %v870 = vpop.f32.mrb[0].mxu0
    %871 = vmatprep.mubr.bf16.mxu0 0
    %872 = vmatmul.mubr.bf16.gmra.mrb[0].mxu0 %v753
    %v873 = vpop.f32.mrb[0].mxu0
    %v874 = vadd.f32 %v781, %v873
    %v875 = vpop.f32.mrb[0].mxu0
    %v876 = vpop.f32.mrb[0].mxu0
    %v877 = vadd.f32 %v781, %v876
    %v878 = vpop.f32.mrb[0].mxu0
    %879 = vmatprep.mubr.bf16.mxu0 0
    %880 = vmatmul.mubr.bf16.gmra.mrb[0].mxu0 %v754
    %v881 = vpop.f32.mrb[0].mxu0
    %v882 = vadd.f32 %v781, %v881
    %v883 = vpop.f32.mrb[0].mxu0
    %v884 = vpop.f32.mrb[0].mxu0
    %v885 = vadd.f32 %v781, %v884
    %v886 = vpop.f32.mrb[0].mxu0
    %887 = vmatprep.mubr.bf16.mxu0 0
    %888 = vmatmul.mubr.bf16.gmra.mrb[0].mxu0 %v755
    %v889 = vpop.f32.mrb[0].mxu0
    %v890 = vadd.f32 %v781, %v889
    %v891 = vpop.f32.mrb[0].mxu0
    %v892 = vpop.f32.mrb[0].mxu0
    %v893 = vadd.f32 %v781, %v892
    %v894 = vpop.f32.mrb[0].mxu0
    %895 = vmatprep.mubr.bf16.mxu0 0
    %896 = vmatmul.mubr.bf16.gmra.mrb[0].mxu0 %v756
    %v897 = vpop.f32.mrb[0].mxu0
    %v898 = vadd.f32 %v781, %v897
    %v899 = vpop.f32.mrb[0].mxu0
    %v900 = vpop.f32.mrb[0].mxu0
    %v901 = vadd.f32 %v781, %v900
    %v902 = vpop.f32.mrb[0].mxu0
    %903 = vmatprep.mubr.bf16.mxu0 0
    %904 = vmatmul.mubr.bf16.gmra.mrb[0].mxu0 %v757
    %v905 = vpop.f32.mrb[0].mxu0
    %v906 = vadd.f32 %v781, %v905
    %v907 = vpop.f32.mrb[0].mxu0
    %v908 = vpop.f32.mrb[0].mxu0
    %v909 = vadd.f32 %v781, %v908
    %v910 = vpop.f32.mrb[0].mxu0
    %911 = vmatprep.mubr.bf16.mxu0 0
    %912 = vmatmul.mubr.bf16.gmra.mrb[0].mxu0 %v758
    %v913 = vpop.f32.mrb[0].mxu0
    %v914 = vadd.f32 %v781, %v913
    %v915 = vpop.f32.mrb[0].mxu0
    %v916 = vpop.f32.mrb[0].mxu0
    %v917 = vadd.f32 %v781, %v916
    %v918 = vpop.f32.mrb[0].mxu0
    %919 = vmatprep.mubr.bf16.mxu0 0
    %920 = vmatmul.mubr.bf16.gmra.mrb[0].mxu0 %v759
    %v921 = vpop.f32.mrb[0].mxu0
    %v922 = vadd.f32 %v781, %v921
    %v923 = vpop.f32.mrb[0].mxu0
    %v924 = vpop.f32.mrb[0].mxu0
    %v925 = vadd.f32 %v781, %v924
    %v926 = vpop.f32.mrb[0].mxu0
    %927 = vdwg.mxu0
    %v928 = vmax.f32 %v866, 0.0
    %v929 = vmax.f32 %v869, 0.0
    %v930 = vmax.f32 %v874, 0.0
    %v931 = vmax.f32 %v877, 0.0
    %v932 = vmax.f32 %v882, 0.0
    %v933 = vmax.f32 %v885, 0.0
    %v934 = vmax.f32 %v890, 0.0
    %v935 = vmax.f32 %v893, 0.0
    %v936 = vmax.f32 %v898, 0.0
    %v937 = vmax.f32 %v901, 0.0
    %v938 = vmax.f32 %v906, 0.0
    %v939 = vmax.f32 %v909, 0.0
    %v940 = vmax.f32 %v914, 0.0
    %v941 = vmax.f32 %v917, 0.0
    %v942 = vmax.f32 %v922, 0.0
    %v943 = vmax.f32 %v925, 0.0
    %v944 = vpack.c.bf16 %v929, %v928
    %v945 = vpack.c.bf16 %v931, %v930
    %v946 = vpack.c.bf16 %v933, %v932
    %v947 = vpack.c.bf16 %v935, %v934
    %v948 = vpack.c.bf16 %v937, %v936
    %v949 = vpack.c.bf16 %v939, %v938
    %v950 = vpack.c.bf16 %v941, %v940
    %v951 = vpack.c.bf16 %v943, %v942
    %v952 = vld [vmem:[%s10] sm:$0xf]
    %v953 = vld [vmem:[%s10 + $0x4] sm:$0xf]
    %v954 = vld [vmem:[%s10 + $0x8] sm:$0xf]
    %v955 = vld [vmem:[%s10 + $0xc] sm:$0xf]
    %v956 = vld [vmem:[%s10 + $0x10] sm:$0xf]
    %v957 = vld [vmem:[%s10 + $0x14] sm:$0xf]
    %v958 = vld [vmem:[%s10 + $0x18] sm:$0xf]
    %v959 = vld [vmem:[%s10 + $0x1c] sm:$0xf]
    %v960 = vld [vmem:[%s10 + $0x20] sm:$0xf]
    %v961 = vld [vmem:[%s10 + $0x24] sm:$0xf]
    %v962 = vld [vmem:[%s10 + $0x28] sm:$0xf]
    %v963 = vld [vmem:[%s10 + $0x2c] sm:$0xf]
    %v964 = vld [vmem:[%s10 + $0x30] sm:$0xf]
    %v965 = vld [vmem:[%s10 + $0x34] sm:$0xf]
    %v966 = vld [vmem:[%s10 + $0x38] sm:$0xf]
    %v967 = vld [vmem:[%s10 + $0x3c] sm:$0xf]
    %v968 = vld [vmem:[%s11] sm:$0x1]
    %v970 = vlaneseq
    %v971 = vshrl.u32 %v970, 7
    %v972 = vsub.s32 0, %v971
    %v973 = vrot.slane %v968, %v972
    %v991 = vunpack.c.l.b16 %v952
    %v992 = vunpack.c.l.b16 %v953
    %v993 = vunpack.c.l.b16 %v954
    %v994 = vunpack.c.l.b16 %v955
    %v995 = vunpack.c.l.b16 %v956
    %v996 = vunpack.c.l.b16 %v957
    %v997 = vunpack.c.l.b16 %v958
    %v998 = vunpack.c.l.b16 %v959
    %v999 = vunpack.c.l.b16 %v960
    %v1000 = vunpack.c.l.b16 %v961
    %v1001 = vunpack.c.l.b16 %v962
    %v1002 = vunpack.c.l.b16 %v963
    %v1003 = vunpack.c.l.b16 %v964
    %v1004 = vunpack.c.l.b16 %v965
    %v1005 = vunpack.c.l.b16 %v966
    %v1006 = vunpack.c.l.b16 %v967
    %v1007 = vpack.c.b16 %v992, %v991
    %v1008 = vpack.c.b16 %v994, %v993
    %v1009 = vpack.c.b16 %v996, %v995
    %v1010 = vpack.c.b16 %v998, %v997
    %v1011 = vpack.c.b16 %v1000, %v999
    %v1012 = vpack.c.b16 %v1002, %v1001
    %v1013 = vpack.c.b16 %v1004, %v1003
    %v1014 = vpack.c.b16 %v1006, %v1005
    %1023 = vmatprep.subr.bf16.mxu0 0
    %1024 = vmatpush1.bf16.msra.mxu0 %v1007
    %1025 = vmatprep.subr.bf16.mxu0 0
    %1026 = vmatpush1.bf16.msra.mxu0 %v1008
    %1027 = vmatprep.subr.bf16.mxu0 0
    %1028 = vmatpush1.bf16.msra.mxu0 %v1009
    %1029 = vmatprep.subr.bf16.mxu0 0
    %1030 = vmatpush1.bf16.msra.mxu0 %v1010
    %1031 = vmatprep.subr.bf16.mxu0 0
    %1032 = vmatpush1.bf16.msra.mxu0 %v1011
    %1033 = vmatprep.subr.bf16.mxu0 0
    %1034 = vmatpush1.bf16.msra.mxu0 %v1012
    %1035 = vmatprep.subr.bf16.mxu0 0
    %1036 = vmatpush1.bf16.msra.mxu0 %v1013
    %1037 = vmatprep.subr.bf16.mxu0 0
    %1038 = vmatpush1.bf16.msra.mxu0 %v1014
    %1039 = vmatprep.subr.bf16.mxu0 0
    %1040 = vmatpush1.bf16.msra.mxu0 0
    %1041 = vmatprep.subr.bf16.mxu0 0
    %1042 = vmatpush1.bf16.msra.mxu0 0
    %1043 = vmatprep.subr.bf16.mxu0 0
    %1044 = vmatpush1.bf16.msra.mxu0 0
    %1045 = vmatprep.subr.bf16.mxu0 0
    %1046 = vmatpush1.bf16.msra.mxu0 0
    %1047 = vmatprep.subr.bf16.mxu0 0
    %1048 = vmatpush1.bf16.msra.mxu0 0
    %1049 = vmatprep.subr.bf16.mxu0 0
    %1050 = vmatpush1.bf16.msra.mxu0 0
    %1051 = vmatprep.subr.bf16.mxu0 0
    %1052 = vmatpush1.bf16.msra.mxu0 0
    %1053 = vmatprep.subr.bf16.mxu0 0
    %1054 = vmatpush1.bf16.msra.mxu0 0
    %1055 = vmatprep.mubr.bf16.mxu0 0
    %1056 = vmatmul.mubr.bf16.gmra.mrb[0].mxu0 %v944
    %v1057 = vpop.f32.mrb[0].mxu0
    %v1058 = vadd.f32 %v973, %v1057
    %v1059 = vpop.f32.mrb[0].mxu0
    %v1060 = vpop.f32.mrb[0].mxu0
    %v1061 = vadd.f32 %v973, %v1060
    %v1062 = vpop.f32.mrb[0].mxu0
    %1063 = vmatprep.mubr.bf16.mxu0 0
    %1064 = vmatmul.mubr.bf16.gmra.mrb[0].mxu0 %v945
    %v1065 = vpop.f32.mrb[0].mxu0
    %v1066 = vadd.f32 %v973, %v1065
    %v1067 = vpop.f32.mrb[0].mxu0
    %v1068 = vpop.f32.mrb[0].mxu0
    %v1069 = vadd.f32 %v973, %v1068
    %v1070 = vpop.f32.mrb[0].mxu0
    %1071 = vmatprep.mubr.bf16.mxu0 0
    %1072 = vmatmul.mubr.bf16.gmra.mrb[0].mxu0 %v946
    %v1073 = vpop.f32.mrb[0].mxu0
    %v1074 = vadd.f32 %v973, %v1073
    %v1075 = vpop.f32.mrb[0].mxu0
    %v1076 = vpop.f32.mrb[0].mxu0
    %v1077 = vadd.f32 %v973, %v1076
    %v1078 = vpop.f32.mrb[0].mxu0
    %1079 = vmatprep.mubr.bf16.mxu0 0
    %1080 = vmatmul.mubr.bf16.gmra.mrb[0].mxu0 %v947
    %v1081 = vpop.f32.mrb[0].mxu0
    %v1082 = vadd.f32 %v973, %v1081
    %v1083 = vpop.f32.mrb[0].mxu0
    %v1084 = vpop.f32.mrb[0].mxu0
    %v1085 = vadd.f32 %v973, %v1084
    %v1086 = vpop.f32.mrb[0].mxu0
    %1087 = vmatprep.mubr.bf16.mxu0 0
    %1088 = vmatmul.mubr.bf16.gmra.mrb[0].mxu0 %v948
    %v1089 = vpop.f32.mrb[0].mxu0
    %v1090 = vadd.f32 %v973, %v1089
    %v1091 = vpop.f32.mrb[0].mxu0
    %v1092 = vpop.f32.mrb[0].mxu0
    %v1093 = vadd.f32 %v973, %v1092
    %v1094 = vpop.f32.mrb[0].mxu0
    %1095 = vmatprep.mubr.bf16.mxu0 0
    %1096 = vmatmul.mubr.bf16.gmra.mrb[0].mxu0 %v949
    %v1097 = vpop.f32.mrb[0].mxu0
    %v1098 = vadd.f32 %v973, %v1097
    %v1099 = vpop.f32.mrb[0].mxu0
    %v1100 = vpop.f32.mrb[0].mxu0
    %v1101 = vadd.f32 %v973, %v1100
    %v1102 = vpop.f32.mrb[0].mxu0
    %1103 = vmatprep.mubr.bf16.mxu0 0
    %1104 = vmatmul.mubr.bf16.gmra.mrb[0].mxu0 %v950
    %v1105 = vpop.f32.mrb[0].mxu0
    %v1106 = vadd.f32 %v973, %v1105
    %v1107 = vpop.f32.mrb[0].mxu0
    %v1108 = vpop.f32.mrb[0].mxu0
    %v1109 = vadd.f32 %v973, %v1108
    %v1110 = vpop.f32.mrb[0].mxu0
    %1111 = vmatprep.mubr.bf16.mxu0 0
    %1112 = vmatmul.mubr.bf16.gmra.mrb[0].mxu0 %v951
    %v1113 = vpop.f32.mrb[0].mxu0
    %v1114 = vadd.f32 %v973, %v1113
    %v1115 = vpop.f32.mrb[0].mxu0
    %v1116 = vpop.f32.mrb[0].mxu0
    %v1117 = vadd.f32 %v973, %v1116
    %v1118 = vpop.f32.mrb[0].mxu0
    %1119 = vdwg.mxu0
    %v1120 = vmax.f32 %v1058, 0.0
    %v1121 = vmax.f32 %v1061, 0.0
    %v1122 = vmax.f32 %v1066, 0.0
    %v1123 = vmax.f32 %v1069, 0.0
    %v1124 = vmax.f32 %v1074, 0.0
    %v1125 = vmax.f32 %v1077, 0.0
    %v1126 = vmax.f32 %v1082, 0.0
    %v1127 = vmax.f32 %v1085, 0.0
    %v1128 = vmax.f32 %v1090, 0.0
    %v1129 = vmax.f32 %v1093, 0.0
    %v1130 = vmax.f32 %v1098, 0.0
    %v1131 = vmax.f32 %v1101, 0.0
    %v1132 = vmax.f32 %v1106, 0.0
    %v1133 = vmax.f32 %v1109, 0.0
    %v1134 = vmax.f32 %v1114, 0.0
    %v1135 = vmax.f32 %v1117, 0.0
    %v1136 = vpack.c.bf16 %v1121, %v1120
    %v1137 = vpack.c.bf16 %v1123, %v1122
    %v1138 = vpack.c.bf16 %v1125, %v1124
    %v1139 = vpack.c.bf16 %v1127, %v1126
    %v1140 = vpack.c.bf16 %v1129, %v1128
    %v1141 = vpack.c.bf16 %v1131, %v1130
    %v1142 = vpack.c.bf16 %v1133, %v1132
    %v1143 = vpack.c.bf16 %v1135, %v1134
    %v1144 = vld [vmem:[%s12] sm:$0xf]
    %v1145 = vld [vmem:[%s12 + $0x4] sm:$0xf]
    %v1146 = vld [vmem:[%s12 + $0x8] sm:$0xf]
    %v1147 = vld [vmem:[%s12 + $0xc] sm:$0xf]
    %v1148 = vld [vmem:[%s12 + $0x10] sm:$0xf]
    %v1149 = vld [vmem:[%s12 + $0x14] sm:$0xf]
    %v1150 = vld [vmem:[%s12 + $0x18] sm:$0xf]
    %v1151 = vld [vmem:[%s12 + $0x1c] sm:$0xf]
    %v1152 = vld [vmem:[%s12 + $0x20] sm:$0xf]
    %v1153 = vld [vmem:[%s12 + $0x24] sm:$0xf]
    %v1154 = vld [vmem:[%s12 + $0x28] sm:$0xf]
    %v1155 = vld [vmem:[%s12 + $0x2c] sm:$0xf]
    %v1156 = vld [vmem:[%s12 + $0x30] sm:$0xf]
    %v1157 = vld [vmem:[%s12 + $0x34] sm:$0xf]
    %v1158 = vld [vmem:[%s12 + $0x38] sm:$0xf]
    %v1159 = vld [vmem:[%s12 + $0x3c] sm:$0xf]
    %v1160 = vld [vmem:[%s12 + $0x40] sm:$0xf]
    %v1161 = vld [vmem:[%s12 + $0x44] sm:$0xf]
    %v1162 = vld [vmem:[%s12 + $0x48] sm:$0xf]
    %v1163 = vld [vmem:[%s12 + $0x4c] sm:$0xf]
    %v1164 = vld [vmem:[%s12 + $0x50] sm:$0xf]
    %v1165 = vld [vmem:[%s12 + $0x54] sm:$0xf]
    %v1166 = vld [vmem:[%s12 + $0x58] sm:$0xf]
    %v1167 = vld [vmem:[%s12 + $0x5c] sm:$0xf]
    %v1168 = vld [vmem:[%s12 + $0x60] sm:$0xf]
    %v1169 = vld [vmem:[%s12 + $0x64] sm:$0xf]
    %v1170 = vld [vmem:[%s12 + $0x68] sm:$0xf]
    %v1171 = vld [vmem:[%s12 + $0x6c] sm:$0xf]
    %v1172 = vld [vmem:[%s13] sm:$0x1]
    %v1174 = vlaneseq
    %v1175 = vshrl.u32 %v1174, 7
    %v1176 = vsub.s32 0, %v1175
    %v1177 = vrot.slane %v1172, %v1176
    %v1207 = vunpack.c.l.b16 %v1144
    %v1208 = vunpack.c.l.b16 %v1145
    %v1209 = vunpack.c.l.b16 %v1146
    %v1210 = vunpack.c.l.b16 %v1147
    %v1211 = vunpack.c.l.b16 %v1148
    %v1212 = vunpack.c.l.b16 %v1149
    %v1213 = vunpack.c.l.b16 %v1150
    %v1214 = vunpack.c.l.b16 %v1151
    %v1215 = vunpack.c.l.b16 %v1152
    %v1216 = vunpack.c.l.b16 %v1153
    %v1217 = vunpack.c.l.b16 %v1154
    %v1218 = vunpack.c.l.b16 %v1155
    %v1219 = vunpack.c.l.b16 %v1156
    %v1220 = vunpack.c.l.b16 %v1157
    %v1221 = vunpack.c.l.b16 %v1158
    %v1222 = vunpack.c.l.b16 %v1159
    %v1223 = vunpack.c.l.b16 %v1160
    %v1224 = vunpack.c.l.b16 %v1161
    %v1225 = vunpack.c.l.b16 %v1162
    %v1226 = vunpack.c.l.b16 %v1163
    %v1227 = vunpack.c.l.b16 %v1164
    %v1228 = vunpack.c.l.b16 %v1165
    %v1229 = vunpack.c.l.b16 %v1166
    %v1230 = vunpack.c.l.b16 %v1167
    %v1231 = vunpack.c.l.b16 %v1168
    %v1232 = vunpack.c.l.b16 %v1169
    %v1233 = vunpack.c.l.b16 %v1170
    %v1234 = vunpack.c.l.b16 %v1171
    %v1235 = vpack.c.b16 %v1208, %v1207
    %v1236 = vpack.c.b16 %v1210, %v1209
    %v1237 = vpack.c.b16 %v1212, %v1211
    %v1238 = vpack.c.b16 %v1214, %v1213
    %v1239 = vpack.c.b16 %v1216, %v1215
    %v1240 = vpack.c.b16 %v1218, %v1217
    %v1241 = vpack.c.b16 %v1220, %v1219
    %v1242 = vpack.c.b16 %v1222, %v1221
    %v1243 = vpack.c.b16 %v1224, %v1223
    %v1244 = vpack.c.b16 %v1226, %v1225
    %v1245 = vpack.c.b16 %v1228, %v1227
    %v1246 = vpack.c.b16 %v1230, %v1229
    %v1247 = vpack.c.b16 %v1232, %v1231
    %v1248 = vpack.c.b16 %v1234, %v1233
    %1263 = vmatprep.subr.bf16.mxu0 0
    %1264 = vmatpush1.bf16.msra.mxu0 %v1235
    %1265 = vmatprep.subr.bf16.mxu0 0
    %1266 = vmatpush1.bf16.msra.mxu0 %v1236
    %1267 = vmatprep.subr.bf16.mxu0 0
    %1268 = vmatpush1.bf16.msra.mxu0 %v1237
    %1269 = vmatprep.subr.bf16.mxu0 0
    %1270 = vmatpush1.bf16.msra.mxu0 %v1238
    %1271 = vmatprep.subr.bf16.mxu0 0
    %1272 = vmatpush1.bf16.msra.mxu0 %v1239
    %1273 = vmatprep.subr.bf16.mxu0 0
    %1274 = vmatpush1.bf16.msra.mxu0 %v1240
    %1275 = vmatprep.subr.bf16.mxu0 0
    %1276 = vmatpush1.bf16.msra.mxu0 %v1241
    %1277 = vmatprep.subr.bf16.mxu0 0
    %1278 = vmatpush1.bf16.msra.mxu0 %v1242
    %1279 = vmatprep.subr.bf16.mxu0 0
    %1280 = vmatpush1.bf16.msra.mxu0 %v1243
    %1281 = vmatprep.subr.bf16.mxu0 0
    %1282 = vmatpush1.bf16.msra.mxu0 %v1244
    %1283 = vmatprep.subr.bf16.mxu0 0
    %1284 = vmatpush1.bf16.msra.mxu0 %v1245
    %1285 = vmatprep.subr.bf16.mxu0 0
    %1286 = vmatpush1.bf16.msra.mxu0 %v1246
    %1287 = vmatprep.subr.bf16.mxu0 0
    %1288 = vmatpush1.bf16.msra.mxu0 %v1247
    %1289 = vmatprep.subr.bf16.mxu0 0
    %1290 = vmatpush1.bf16.msra.mxu0 %v1248
    %1291 = vmatprep.subr.bf16.mxu0 0
    %1292 = vmatpush1.bf16.msra.mxu0 0
    %1293 = vmatprep.subr.bf16.mxu0 0
    %1294 = vmatpush1.bf16.msra.mxu0 0
    %1295 = vmatprep.mubr.bf16.mxu0 %v232
    %1296 = vmatmul.mubr.bf16.gmra.mrb[0].mxu0 %v1136
    %v1297 = vpop.f32.mrb[0].mxu0
    %v1298 = vadd.f32 %v1177, %v1297
    %v1299 = vpop.f32.mrb[0].mxu0
    %v1300 = vpop.f32.mrb[0].mxu0
    %v1301 = vadd.f32 %v1177, %v1300
    %v1302 = vpop.f32.mrb[0].mxu0
    %1303 = vmatprep.mubr.bf16.mxu0 %v235
    %1304 = vmatmul.mubr.bf16.gmra.mrb[0].mxu0 %v1137
    %v1305 = vpop.f32.mrb[0].mxu0
    %v1306 = vadd.f32 %v1177, %v1305
    %v1307 = vpop.f32.mrb[0].mxu0
    %v1308 = vpop.f32.mrb[0].mxu0
    %v1309 = vadd.f32 %v1177, %v1308
    %v1310 = vpop.f32.mrb[0].mxu0
    %1311 = vmatprep.mubr.bf16.mxu0 %v238
    %1312 = vmatmul.mubr.bf16.gmra.mrb[0].mxu0 %v1138
    %v1313 = vpop.f32.mrb[0].mxu0
    %v1314 = vadd.f32 %v1177, %v1313
    %v1315 = vpop.f32.mrb[0].mxu0
    %v1316 = vpop.f32.mrb[0].mxu0
    %v1317 = vadd.f32 %v1177, %v1316
    %v1318 = vpop.f32.mrb[0].mxu0
    %1319 = vmatprep.mubr.bf16.mxu0 %v241
    %1320 = vmatmul.mubr.bf16.gmra.mrb[0].mxu0 %v1139
    %v1321 = vpop.f32.mrb[0].mxu0
    %v1322 = vadd.f32 %v1177, %v1321
    %v1323 = vpop.f32.mrb[0].mxu0
    %v1324 = vpop.f32.mrb[0].mxu0
    %v1325 = vadd.f32 %v1177, %v1324
    %v1326 = vpop.f32.mrb[0].mxu0
    %1327 = vmatprep.mubr.bf16.mxu0 %v244
    %1328 = vmatmul.mubr.bf16.gmra.mrb[0].mxu0 %v1140
    %v1329 = vpop.f32.mrb[0].mxu0
    %v1330 = vadd.f32 %v1177, %v1329
    %v1331 = vpop.f32.mrb[0].mxu0
    %v1332 = vpop.f32.mrb[0].mxu0
    %v1333 = vadd.f32 %v1177, %v1332
    %v1334 = vpop.f32.mrb[0].mxu0
    %1335 = vmatprep.mubr.bf16.mxu0 %v247
    %1336 = vmatmul.mubr.bf16.gmra.mrb[0].mxu0 %v1141
    %v1337 = vpop.f32.mrb[0].mxu0
    %v1338 = vadd.f32 %v1177, %v1337
    %v1339 = vpop.f32.mrb[0].mxu0
    %v1340 = vpop.f32.mrb[0].mxu0
    %v1341 = vadd.f32 %v1177, %v1340
    %v1342 = vpop.f32.mrb[0].mxu0
    %1343 = vmatprep.mubr.bf16.mxu0 %v250
    %1344 = vmatmul.mubr.bf16.gmra.mrb[0].mxu0 %v1142
    %v1345 = vpop.f32.mrb[0].mxu0
    %v1346 = vadd.f32 %v1177, %v1345
    %v1347 = vpop.f32.mrb[0].mxu0
    %v1348 = vpop.f32.mrb[0].mxu0
    %v1349 = vadd.f32 %v1177, %v1348
    %v1350 = vpop.f32.mrb[0].mxu0
    %1351 = vmatprep.mubr.bf16.mxu0 %v253
    %1352 = vmatmul.mubr.bf16.gmra.mrb[0].mxu0 %v1143
    %v1353 = vpop.f32.mrb[0].mxu0
    %v1354 = vadd.f32 %v1177, %v1353
    %v1355 = vpop.f32.mrb[0].mxu0
    %v1356 = vpop.f32.mrb[0].mxu0
    %v1357 = vadd.f32 %v1177, %v1356
    %v1358 = vpop.f32.mrb[0].mxu0
    %1359 = vdwg.mxu0
    %v1360 = vmax.f32 %v1298, 0.0
    %v1361 = vmax.f32 %v1301, 0.0
    %v1362 = vmax.f32 %v1306, 0.0
    %v1363 = vmax.f32 %v1309, 0.0
    %v1364 = vmax.f32 %v1314, 0.0
    %v1365 = vmax.f32 %v1317, 0.0
    %v1366 = vmax.f32 %v1322, 0.0
    %v1367 = vmax.f32 %v1325, 0.0
    %v1368 = vmax.f32 %v1330, 0.0
    %v1369 = vmax.f32 %v1333, 0.0
    %v1370 = vmax.f32 %v1338, 0.0
    %v1371 = vmax.f32 %v1341, 0.0
    %v1372 = vmax.f32 %v1346, 0.0
    %v1373 = vmax.f32 %v1349, 0.0
    %v1374 = vmax.f32 %v1354, 0.0
    %v1375 = vmax.f32 %v1357, 0.0
    %v1376 = vpack.c.bf16 %v1361, %v1360
    %v1377 = vpack.c.bf16 %v1363, %v1362
    %v1378 = vpack.c.bf16 %v1365, %v1364
    %v1379 = vpack.c.bf16 %v1367, %v1366
    %v1380 = vpack.c.bf16 %v1369, %v1368
    %v1381 = vpack.c.bf16 %v1371, %v1370
    %v1382 = vpack.c.bf16 %v1373, %v1372
    %v1383 = vpack.c.bf16 %v1375, %v1374
    %v1384 = vld [vmem:[#allocation4] sm:$0xf]
    %v1385 = vld [vmem:[#allocation4 + $0x4] sm:$0xf]
    %v1386 = vld [vmem:[#allocation4 + $0x8] sm:$0xf]
    %v1387 = vld [vmem:[#allocation4 + $0xc] sm:$0xf]
    %v1388 = vld [vmem:[#allocation4 + $0x10] sm:$0xf]
    %v1389 = vld [vmem:[#allocation4 + $0x14] sm:$0xf]
    %v1390 = vld [vmem:[#allocation4 + $0x18] sm:$0xf]
    %v1391 = vld [vmem:[#allocation4 + $0x1c] sm:$0xf]
    %v1392 = vld [vmem:[#allocation4 + $0x20] sm:$0xf]
    %v1393 = vld [vmem:[#allocation4 + $0x24] sm:$0xf]
    %v1394 = vld [vmem:[#allocation4 + $0x28] sm:$0xf]
    %v1395 = vld [vmem:[#allocation4 + $0x2c] sm:$0xf]
    %v1396 = vld [vmem:[#allocation4 + $0x30] sm:$0xf]
    %v1397 = vld [vmem:[#allocation4 + $0x34] sm:$0xf]
    %v1398 = vld [vmem:[#allocation4 + $0x38] sm:$0xf]
    %v1399 = vld [vmem:[#allocation4 + $0x3c] sm:$0xf]
    %v1400 = vld [vmem:[%s15] sm:$0x1]
    %v1402 = vlaneseq
    %v1403 = vshrl.u32 %v1402, 7
    %v1404 = vsub.s32 0, %v1403
    %v1405 = vrot.slane %v1400, %v1404
    %v1423 = vunpack.c.l.b16 %v1384
    %v1424 = vunpack.c.l.b16 %v1385
    %v1425 = vunpack.c.l.b16 %v1386
    %v1426 = vunpack.c.l.b16 %v1387
    %v1427 = vunpack.c.l.b16 %v1388
    %v1428 = vunpack.c.l.b16 %v1389
    %v1429 = vunpack.c.l.b16 %v1390
    %v1430 = vunpack.c.l.b16 %v1391
    %v1431 = vunpack.c.l.b16 %v1392
    %v1432 = vunpack.c.l.b16 %v1393
    %v1433 = vunpack.c.l.b16 %v1394
    %v1434 = vunpack.c.l.b16 %v1395
    %v1435 = vunpack.c.l.b16 %v1396
    %v1436 = vunpack.c.l.b16 %v1397
    %v1437 = vunpack.c.l.b16 %v1398
    %v1438 = vunpack.c.l.b16 %v1399
    %v1439 = vpack.c.b16 %v1424, %v1423
    %v1440 = vpack.c.b16 %v1426, %v1425
    %v1441 = vpack.c.b16 %v1428, %v1427
    %v1442 = vpack.c.b16 %v1430, %v1429
    %v1443 = vpack.c.b16 %v1432, %v1431
    %v1444 = vpack.c.b16 %v1434, %v1433
    %v1445 = vpack.c.b16 %v1436, %v1435
    %v1446 = vpack.c.b16 %v1438, %v1437
    %1455 = vmatprep.subr.bf16.mxu0 0
    %1456 = vmatpush1.bf16.msra.mxu0 %v1439
    %1457 = vmatprep.subr.bf16.mxu0 0
    %1458 = vmatpush1.bf16.msra.mxu0 %v1440
    %1459 = vmatprep.subr.bf16.mxu0 0
    %1460 = vmatpush1.bf16.msra.mxu0 %v1441
    %1461 = vmatprep.subr.bf16.mxu0 0
    %1462 = vmatpush1.bf16.msra.mxu0 %v1442
    %1463 = vmatprep.subr.bf16.mxu0 0
    %1464 = vmatpush1.bf16.msra.mxu0 %v1443
    %1465 = vmatprep.subr.bf16.mxu0 0
    %1466 = vmatpush1.bf16.msra.mxu0 %v1444
    %1467 = vmatprep.subr.bf16.mxu0 0
    %1468 = vmatpush1.bf16.msra.mxu0 %v1445
    %1469 = vmatprep.subr.bf16.mxu0 0
    %1470 = vmatpush1.bf16.msra.mxu0 %v1446
    %1471 = vmatprep.subr.bf16.mxu0 0
    %1472 = vmatpush1.bf16.msra.mxu0 0
    %1473 = vmatprep.subr.bf16.mxu0 0
    %1474 = vmatpush1.bf16.msra.mxu0 0
    %1475 = vmatprep.subr.bf16.mxu0 0
    %1476 = vmatpush1.bf16.msra.mxu0 0
    %1477 = vmatprep.subr.bf16.mxu0 0
    %1478 = vmatpush1.bf16.msra.mxu0 0
    %1479 = vmatprep.subr.bf16.mxu0 0
    %1480 = vmatpush1.bf16.msra.mxu0 0
    %1481 = vmatprep.subr.bf16.mxu0 0
    %1482 = vmatpush1.bf16.msra.mxu0 0
    %1483 = vmatprep.subr.bf16.mxu0 0
    %1484 = vmatpush1.bf16.msra.mxu0 0
    %1485 = vmatprep.subr.bf16.mxu0 0
    %1486 = vmatpush1.bf16.msra.mxu0 0
    %1487 = vmatprep.mubr.bf16.mxu0 0
    %1488 = vmatmul.mubr.bf16.gmra.mrb[0].mxu0 %v1376
    %v1489 = vpop.f32.mrb[0].mxu0
    %v1490 = vadd.f32 %v1405, %v1489
    %v1491 = vpop.f32.mrb[0].mxu0
    %v1492 = vpop.f32.mrb[0].mxu0
    %v1493 = vadd.f32 %v1405, %v1492
    %v1494 = vpop.f32.mrb[0].mxu0
    %1495 = vmatprep.mubr.bf16.mxu0 0
    %1496 = vmatmul.mubr.bf16.gmra.mrb[0].mxu0 %v1377
    %v1497 = vpop.f32.mrb[0].mxu0
    %v1498 = vadd.f32 %v1405, %v1497
    %v1499 = vpop.f32.mrb[0].mxu0
    %v1500 = vpop.f32.mrb[0].mxu0
    %v1501 = vadd.f32 %v1405, %v1500
    %v1502 = vpop.f32.mrb[0].mxu0
    %1503 = vmatprep.mubr.bf16.mxu0 0
    %1504 = vmatmul.mubr.bf16.gmra.mrb[0].mxu0 %v1378
    %v1505 = vpop.f32.mrb[0].mxu0
    %v1506 = vadd.f32 %v1405, %v1505
    %v1507 = vpop.f32.mrb[0].mxu0
    %v1508 = vpop.f32.mrb[0].mxu0
    %v1509 = vadd.f32 %v1405, %v1508
    %v1510 = vpop.f32.mrb[0].mxu0
    %1511 = vmatprep.mubr.bf16.mxu0 0
    %1512 = vmatmul.mubr.bf16.gmra.mrb[0].mxu0 %v1379
    %v1513 = vpop.f32.mrb[0].mxu0
    %v1514 = vadd.f32 %v1405, %v1513
    %v1515 = vpop.f32.mrb[0].mxu0
    %v1516 = vpop.f32.mrb[0].mxu0
    %v1517 = vadd.f32 %v1405, %v1516
    %v1518 = vpop.f32.mrb[0].mxu0
    %1519 = vmatprep.mubr.bf16.mxu0 0
    %1520 = vmatmul.mubr.bf16.gmra.mrb[0].mxu0 %v1380
    %v1521 = vpop.f32.mrb[0].mxu0
    %v1522 = vadd.f32 %v1405, %v1521
    %v1523 = vpop.f32.mrb[0].mxu0
    %v1524 = vpop.f32.mrb[0].mxu0
    %v1525 = vadd.f32 %v1405, %v1524
    %v1526 = vpop.f32.mrb[0].mxu0
    %1527 = vmatprep.mubr.bf16.mxu0 0
    %1528 = vmatmul.mubr.bf16.gmra.mrb[0].mxu0 %v1381
    %v1529 = vpop.f32.mrb[0].mxu0
    %v1530 = vadd.f32 %v1405, %v1529
    %v1531 = vpop.f32.mrb[0].mxu0
    %v1532 = vpop.f32.mrb[0].mxu0
    %v1533 = vadd.f32 %v1405, %v1532
    %v1534 = vpop.f32.mrb[0].mxu0
    %1535 = vmatprep.mubr.bf16.mxu0 0
    %1536 = vmatmul.mubr.bf16.gmra.mrb[0].mxu0 %v1382
    %v1537 = vpop.f32.mrb[0].mxu0
    %v1538 = vadd.f32 %v1405, %v1537
    %v1539 = vpop.f32.mrb[0].mxu0
    %v1540 = vpop.f32.mrb[0].mxu0
    %v1541 = vadd.f32 %v1405, %v1540
    %v1542 = vpop.f32.mrb[0].mxu0
    %1543 = vmatprep.mubr.bf16.mxu0 0
    %1544 = vmatmul.mubr.bf16.gmra.mrb[0].mxu0 %v1383
    %v1545 = vpop.f32.mrb[0].mxu0
    %v1546 = vadd.f32 %v1405, %v1545
    %v1547 = vpop.f32.mrb[0].mxu0
    %v1548 = vpop.f32.mrb[0].mxu0
    %v1549 = vadd.f32 %v1405, %v1548
    %v1550 = vpop.f32.mrb[0].mxu0
    %1551 = vdwg.mxu0
    %v1552 = vmax.f32 %v1490, 0.0
    %v1553 = vmax.f32 %v1493, 0.0
    %v1554 = vmax.f32 %v1498, 0.0
    %v1555 = vmax.f32 %v1501, 0.0
    %v1556 = vmax.f32 %v1506, 0.0
    %v1557 = vmax.f32 %v1509, 0.0
    %v1558 = vmax.f32 %v1514, 0.0
    %v1559 = vmax.f32 %v1517, 0.0
    %v1560 = vmax.f32 %v1522, 0.0
    %v1561 = vmax.f32 %v1525, 0.0
    %v1562 = vmax.f32 %v1530, 0.0
    %v1563 = vmax.f32 %v1533, 0.0
    %v1564 = vmax.f32 %v1538, 0.0
    %v1565 = vmax.f32 %v1541, 0.0
    %v1566 = vmax.f32 %v1546, 0.0
    %v1567 = vmax.f32 %v1549, 0.0
    %v1568 = vpack.c.bf16 %v1553, %v1552
    %v1569 = vpack.c.bf16 %v1555, %v1554
    %v1570 = vpack.c.bf16 %v1557, %v1556
    %v1571 = vpack.c.bf16 %v1559, %v1558
    %v1572 = vpack.c.bf16 %v1561, %v1560
    %v1573 = vpack.c.bf16 %v1563, %v1562
    %v1574 = vpack.c.bf16 %v1565, %v1564
    %v1575 = vpack.c.bf16 %v1567, %v1566
    %v1576 = vld [vmem:[#allocation6] sm:$0xf]
    %v1577 = vld [vmem:[#allocation6 + $0x4] sm:$0xf]
    %v1578 = vld [vmem:[#allocation6 + $0x8] sm:$0xf]
    %v1579 = vld [vmem:[#allocation6 + $0xc] sm:$0xf]
    %v1580 = vld [vmem:[#allocation6 + $0x10] sm:$0xf]
    %v1581 = vld [vmem:[#allocation6 + $0x14] sm:$0xf]
    %v1582 = vld [vmem:[#allocation6 + $0x18] sm:$0xf]
    %v1583 = vld [vmem:[#allocation6 + $0x1c] sm:$0xf]
    %v1584 = vld [vmem:[#allocation6 + $0x20] sm:$0xf]
    %v1585 = vld [vmem:[#allocation6 + $0x24] sm:$0xf]
    %v1586 = vld [vmem:[#allocation6 + $0x28] sm:$0xf]
    %v1587 = vld [vmem:[#allocation6 + $0x2c] sm:$0xf]
    %v1588 = vld [vmem:[#allocation6 + $0x30] sm:$0xf]
    %v1589 = vld [vmem:[#allocation6 + $0x34] sm:$0xf]
    %v1590 = vld [vmem:[#allocation6 + $0x38] sm:$0xf]
    %v1591 = vld [vmem:[#allocation6 + $0x3c] sm:$0xf]
    %v1592 = vld [vmem:[%s17] sm:$0x1]
    %v1594 = vlaneseq
    %v1595 = vshrl.u32 %v1594, 7
    %v1596 = vsub.s32 0, %v1595
    %v1597 = vrot.slane %v1592, %v1596
    %v1615 = vunpack.c.l.b16 %v1576
    %v1616 = vunpack.c.l.b16 %v1577
    %v1617 = vunpack.c.l.b16 %v1578
    %v1618 = vunpack.c.l.b16 %v1579
    %v1619 = vunpack.c.l.b16 %v1580
    %v1620 = vunpack.c.l.b16 %v1581
    %v1621 = vunpack.c.l.b16 %v1582
    %v1622 = vunpack.c.l.b16 %v1583
    %v1623 = vunpack.c.l.b16 %v1584
    %v1624 = vunpack.c.l.b16 %v1585
    %v1625 = vunpack.c.l.b16 %v1586
    %v1626 = vunpack.c.l.b16 %v1587
    %v1627 = vunpack.c.l.b16 %v1588
    %v1628 = vunpack.c.l.b16 %v1589
    %v1629 = vunpack.c.l.b16 %v1590
    %v1630 = vunpack.c.l.b16 %v1591
    %v1631 = vpack.c.b16 %v1616, %v1615
    %v1632 = vpack.c.b16 %v1618, %v1617
    %v1633 = vpack.c.b16 %v1620, %v1619
    %v1634 = vpack.c.b16 %v1622, %v1621
    %v1635 = vpack.c.b16 %v1624, %v1623
    %v1636 = vpack.c.b16 %v1626, %v1625
    %v1637 = vpack.c.b16 %v1628, %v1627
    %v1638 = vpack.c.b16 %v1630, %v1629
    %1647 = vmatprep.subr.bf16.mxu0 0
    %1648 = vmatpush1.bf16.msra.mxu0 %v1631
    %1649 = vmatprep.subr.bf16.mxu0 0
    %1650 = vmatpush1.bf16.msra.mxu0 %v1632
    %1651 = vmatprep.subr.bf16.mxu0 0
    %1652 = vmatpush1.bf16.msra.mxu0 %v1633
    %1653 = vmatprep.subr.bf16.mxu0 0
    %1654 = vmatpush1.bf16.msra.mxu0 %v1634
    %1655 = vmatprep.subr.bf16.mxu0 0
    %1656 = vmatpush1.bf16.msra.mxu0 %v1635
    %1657 = vmatprep.subr.bf16.mxu0 0
    %1658 = vmatpush1.bf16.msra.mxu0 %v1636
    %1659 = vmatprep.subr.bf16.mxu0 0
    %1660 = vmatpush1.bf16.msra.mxu0 %v1637
    %1661 = vmatprep.subr.bf16.mxu0 0
    %1662 = vmatpush1.bf16.msra.mxu0 %v1638
    %1663 = vmatprep.subr.bf16.mxu0 0
    %1664 = vmatpush1.bf16.msra.mxu0 0
    %1665 = vmatprep.subr.bf16.mxu0 0
    %1666 = vmatpush1.bf16.msra.mxu0 0
    %1667 = vmatprep.subr.bf16.mxu0 0
    %1668 = vmatpush1.bf16.msra.mxu0 0
    %1669 = vmatprep.subr.bf16.mxu0 0
    %1670 = vmatpush1.bf16.msra.mxu0 0
    %1671 = vmatprep.subr.bf16.mxu0 0
    %1672 = vmatpush1.bf16.msra.mxu0 0
    %1673 = vmatprep.subr.bf16.mxu0 0
    %1674 = vmatpush1.bf16.msra.mxu0 0
    %1675 = vmatprep.subr.bf16.mxu0 0
    %1676 = vmatpush1.bf16.msra.mxu0 0
    %1677 = vmatprep.subr.bf16.mxu0 0
    %1678 = vmatpush1.bf16.msra.mxu0 0
    %1679 = vmatprep.mubr.bf16.mxu0 0
    %1680 = vmatmul.mubr.bf16.gmra.mrb[0].mxu0 %v1568
    %v1681 = vpop.f32.mrb[0].mxu0
    %v1682 = vadd.f32 %v1597, %v1681
    %v1683 = vpop.f32.mrb[0].mxu0
    %v1684 = vpop.f32.mrb[0].mxu0
    %v1685 = vadd.f32 %v1597, %v1684
    %v1686 = vpop.f32.mrb[0].mxu0
    %1687 = vmatprep.mubr.bf16.mxu0 0
    %1688 = vmatmul.mubr.bf16.gmra.mrb[0].mxu0 %v1569
    %v1689 = vpop.f32.mrb[0].mxu0
    %v1690 = vadd.f32 %v1597, %v1689
    %v1691 = vpop.f32.mrb[0].mxu0
    %v1692 = vpop.f32.mrb[0].mxu0
    %v1693 = vadd.f32 %v1597, %v1692
    %v1694 = vpop.f32.mrb[0].mxu0
    %1695 = vmatprep.mubr.bf16.mxu0 0
    %1696 = vmatmul.mubr.bf16.gmra.mrb[0].mxu0 %v1570
    %v1697 = vpop.f32.mrb[0].mxu0
    %v1698 = vadd.f32 %v1597, %v1697
    %v1699 = vpop.f32.mrb[0].mxu0
    %v1700 = vpop.f32.mrb[0].mxu0
    %v1701 = vadd.f32 %v1597, %v1700
    %v1702 = vpop.f32.mrb[0].mxu0
    %1703 = vmatprep.mubr.bf16.mxu0 0
    %1704 = vmatmul.mubr.bf16.gmra.mrb[0].mxu0 %v1571
    %v1705 = vpop.f32.mrb[0].mxu0
    %v1706 = vadd.f32 %v1597, %v1705
    %v1707 = vpop.f32.mrb[0].mxu0
    %v1708 = vpop.f32.mrb[0].mxu0
    %v1709 = vadd.f32 %v1597, %v1708
    %v1710 = vpop.f32.mrb[0].mxu0
    %1711 = vmatprep.mubr.bf16.mxu0 0
    %1712 = vmatmul.mubr.bf16.gmra.mrb[0].mxu0 %v1572
    %v1713 = vpop.f32.mrb[0].mxu0
    %v1714 = vadd.f32 %v1597, %v1713
    %v1715 = vpop.f32.mrb[0].mxu0
    %v1716 = vpop.f32.mrb[0].mxu0
    %v1717 = vadd.f32 %v1597, %v1716
    %v1718 = vpop.f32.mrb[0].mxu0
    %1719 = vmatprep.mubr.bf16.mxu0 0
    %1720 = vmatmul.mubr.bf16.gmra.mrb[0].mxu0 %v1573
    %v1721 = vpop.f32.mrb[0].mxu0
    %v1722 = vadd.f32 %v1597, %v1721
    %v1723 = vpop.f32.mrb[0].mxu0
    %v1724 = vpop.f32.mrb[0].mxu0
    %v1725 = vadd.f32 %v1597, %v1724
    %v1726 = vpop.f32.mrb[0].mxu0
    %1727 = vmatprep.mubr.bf16.mxu0 0
    %1728 = vmatmul.mubr.bf16.gmra.mrb[0].mxu0 %v1574
    %v1729 = vpop.f32.mrb[0].mxu0
    %v1730 = vadd.f32 %v1597, %v1729
    %v1731 = vpop.f32.mrb[0].mxu0
    %v1732 = vpop.f32.mrb[0].mxu0
    %v1733 = vadd.f32 %v1597, %v1732
    %v1734 = vpop.f32.mrb[0].mxu0
    %1735 = vmatprep.mubr.bf16.mxu0 0
    %1736 = vmatmul.mubr.bf16.gmra.mrb[0].mxu0 %v1575
    %v1737 = vpop.f32.mrb[0].mxu0
    %v1738 = vadd.f32 %v1597, %v1737
    %v1739 = vpop.f32.mrb[0].mxu0
    %v1740 = vpop.f32.mrb[0].mxu0
    %v1741 = vadd.f32 %v1597, %v1740
    %v1742 = vpop.f32.mrb[0].mxu0
    %1743 = vdwg.mxu0
    %v1744 = vmax.f32 %v1682, 0.0
    %v1745 = vmax.f32 %v1685, 0.0
    %v1746 = vmax.f32 %v1690, 0.0
    %v1747 = vmax.f32 %v1693, 0.0
    %v1748 = vmax.f32 %v1698, 0.0
    %v1749 = vmax.f32 %v1701, 0.0
    %v1750 = vmax.f32 %v1706, 0.0
    %v1751 = vmax.f32 %v1709, 0.0
    %v1752 = vmax.f32 %v1714, 0.0
    %v1753 = vmax.f32 %v1717, 0.0
    %v1754 = vmax.f32 %v1722, 0.0
    %v1755 = vmax.f32 %v1725, 0.0
    %v1756 = vmax.f32 %v1730, 0.0
    %v1757 = vmax.f32 %v1733, 0.0
    %v1758 = vmax.f32 %v1738, 0.0
    %v1759 = vmax.f32 %v1741, 0.0
    %v1760 = vpack.c.bf16 %v1745, %v1744
    %v1761 = vpack.c.bf16 %v1747, %v1746
    %v1762 = vpack.c.bf16 %v1749, %v1748
    %v1763 = vpack.c.bf16 %v1751, %v1750
    %v1764 = vpack.c.bf16 %v1753, %v1752
    %v1765 = vpack.c.bf16 %v1755, %v1754
    %v1766 = vpack.c.bf16 %v1757, %v1756
    %v1767 = vpack.c.bf16 %v1759, %v1758
    %v1768 = vld [vmem:[%s18] sm:$0xff]
    %v1769 = vld [vmem:[%s18 + $0x8] sm:$0xff]
    %v1770 = vld [vmem:[%s18 + $0x10] sm:$0xff]
    %v1771 = vld [vmem:[%s18 + $0x18] sm:$0xff]
    %v1772 = vld [vmem:[%s18 + $0x20] sm:$0xff]
    %v1773 = vld [vmem:[%s18 + $0x28] sm:$0xff]
    %v1774 = vld [vmem:[%s18 + $0x30] sm:$0xff]
    %v1775 = vld [vmem:[%s18 + $0x38] sm:$0xff]
    %v1776 = vld [vmem:[%s18 + $0x40] sm:$0xff]
    %v1777 = vld [vmem:[%s18 + $0x48] sm:$0xff]
    %v1778 = vld [vmem:[%s18 + $0x50] sm:$0xff]
    %v1779 = vld [vmem:[%s18 + $0x58] sm:$0xff]
    %v1780 = vld [vmem:[%s18 + $0x60] sm:$0xff]
    %v1781 = vld [vmem:[%s18 + $0x68] sm:$0xff]
    %v1782 = vld [vmem:[%s18 + $0x70] sm:$0xff]
    %v1783 = vld [vmem:[%s18 + $0x78] sm:$0xff]
    %v1784 = vld [vmem:[%s19] sm:$0x3]
    %v1786 = vlaneseq
    %v1787 = vshrl.u32 %v1786, 7
    %v1788 = vsub.s32 0, %v1787
    %v1789 = vrot.slane %v1784, %v1788
    %v1790 = vlaneseq
    %v1791 = vshrl.u32 %v1790, 7
    %v1792 = vsub.s32 1, %v1791
    %v1793 = vrot.slane %v1784, %v1792
    %v1812 = vunpack.c.l.b16 %v1768
    %v1813 = vunpack.c.h.b16 %v1768
    %v1814 = vunpack.c.l.b16 %v1769
    %v1815 = vunpack.c.h.b16 %v1769
    %v1816 = vunpack.c.l.b16 %v1770
    %v1817 = vunpack.c.h.b16 %v1770
    %v1818 = vunpack.c.l.b16 %v1771
    %v1819 = vunpack.c.h.b16 %v1771
    %v1820 = vunpack.c.l.b16 %v1772
    %v1821 = vunpack.c.h.b16 %v1772
    %v1822 = vunpack.c.l.b16 %v1773
    %v1823 = vunpack.c.h.b16 %v1773
    %v1824 = vunpack.c.l.b16 %v1774
    %v1825 = vunpack.c.h.b16 %v1774
    %v1826 = vunpack.c.l.b16 %v1775
    %v1827 = vunpack.c.h.b16 %v1775
    %v1828 = vunpack.c.l.b16 %v1776
    %v1829 = vunpack.c.h.b16 %v1776
    %v1830 = vunpack.c.l.b16 %v1777
    %v1831 = vunpack.c.h.b16 %v1777
    %v1832 = vunpack.c.l.b16 %v1778
    %v1833 = vunpack.c.h.b16 %v1778
    %v1834 = vunpack.c.l.b16 %v1779
    %v1835 = vunpack.c.h.b16 %v1779
    %v1836 = vunpack.c.l.b16 %v1780
    %v1837 = vunpack.c.h.b16 %v1780
    %v1838 = vunpack.c.l.b16 %v1781
    %v1839 = vunpack.c.h.b16 %v1781
    %v1840 = vunpack.c.l.b16 %v1782
    %v1841 = vunpack.c.h.b16 %v1782
    %v1842 = vunpack.c.l.b16 %v1783
    %v1843 = vunpack.c.h.b16 %v1783
    %v1844 = vpack.c.b16 %v1814, %v1812
    %v1845 = vpack.c.b16 %v1815, %v1813
    %v1846 = vpack.c.b16 %v1818, %v1816
    %v1847 = vpack.c.b16 %v1819, %v1817
    %v1848 = vpack.c.b16 %v1822, %v1820
    %v1849 = vpack.c.b16 %v1823, %v1821
    %v1850 = vpack.c.b16 %v1826, %v1824
    %v1851 = vpack.c.b16 %v1827, %v1825
    %v1852 = vpack.c.b16 %v1830, %v1828
    %v1853 = vpack.c.b16 %v1831, %v1829
    %v1854 = vpack.c.b16 %v1834, %v1832
    %v1855 = vpack.c.b16 %v1835, %v1833
    %v1856 = vpack.c.b16 %v1838, %v1836
    %v1857 = vpack.c.b16 %v1839, %v1837
    %v1858 = vpack.c.b16 %v1842, %v1840
    %v1859 = vpack.c.b16 %v1843, %v1841
    %1876 = vmatprep.subr.bf16.mxu0 %v1845
    %1877 = vmatpush1.bf16.msra.mxu0 %v1844
    %1878 = vmatprep.subr.bf16.mxu0 %v1847
    %1879 = vmatpush1.bf16.msra.mxu0 %v1846
    %1880 = vmatprep.subr.bf16.mxu0 %v1849
    %1881 = vmatpush1.bf16.msra.mxu0 %v1848
    %1882 = vmatprep.subr.bf16.mxu0 %v1851
    %1883 = vmatpush1.bf16.msra.mxu0 %v1850
    %1884 = vmatprep.subr.bf16.mxu0 %v1853
    %1885 = vmatpush1.bf16.msra.mxu0 %v1852
    %1886 = vmatprep.subr.bf16.mxu0 %v1855
    %1887 = vmatpush1.bf16.msra.mxu0 %v1854
    %1888 = vmatprep.subr.bf16.mxu0 %v1857
    %1889 = vmatpush1.bf16.msra.mxu0 %v1856
    %1890 = vmatprep.subr.bf16.mxu0 %v1859
    %1891 = vmatpush1.bf16.msra.mxu0 %v1858
    %1892 = vmatprep.subr.bf16.mxu0 0
    %1893 = vmatpush1.bf16.msra.mxu0 0
    %1894 = vmatprep.subr.bf16.mxu0 0
    %1895 = vmatpush1.bf16.msra.mxu0 0
    %1896 = vmatprep.subr.bf16.mxu0 0
    %1897 = vmatpush1.bf16.msra.mxu0 0
    %1898 = vmatprep.subr.bf16.mxu0 0
    %1899 = vmatpush1.bf16.msra.mxu0 0
    %1900 = vmatprep.subr.bf16.mxu0 0
    %1901 = vmatpush1.bf16.msra.mxu0 0
    %1902 = vmatprep.subr.bf16.mxu0 0
    %1903 = vmatpush1.bf16.msra.mxu0 0
    %1904 = vmatprep.subr.bf16.mxu0 0
    %1905 = vmatpush1.bf16.msra.mxu0 0
    %1906 = vmatprep.subr.bf16.mxu0 0
    %1907 = vmatpush1.bf16.msra.mxu0 0
    %1908 = vmatprep.mubr.bf16.mxu0 0
    %1909 = vmatmul.mubr.bf16.gmra.mrb[0].mxu0 %v1760
    %v1910 = vpop.f32.mrb[0].mxu0
    %v1911 = vadd.f32 %v1789, %v1910
    %v1912 = vpop.f32.mrb[0].mxu0
    %v1913 = vadd.f32 %v1793, %v1912
    %v1914 = vpop.f32.mrb[0].mxu0
    %v1915 = vadd.f32 %v1789, %v1914
    %v1916 = vpop.f32.mrb[0].mxu0
    %v1917 = vadd.f32 %v1793, %v1916
    %1918 = vmatprep.mubr.bf16.mxu0 0
    %1919 = vmatmul.mubr.bf16.gmra.mrb[0].mxu0 %v1761
    %v1920 = vpop.f32.mrb[0].mxu0
    %v1921 = vadd.f32 %v1789, %v1920
    %v1922 = vpop.f32.mrb[0].mxu0
    %v1923 = vadd.f32 %v1793, %v1922
    %v1924 = vpop.f32.mrb[0].mxu0
    %v1925 = vadd.f32 %v1789, %v1924
    %v1926 = vpop.f32.mrb[0].mxu0
    %v1927 = vadd.f32 %v1793, %v1926
    %1928 = vmatprep.mubr.bf16.mxu0 0
    %1929 = vmatmul.mubr.bf16.gmra.mrb[0].mxu0 %v1762
    %v1930 = vpop.f32.mrb[0].mxu0
    %v1931 = vadd.f32 %v1789, %v1930
    %v1932 = vpop.f32.mrb[0].mxu0
    %v1933 = vadd.f32 %v1793, %v1932
    %v1934 = vpop.f32.mrb[0].mxu0
    %v1935 = vadd.f32 %v1789, %v1934
    %v1936 = vpop.f32.mrb[0].mxu0
    %v1937 = vadd.f32 %v1793, %v1936
    %1938 = vmatprep.mubr.bf16.mxu0 0
    %1939 = vmatmul.mubr.bf16.gmra.mrb[0].mxu0 %v1763
    %v1940 = vpop.f32.mrb[0].mxu0
    %v1941 = vadd.f32 %v1789, %v1940
    %v1942 = vpop.f32.mrb[0].mxu0
    %v1943 = vadd.f32 %v1793, %v1942
    %v1944 = vpop.f32.mrb[0].mxu0
    %v1945 = vadd.f32 %v1789, %v1944
    %v1946 = vpop.f32.mrb[0].mxu0
    %v1947 = vadd.f32 %v1793, %v1946
    %1948 = vmatprep.mubr.bf16.mxu0 0
    %1949 = vmatmul.mubr.bf16.gmra.mrb[0].mxu0 %v1764
    %v1950 = vpop.f32.mrb[0].mxu0
    %v1951 = vadd.f32 %v1789, %v1950
    %v1952 = vpop.f32.mrb[0].mxu0
    %v1953 = vadd.f32 %v1793, %v1952
    %v1954 = vpop.f32.mrb[0].mxu0
    %v1955 = vadd.f32 %v1789, %v1954
    %v1956 = vpop.f32.mrb[0].mxu0
    %v1957 = vadd.f32 %v1793, %v1956
    %1958 = vmatprep.mubr.bf16.mxu0 0
    %1959 = vmatmul.mubr.bf16.gmra.mrb[0].mxu0 %v1765
    %v1960 = vpop.f32.mrb[0].mxu0
    %v1961 = vadd.f32 %v1789, %v1960
    %v1962 = vpop.f32.mrb[0].mxu0
    %v1963 = vadd.f32 %v1793, %v1962
    %v1964 = vpop.f32.mrb[0].mxu0
    %v1965 = vadd.f32 %v1789, %v1964
    %v1966 = vpop.f32.mrb[0].mxu0
    %v1967 = vadd.f32 %v1793, %v1966
    %1968 = vmatprep.mubr.bf16.mxu0 0
    %1969 = vmatmul.mubr.bf16.gmra.mrb[0].mxu0 %v1766
    %v1970 = vpop.f32.mrb[0].mxu0
    %v1971 = vadd.f32 %v1789, %v1970
    %v1972 = vpop.f32.mrb[0].mxu0
    %v1973 = vadd.f32 %v1793, %v1972
    %v1974 = vpop.f32.mrb[0].mxu0
    %v1975 = vadd.f32 %v1789, %v1974
    %v1976 = vpop.f32.mrb[0].mxu0
    %v1977 = vadd.f32 %v1793, %v1976
    %1978 = vmatprep.mubr.bf16.mxu0 0
    %1979 = vmatmul.mubr.bf16.gmra.mrb[0].mxu0 %v1767
    %v1980 = vpop.f32.mrb[0].mxu0
    %v1981 = vadd.f32 %v1789, %v1980
    %v1982 = vpop.f32.mrb[0].mxu0
    %v1983 = vadd.f32 %v1793, %v1982
    %v1984 = vpop.f32.mrb[0].mxu0
    %v1985 = vadd.f32 %v1789, %v1984
    %v1986 = vpop.f32.mrb[0].mxu0
    %v1987 = vadd.f32 %v1793, %v1986
    %1988 = vdwg.mxu0
    %v1989 = vpack.c.bf16 %v1915, %v1911
    %v1990 = vpack.c.bf16 %v1925, %v1921
    %v1991 = vpack.c.bf16 %v1935, %v1931
    %v1992 = vpack.c.bf16 %v1945, %v1941
    %v1993 = vpack.c.bf16 %v1955, %v1951
    %v1994 = vpack.c.bf16 %v1965, %v1961
    %v1995 = vpack.c.bf16 %v1975, %v1971
    %v1996 = vpack.c.bf16 %v1985, %v1981
    %v1997 = vld [vmem:[%s1] sm:$0xf]
    %v2000 = vunpack.c.l.s4 1966171168
    %v2001 = vunpack.c.0.s8 %v2000
    %v2002 = vlaneseq
    %v2003 = vshrl.u32 %v2002, 7
    %v2004 = vsub.s32 %v2001, %v2003
    %v2005 = vrot.slane %v1997, %v2004
    %v2006 = vcombine.high %v2005, %v2005
    %v2008 = vunpack.c.l.s4 1966171168
    %v2009 = vunpack.c.0.s8 %v2008
    %v2010 = vlaneseq
    %v2011 = vshrl.u32 %v2010, 7
    %v2012 = vsub.s32 %v2009, %v2011
    %v2013 = vrot.slane %v2005, %v2012
    %v2015 = vunpack.c.l.s4 1966171168
    %v2016 = vunpack.c.0.s8 %v2015
    %v2017 = vlaneseq
    %v2018 = vshrl.u32 %v2017, 7
    %v2019 = vsub.s32 %v2016, %v2018
    %v2020 = vrot.slane %v2006, %v2019
    %v2021 = vcombine.high %v2013, %v2013
    %v2022 = vcombine.high %v2020, %v2020
    %v2023 = vlaneseq
    %v2024 = vshrl.u32 %v2023, 7
    %v2025 = vsub.s32 0, %v2024
    %v2026 = vrot.slane %v2013, %v2025
    %v2027 = vlaneseq
    %v2028 = vshrl.u32 %v2027, 7
    %v2029 = vsub.s32 0, %v2028
    %v2030 = vrot.slane %v2020, %v2029
    %v2031 = vlaneseq
    %v2032 = vshrl.u32 %v2031, 7
    %v2033 = vsub.s32 0, %v2032
    %v2034 = vrot.slane %v2021, %v2033
    %v2035 = vlaneseq
    %v2036 = vshrl.u32 %v2035, 7
    %v2037 = vsub.s32 0, %v2036
    %v2038 = vrot.slane %v2022, %v2037
    %v2043 = vld [vmem:[%s20] sm:$0xf]
    %v2044 = vld [vmem:[%s20 + $0x4] sm:$0xf]
    %v2045 = vld [vmem:[%s20 + $0x8] sm:$0xf]
    %v2046 = vld [vmem:[%s20 + $0xc] sm:$0xf]
    %v2047 = vld [vmem:[%s20 + $0x10] sm:$0xf]
    %v2048 = vld [vmem:[%s20 + $0x14] sm:$0xf]
    %v2049 = vld [vmem:[%s20 + $0x18] sm:$0xf]
    %v2050 = vld [vmem:[%s20 + $0x1c] sm:$0xf]
    %v2051 = vld [vmem:[%s20 + $0x20] sm:$0xf]
    %v2052 = vld [vmem:[%s20 + $0x24] sm:$0xf]
    %v2053 = vld [vmem:[%s20 + $0x28] sm:$0xf]
    %v2054 = vld [vmem:[%s20 + $0x2c] sm:$0xf]
    %v2055 = vld [vmem:[%s20 + $0x30] sm:$0xf]
    %v2056 = vld [vmem:[%s20 + $0x34] sm:$0xf]
    %v2057 = vld [vmem:[%s20 + $0x38] sm:$0xf]
    %v2058 = vld [vmem:[%s20 + $0x3c] sm:$0xf]
    %v2059 = vld [vmem:[%s21] sm:$0x1]
    %v2061 = vlaneseq
    %v2062 = vshrl.u32 %v2061, 7
    %v2063 = vsub.s32 0, %v2062
    %v2064 = vrot.slane %v2059, %v2063
    %v2082 = vunpack.c.l.b16 %v2043
    %v2083 = vunpack.c.l.b16 %v2044
    %v2084 = vunpack.c.l.b16 %v2045
    %v2085 = vunpack.c.l.b16 %v2046
    %v2086 = vunpack.c.l.b16 %v2047
    %v2087 = vunpack.c.l.b16 %v2048
    %v2088 = vunpack.c.l.b16 %v2049
    %v2089 = vunpack.c.l.b16 %v2050
    %v2090 = vunpack.c.l.b16 %v2051
    %v2091 = vunpack.c.l.b16 %v2052
    %v2092 = vunpack.c.l.b16 %v2053
    %v2093 = vunpack.c.l.b16 %v2054
    %v2094 = vunpack.c.l.b16 %v2055
    %v2095 = vunpack.c.l.b16 %v2056
    %v2096 = vunpack.c.l.b16 %v2057
    %v2097 = vunpack.c.l.b16 %v2058
    %v2098 = vpack.c.b16 %v2083, %v2082
    %v2099 = vpack.c.b16 %v2085, %v2084
    %v2100 = vpack.c.b16 %v2087, %v2086
    %v2101 = vpack.c.b16 %v2089, %v2088
    %v2102 = vpack.c.b16 %v2091, %v2090
    %v2103 = vpack.c.b16 %v2093, %v2092
    %v2104 = vpack.c.b16 %v2095, %v2094
    %v2105 = vpack.c.b16 %v2097, %v2096
    %2114 = vmatprep.subr.bf16.mxu0 0
    %2115 = vmatpush1.bf16.msra.mxu0 %v2098
    %2116 = vmatprep.subr.bf16.mxu0 0
    %2117 = vmatpush1.bf16.msra.mxu0 %v2099
    %2118 = vmatprep.subr.bf16.mxu0 0
    %2119 = vmatpush1.bf16.msra.mxu0 %v2100
    %2120 = vmatprep.subr.bf16.mxu0 0
    %2121 = vmatpush1.bf16.msra.mxu0 %v2101
    %2122 = vmatprep.subr.bf16.mxu0 0
    %2123 = vmatpush1.bf16.msra.mxu0 %v2102
    %2124 = vmatprep.subr.bf16.mxu0 0
    %2125 = vmatpush1.bf16.msra.mxu0 %v2103
    %2126 = vmatprep.subr.bf16.mxu0 0
    %2127 = vmatpush1.bf16.msra.mxu0 %v2104
    %2128 = vmatprep.subr.bf16.mxu0 0
    %2129 = vmatpush1.bf16.msra.mxu0 %v2105
    %2130 = vmatprep.subr.bf16.mxu0 0
    %2131 = vmatpush1.bf16.msra.mxu0 0
    %2132 = vmatprep.subr.bf16.mxu0 0
    %2133 = vmatpush1.bf16.msra.mxu0 0
    %2134 = vmatprep.subr.bf16.mxu0 0
    %2135 = vmatpush1.bf16.msra.mxu0 0
    %2136 = vmatprep.subr.bf16.mxu0 0
    %2137 = vmatpush1.bf16.msra.mxu0 0
    %2138 = vmatprep.subr.bf16.mxu0 0
    %2139 = vmatpush1.bf16.msra.mxu0 0
    %2140 = vmatprep.subr.bf16.mxu0 0
    %2141 = vmatpush1.bf16.msra.mxu0 0
    %2142 = vmatprep.subr.bf16.mxu0 0
    %2143 = vmatpush1.bf16.msra.mxu0 0
    %2144 = vmatprep.subr.bf16.mxu0 0
    %2145 = vmatpush1.bf16.msra.mxu0 0
    %2146 = vmatprep.mubr.bf16.mxu0 0
    %2147 = vmatmul.mubr.bf16.gmra.mrb[0].mxu0 %v1989
    %v2148 = vpop.f32.mrb[0].mxu0
    %v2149 = vadd.f32 %v2064, %v2148
    %v2150 = vpop.f32.mrb[0].mxu0
    %v2151 = vpop.f32.mrb[0].mxu0
    %v2152 = vadd.f32 %v2064, %v2151
    %v2153 = vpop.f32.mrb[0].mxu0
    %2154 = vmatprep.mubr.bf16.mxu0 0
    %2155 = vmatmul.mubr.bf16.gmra.mrb[0].mxu0 %v1990
    %v2156 = vpop.f32.mrb[0].mxu0
    %v2157 = vadd.f32 %v2064, %v2156
    %v2158 = vpop.f32.mrb[0].mxu0
    %v2159 = vpop.f32.mrb[0].mxu0
    %v2160 = vadd.f32 %v2064, %v2159
    %v2161 = vpop.f32.mrb[0].mxu0
    %2162 = vmatprep.mubr.bf16.mxu0 0
    %2163 = vmatmul.mubr.bf16.gmra.mrb[0].mxu0 %v1991
    %v2164 = vpop.f32.mrb[0].mxu0
    %v2165 = vadd.f32 %v2064, %v2164
    %v2166 = vpop.f32.mrb[0].mxu0
    %v2167 = vpop.f32.mrb[0].mxu0
    %v2168 = vadd.f32 %v2064, %v2167
    %v2169 = vpop.f32.mrb[0].mxu0
    %2170 = vmatprep.mubr.bf16.mxu0 0
    %2171 = vmatmul.mubr.bf16.gmra.mrb[0].mxu0 %v1992
    %v2172 = vpop.f32.mrb[0].mxu0
    %v2173 = vadd.f32 %v2064, %v2172
    %v2174 = vpop.f32.mrb[0].mxu0
    %v2175 = vpop.f32.mrb[0].mxu0
    %v2176 = vadd.f32 %v2064, %v2175
    %v2177 = vpop.f32.mrb[0].mxu0
    %2178 = vmatprep.mubr.bf16.mxu0 0
    %2179 = vmatmul.mubr.bf16.gmra.mrb[0].mxu0 %v1993
    %v2180 = vpop.f32.mrb[0].mxu0
    %v2181 = vadd.f32 %v2064, %v2180
    %v2182 = vpop.f32.mrb[0].mxu0
    %v2183 = vpop.f32.mrb[0].mxu0
    %v2184 = vadd.f32 %v2064, %v2183
    %v2185 = vpop.f32.mrb[0].mxu0
    %2186 = vmatprep.mubr.bf16.mxu0 0
    %2187 = vmatmul.mubr.bf16.gmra.mrb[0].mxu0 %v1994
    %v2188 = vpop.f32.mrb[0].mxu0
    %v2189 = vadd.f32 %v2064, %v2188
    %v2190 = vpop.f32.mrb[0].mxu0
    %v2191 = vpop.f32.mrb[0].mxu0
    %v2192 = vadd.f32 %v2064, %v2191
    %v2193 = vpop.f32.mrb[0].mxu0
    %2194 = vmatprep.mubr.bf16.mxu0 0
    %2195 = vmatmul.mubr.bf16.gmra.mrb[0].mxu0 %v1995
    %v2196 = vpop.f32.mrb[0].mxu0
    %v2197 = vadd.f32 %v2064, %v2196
    %v2198 = vpop.f32.mrb[0].mxu0
    %v2199 = vpop.f32.mrb[0].mxu0
    %v2200 = vadd.f32 %v2064, %v2199
    %v2201 = vpop.f32.mrb[0].mxu0
    %2202 = vmatprep.mubr.bf16.mxu0 0
    %2203 = vmatmul.mubr.bf16.gmra.mrb[0].mxu0 %v1996
    %v2204 = vpop.f32.mrb[0].mxu0
    %v2205 = vadd.f32 %v2064, %v2204
    %v2206 = vpop.f32.mrb[0].mxu0
    %v2207 = vpop.f32.mrb[0].mxu0
    %v2208 = vadd.f32 %v2064, %v2207
    %v2209 = vpop.f32.mrb[0].mxu0
    %2210 = vdwg.mxu0
    %v2211 = vadd.f32 %v2149, %v2026
    %v2212 = vadd.f32 %v2152, %v2026
    %v2213 = vadd.f32 %v2157, %v2026
    %v2214 = vadd.f32 %v2160, %v2026
    %v2215 = vadd.f32 %v2165, %v2030
    %v2216 = vadd.f32 %v2168, %v2030
    %v2217 = vadd.f32 %v2173, %v2030
    %v2218 = vadd.f32 %v2176, %v2030
    %v2219 = vadd.f32 %v2181, %v2034
    %v2220 = vadd.f32 %v2184, %v2034
    %v2221 = vadd.f32 %v2189, %v2034
    %v2222 = vadd.f32 %v2192, %v2034
    %v2223 = vadd.f32 %v2197, %v2038
    %v2224 = vadd.f32 %v2200, %v2038
    %v2225 = vadd.f32 %v2205, %v2038
    %v2226 = vadd.f32 %v2208, %v2038
    %v2227 = vmax.f32 %v2211, 0.0
    %v2228 = vmax.f32 %v2212, 0.0
    %v2229 = vmax.f32 %v2213, 0.0
    %v2230 = vmax.f32 %v2214, 0.0
    %v2231 = vmax.f32 %v2215, 0.0
    %v2232 = vmax.f32 %v2216, 0.0
    %v2233 = vmax.f32 %v2217, 0.0
    %v2234 = vmax.f32 %v2218, 0.0
    %v2235 = vmax.f32 %v2219, 0.0
    %v2236 = vmax.f32 %v2220, 0.0
    %v2237 = vmax.f32 %v2221, 0.0
    %v2238 = vmax.f32 %v2222, 0.0
    %v2239 = vmax.f32 %v2223, 0.0
    %v2240 = vmax.f32 %v2224, 0.0
    %v2241 = vmax.f32 %v2225, 0.0
    %v2242 = vmax.f32 %v2226, 0.0
    %v2243 = vpack.c.bf16 %v2228, %v2227
    %v2244 = vpack.c.bf16 %v2230, %v2229
    %v2245 = vpack.c.bf16 %v2232, %v2231
    %v2246 = vpack.c.bf16 %v2234, %v2233
    %v2247 = vpack.c.bf16 %v2236, %v2235
    %v2248 = vpack.c.bf16 %v2238, %v2237
    %v2249 = vpack.c.bf16 %v2240, %v2239
    %v2250 = vpack.c.bf16 %v2242, %v2241
    %v2251 = vld [vmem:[%s22] sm:$0xf]
    %v2252 = vld [vmem:[%s22 + $0x4] sm:$0xf]
    %v2253 = vld [vmem:[%s22 + $0x8] sm:$0xf]
    %v2254 = vld [vmem:[%s22 + $0xc] sm:$0xf]
    %v2255 = vld [vmem:[%s22 + $0x10] sm:$0xf]
    %v2256 = vld [vmem:[%s22 + $0x14] sm:$0xf]
    %v2257 = vld [vmem:[%s22 + $0x18] sm:$0xf]
    %v2258 = vld [vmem:[%s22 + $0x1c] sm:$0xf]
    %v2259 = vld [vmem:[%s23] sm:$0x1]
    %v2261 = vlaneseq
    %v2262 = vshrl.u32 %v2261, 7
    %v2263 = vsub.s32 0, %v2262
    %v2264 = vrot.slane %v2259, %v2263
    %v2274 = vunpack.c.l.b16 %v2251
    %v2275 = vunpack.c.l.b16 %v2252
    %v2276 = vunpack.c.l.b16 %v2253
    %v2277 = vunpack.c.l.b16 %v2254
    %v2278 = vunpack.c.l.b16 %v2255
    %v2279 = vunpack.c.l.b16 %v2256
    %v2280 = vunpack.c.l.b16 %v2257
    %v2281 = vunpack.c.l.b16 %v2258
    %v2282 = vpack.c.b16 %v2275, %v2274
    %v2283 = vpack.c.b16 %v2277, %v2276
    %v2284 = vpack.c.b16 %v2279, %v2278
    %v2285 = vpack.c.b16 %v2281, %v2280
    %vm2290 = vcmask 523264
    %v2292 = vsel %vm2290, %v2243, 0
    %v2295 = vsel %vm2290, %v2244, 0
    %v2298 = vsel %vm2290, %v2245, 0
    %v2301 = vsel %vm2290, %v2246, 0
    %v2304 = vsel %vm2290, %v2247, 0
    %v2307 = vsel %vm2290, %v2248, 0
    %v2310 = vsel %vm2290, %v2249, 0
    %v2313 = vsel %vm2290, %v2250, 0
    %2315 = vmatprep.subr.bf16.mxu0 0
    %2316 = vmatpush1.bf16.msra.mxu0 %v2282
    %2317 = vmatprep.subr.bf16.mxu0 0
    %2318 = vmatpush1.bf16.msra.mxu0 %v2283
    %2319 = vmatprep.subr.bf16.mxu0 0
    %2320 = vmatpush1.bf16.msra.mxu0 %v2284
    %2321 = vmatprep.subr.bf16.mxu0 0
    %2322 = vmatpush1.bf16.msra.mxu0 %v2285
    %2323 = vmatprep.subr.bf16.mxu0 0
    %2324 = vmatpush1.bf16.msra.mxu0 0
    %2325 = vmatprep.subr.bf16.mxu0 0
    %2326 = vmatpush1.bf16.msra.mxu0 0
    %2327 = vmatprep.subr.bf16.mxu0 0
    %2328 = vmatpush1.bf16.msra.mxu0 0
    %2329 = vmatprep.subr.bf16.mxu0 0
    %2330 = vmatpush1.bf16.msra.mxu0 0
    %2331 = vmatprep.subr.bf16.mxu0 0
    %2332 = vmatpush1.bf16.msra.mxu0 0
    %2333 = vmatprep.subr.bf16.mxu0 0
    %2334 = vmatpush1.bf16.msra.mxu0 0
    %2335 = vmatprep.subr.bf16.mxu0 0
    %2336 = vmatpush1.bf16.msra.mxu0 0
    %2337 = vmatprep.subr.bf16.mxu0 0
    %2338 = vmatpush1.bf16.msra.mxu0 0
    %2339 = vmatprep.subr.bf16.mxu0 0
    %2340 = vmatpush1.bf16.msra.mxu0 0
    %2341 = vmatprep.subr.bf16.mxu0 0
    %2342 = vmatpush1.bf16.msra.mxu0 0
    %2343 = vmatprep.subr.bf16.mxu0 0
    %2344 = vmatpush1.bf16.msra.mxu0 0
    %2345 = vmatprep.subr.bf16.mxu0 0
    %2346 = vmatpush1.bf16.msra.mxu0 0
    %2347 = vmatprep.mubr.bf16.mxu0 0
    %2348 = vmatmul.mubr.bf16.gmra.mrb[0].mxu0 %v2292
    %v2349 = vpop.f32.mrb[0].mxu0
    %v2350 = vadd.f32 %v2264, %v2349
    %v2351 = vpop.f32.mrb[0].mxu0
    %v2352 = vpop.f32.mrb[0].mxu0
    %v2353 = vadd.f32 %v2264, %v2352
    %v2354 = vpop.f32.mrb[0].mxu0
    %2355 = vmatprep.mubr.bf16.mxu0 0
    %2356 = vmatmul.mubr.bf16.gmra.mrb[0].mxu0 %v2295
    %v2357 = vpop.f32.mrb[0].mxu0
    %v2358 = vadd.f32 %v2264, %v2357
    %v2359 = vpop.f32.mrb[0].mxu0
    %v2360 = vpop.f32.mrb[0].mxu0
    %v2361 = vadd.f32 %v2264, %v2360
    %v2362 = vpop.f32.mrb[0].mxu0
    %2363 = vmatprep.mubr.bf16.mxu0 0
    %2364 = vmatmul.mubr.bf16.gmra.mrb[0].mxu0 %v2298
    %v2365 = vpop.f32.mrb[0].mxu0
    %v2366 = vadd.f32 %v2264, %v2365
    %v2367 = vpop.f32.mrb[0].mxu0
    %v2368 = vpop.f32.mrb[0].mxu0
    %v2369 = vadd.f32 %v2264, %v2368
    %v2370 = vpop.f32.mrb[0].mxu0
    %2371 = vmatprep.mubr.bf16.mxu0 0
    %2372 = vmatmul.mubr.bf16.gmra.mrb[0].mxu0 %v2301
    %v2373 = vpop.f32.mrb[0].mxu0
    %v2374 = vadd.f32 %v2264, %v2373
    %v2375 = vpop.f32.mrb[0].mxu0
    %v2376 = vpop.f32.mrb[0].mxu0
    %v2377 = vadd.f32 %v2264, %v2376
    %v2378 = vpop.f32.mrb[0].mxu0
    %2379 = vmatprep.mubr.bf16.mxu0 0
    %2380 = vmatmul.mubr.bf16.gmra.mrb[0].mxu0 %v2304
    %v2381 = vpop.f32.mrb[0].mxu0
    %v2382 = vadd.f32 %v2264, %v2381
    %v2383 = vpop.f32.mrb[0].mxu0
    %v2384 = vpop.f32.mrb[0].mxu0
    %v2385 = vadd.f32 %v2264, %v2384
    %v2386 = vpop.f32.mrb[0].mxu0
    %2387 = vmatprep.mubr.bf16.mxu0 0
    %2388 = vmatmul.mubr.bf16.gmra.mrb[0].mxu0 %v2307
    %v2389 = vpop.f32.mrb[0].mxu0
    %v2390 = vadd.f32 %v2264, %v2389
    %v2391 = vpop.f32.mrb[0].mxu0
    %v2392 = vpop.f32.mrb[0].mxu0
    %v2393 = vadd.f32 %v2264, %v2392
    %v2394 = vpop.f32.mrb[0].mxu0
    %2395 = vmatprep.mubr.bf16.mxu0 0
    %2396 = vmatmul.mubr.bf16.gmra.mrb[0].mxu0 %v2310
    %v2397 = vpop.f32.mrb[0].mxu0
    %v2398 = vadd.f32 %v2264, %v2397
    %v2399 = vpop.f32.mrb[0].mxu0
    %v2400 = vpop.f32.mrb[0].mxu0
    %v2401 = vadd.f32 %v2264, %v2400
    %v2402 = vpop.f32.mrb[0].mxu0
    %2403 = vmatprep.mubr.bf16.mxu0 0
    %2404 = vmatmul.mubr.bf16.gmra.mrb[0].mxu0 %v2313
    %v2405 = vpop.f32.mrb[0].mxu0
    %v2406 = vadd.f32 %v2264, %v2405
    %v2407 = vpop.f32.mrb[0].mxu0
    %v2408 = vpop.f32.mrb[0].mxu0
    %v2409 = vadd.f32 %v2264, %v2408
    %v2410 = vpop.f32.mrb[0].mxu0
    %2411 = vdwg.mxu0
    %v2412 = vsub.f32 0.0, %v2350
    %v2413 = vsub.f32 0.0, %v2353
    %v2414 = vsub.f32 0.0, %v2358
    %v2415 = vsub.f32 0.0, %v2361
    %v2416 = vsub.f32 0.0, %v2366
    %v2417 = vsub.f32 0.0, %v2369
    %v2418 = vsub.f32 0.0, %v2374
    %v2419 = vsub.f32 0.0, %v2377
    %v2420 = vsub.f32 0.0, %v2382
    %v2421 = vsub.f32 0.0, %v2385
    %v2422 = vsub.f32 0.0, %v2390
    %v2423 = vsub.f32 0.0, %v2393
    %v2424 = vsub.f32 0.0, %v2398
    %v2425 = vsub.f32 0.0, %v2401
    %v2426 = vsub.f32 0.0, %v2406
    %v2427 = vsub.f32 0.0, %v2409
    %v2428 = vmul.f32 %v2412, 1.442695
    %v2429 = vpow.pop %v2428
    %v2430 = vmul.f32 %v2413, 1.442695
    %v2431 = vpow.pop %v2430
    %v2432 = vmul.f32 %v2414, 1.442695
    %v2433 = vpow.pop %v2432
    %v2434 = vmul.f32 %v2415, 1.442695
    %v2435 = vpow.pop %v2434
    %v2436 = vmul.f32 %v2416, 1.442695
    %v2437 = vpow.pop %v2436
    %v2438 = vmul.f32 %v2417, 1.442695
    %v2439 = vpow.pop %v2438
    %v2440 = vmul.f32 %v2418, 1.442695
    %v2441 = vpow.pop %v2440
    %v2442 = vmul.f32 %v2419, 1.442695
    %v2443 = vpow.pop %v2442
    %v2444 = vmul.f32 %v2420, 1.442695
    %v2445 = vpow.pop %v2444
    %v2446 = vmul.f32 %v2421, 1.442695
    %v2447 = vpow.pop %v2446
    %v2448 = vmul.f32 %v2422, 1.442695
    %v2449 = vpow.pop %v2448
    %v2450 = vmul.f32 %v2423, 1.442695
    %v2451 = vpow.pop %v2450
    %v2452 = vmul.f32 %v2424, 1.442695
    %v2453 = vpow.pop %v2452
    %v2454 = vmul.f32 %v2425, 1.442695
    %v2455 = vpow.pop %v2454
    %v2456 = vmul.f32 %v2426, 1.442695
    %v2457 = vpow.pop %v2456
    %v2458 = vmul.f32 %v2427, 1.442695
    %v2459 = vpow.pop %v2458
    %v2460 = vadd.f32 %v2429, 1.0
    %v2461 = vadd.f32 %v2431, 1.0
    %v2462 = vadd.f32 %v2433, 1.0
    %v2463 = vadd.f32 %v2435, 1.0
    %v2464 = vadd.f32 %v2437, 1.0
    %v2465 = vadd.f32 %v2439, 1.0
    %v2466 = vadd.f32 %v2441, 1.0
    %v2467 = vadd.f32 %v2443, 1.0
    %v2468 = vadd.f32 %v2445, 1.0
    %v2469 = vadd.f32 %v2447, 1.0
    %v2470 = vadd.f32 %v2449, 1.0
    %v2471 = vadd.f32 %v2451, 1.0
    %v2472 = vadd.f32 %v2453, 1.0
    %v2473 = vadd.f32 %v2455, 1.0
    %v2474 = vadd.f32 %v2457, 1.0
    %v2475 = vadd.f32 %v2459, 1.0
    %v2476 = vrcp.pop %v2460
    %v2477 = vmul.f32 1.0, %v2476
    %v2478 = vrcp.pop %v2461
    %v2479 = vmul.f32 1.0, %v2478
    %v2480 = vrcp.pop %v2462
    %v2481 = vmul.f32 1.0, %v2480
    %v2482 = vrcp.pop %v2463
    %v2483 = vmul.f32 1.0, %v2482
    %v2484 = vrcp.pop %v2464
    %v2485 = vmul.f32 1.0, %v2484
    %v2486 = vrcp.pop %v2465
    %v2487 = vmul.f32 1.0, %v2486
    %v2488 = vrcp.pop %v2466
    %v2489 = vmul.f32 1.0, %v2488
    %v2490 = vrcp.pop %v2467
    %v2491 = vmul.f32 1.0, %v2490
    %v2492 = vrcp.pop %v2468
    %v2493 = vmul.f32 1.0, %v2492
    %v2494 = vrcp.pop %v2469
    %v2495 = vmul.f32 1.0, %v2494
    %v2496 = vrcp.pop %v2470
    %v2497 = vmul.f32 1.0, %v2496
    %v2498 = vrcp.pop %v2471
    %v2499 = vmul.f32 1.0, %v2498
    %v2500 = vrcp.pop %v2472
    %v2501 = vmul.f32 1.0, %v2500
    %v2502 = vrcp.pop %v2473
    %v2503 = vmul.f32 1.0, %v2502
    %v2504 = vrcp.pop %v2474
    %v2505 = vmul.f32 1.0, %v2504
    %v2506 = vrcp.pop %v2475
    %v2507 = vmul.f32 1.0, %v2506
    %v2508 = vmul.f32 %v2477, 1.002
    %v2509 = vmul.f32 %v2479, 1.002
    %v2510 = vmul.f32 %v2481, 1.002
    %v2511 = vmul.f32 %v2483, 1.002
    %v2512 = vmul.f32 %v2485, 1.002
    %v2513 = vmul.f32 %v2487, 1.002
    %v2514 = vmul.f32 %v2489, 1.002
    %v2515 = vmul.f32 %v2491, 1.002
    %v2516 = vmul.f32 %v2493, 1.002
    %v2517 = vmul.f32 %v2495, 1.002
    %v2518 = vmul.f32 %v2497, 1.002
    %v2519 = vmul.f32 %v2499, 1.002
    %v2520 = vmul.f32 %v2501, 1.002
    %v2521 = vmul.f32 %v2503, 1.002
    %v2522 = vmul.f32 %v2505, 1.002
    %v2523 = vmul.f32 %v2507, 1.002
    %v2524 = vsub.f32 %v2508, 0.001
    %v2525 = vsub.f32 %v2509, 0.001
    %v2526 = vsub.f32 %v2510, 0.001
    %v2527 = vsub.f32 %v2511, 0.001
    %v2528 = vsub.f32 %v2512, 0.001
    %v2529 = vsub.f32 %v2513, 0.001
    %v2530 = vsub.f32 %v2514, 0.001
    %v2531 = vsub.f32 %v2515, 0.001
    %v2532 = vsub.f32 %v2516, 0.001
    %v2533 = vsub.f32 %v2517, 0.001
    %v2534 = vsub.f32 %v2518, 0.001
    %v2535 = vsub.f32 %v2519, 0.001
    %v2536 = vsub.f32 %v2520, 0.001
    %v2537 = vsub.f32 %v2521, 0.001
    %v2538 = vsub.f32 %v2522, 0.001
    %v2539 = vsub.f32 %v2523, 0.001
    %v2540 = vadd.f32 %v1913, -1.0
    %v2541 = vadd.f32 %v1917, -1.0
    %v2542 = vadd.f32 %v1923, -1.0
    %v2543 = vadd.f32 %v1927, -1.0
    %v2544 = vadd.f32 %v1933, -1.0
    %v2545 = vadd.f32 %v1937, -1.0
    %v2546 = vadd.f32 %v1943, -1.0
    %v2547 = vadd.f32 %v1947, -1.0
    %v2548 = vadd.f32 %v1953, -1.0
    %v2549 = vadd.f32 %v1957, -1.0
    %v2550 = vadd.f32 %v1963, -1.0
    %v2551 = vadd.f32 %v1967, -1.0
    %v2552 = vadd.f32 %v1973, -1.0
    %v2553 = vadd.f32 %v1977, -1.0
    %v2554 = vadd.f32 %v1983, -1.0
    %v2555 = vadd.f32 %v1987, -1.0
    %v2556 = vmax.f32 %v2540, 0.0
    %v2557 = vmax.f32 %v2541, 0.0
    %v2558 = vmax.f32 %v2542, 0.0
    %v2559 = vmax.f32 %v2543, 0.0
    %v2560 = vmax.f32 %v2544, 0.0
    %v2561 = vmax.f32 %v2545, 0.0
    %v2562 = vmax.f32 %v2546, 0.0
    %v2563 = vmax.f32 %v2547, 0.0
    %v2564 = vmax.f32 %v2548, 0.0
    %v2565 = vmax.f32 %v2549, 0.0
    %v2566 = vmax.f32 %v2550, 0.0
    %v2567 = vmax.f32 %v2551, 0.0
    %v2568 = vmax.f32 %v2552, 0.0
    %v2569 = vmax.f32 %v2553, 0.0
    %v2570 = vmax.f32 %v2554, 0.0
    %v2571 = vmax.f32 %v2555, 0.0
    %v2572 = vand.u32 2147483647, %v2540
    %v2573 = vand.u32 2147483647, %v2541
    %v2574 = vand.u32 2147483647, %v2542
    %v2575 = vand.u32 2147483647, %v2543
    %v2576 = vand.u32 2147483647, %v2544
    %v2577 = vand.u32 2147483647, %v2545
    %v2578 = vand.u32 2147483647, %v2546
    %v2579 = vand.u32 2147483647, %v2547
    %v2580 = vand.u32 2147483647, %v2548
    %v2581 = vand.u32 2147483647, %v2549
    %v2582 = vand.u32 2147483647, %v2550
    %v2583 = vand.u32 2147483647, %v2551
    %v2584 = vand.u32 2147483647, %v2552
    %v2585 = vand.u32 2147483647, %v2553
    %v2586 = vand.u32 2147483647, %v2554
    %v2587 = vand.u32 2147483647, %v2555
    %v2588 = vsub.f32 0.0, %v2572
    %v2589 = vsub.f32 0.0, %v2573
    %v2590 = vsub.f32 0.0, %v2574
    %v2591 = vsub.f32 0.0, %v2575
    %v2592 = vsub.f32 0.0, %v2576
    %v2593 = vsub.f32 0.0, %v2577
    %v2594 = vsub.f32 0.0, %v2578
    %v2595 = vsub.f32 0.0, %v2579
    %v2596 = vsub.f32 0.0, %v2580
    %v2597 = vsub.f32 0.0, %v2581
    %v2598 = vsub.f32 0.0, %v2582
    %v2599 = vsub.f32 0.0, %v2583
    %v2600 = vsub.f32 0.0, %v2584
    %v2601 = vsub.f32 0.0, %v2585
    %v2602 = vsub.f32 0.0, %v2586
    %v2603 = vsub.f32 0.0, %v2587
    %v2604 = vmul.f32 %v2588, 1.442695
    %v2605 = vpow.pop %v2604
    %v2606 = vmul.f32 %v2589, 1.442695
    %v2607 = vpow.pop %v2606
    %v2608 = vmul.f32 %v2590, 1.442695
    %v2609 = vpow.pop %v2608
    %v2610 = vmul.f32 %v2591, 1.442695
    %v2611 = vpow.pop %v2610
    %v2612 = vmul.f32 %v2592, 1.442695
    %v2613 = vpow.pop %v2612
    %v2614 = vmul.f32 %v2593, 1.442695
    %v2615 = vpow.pop %v2614
    %v2616 = vmul.f32 %v2594, 1.442695
    %v2617 = vpow.pop %v2616
    %v2618 = vmul.f32 %v2595, 1.442695
    %v2619 = vpow.pop %v2618
    %v2620 = vmul.f32 %v2596, 1.442695
    %v2621 = vpow.pop %v2620
    %v2622 = vmul.f32 %v2597, 1.442695
    %v2623 = vpow.pop %v2622
    %v2624 = vmul.f32 %v2598, 1.442695
    %v2625 = vpow.pop %v2624
    %v2626 = vmul.f32 %v2599, 1.442695
    %v2627 = vpow.pop %v2626
    %v2628 = vmul.f32 %v2600, 1.442695
    %v2629 = vpow.pop %v2628
    %v2630 = vmul.f32 %v2601, 1.442695
    %v2631 = vpow.pop %v2630
    %v2632 = vmul.f32 %v2602, 1.442695
    %v2633 = vpow.pop %v2632
    %v2634 = vmul.f32 %v2603, 1.442695
    %v2635 = vpow.pop %v2634
    %v2636 = vadd.f32 %v2605, 1.0
    %v2637 = vadd.f32 %v2607, 1.0
    %v2638 = vadd.f32 %v2609, 1.0
    %v2639 = vadd.f32 %v2611, 1.0
    %v2640 = vadd.f32 %v2613, 1.0
    %v2641 = vadd.f32 %v2615, 1.0
    %v2642 = vadd.f32 %v2617, 1.0
    %v2643 = vadd.f32 %v2619, 1.0
    %v2644 = vadd.f32 %v2621, 1.0
    %v2645 = vadd.f32 %v2623, 1.0
    %v2646 = vadd.f32 %v2625, 1.0
    %v2647 = vadd.f32 %v2627, 1.0
    %v2648 = vadd.f32 %v2629, 1.0
    %v2649 = vadd.f32 %v2631, 1.0
    %v2650 = vadd.f32 %v2633, 1.0
    %v2651 = vadd.f32 %v2635, 1.0
    %v2652 = vlog2.pop %v2636
    %v2653 = vmul.f32 %v2652, 0.6931472
    %v2654 = vlog2.pop %v2637
    %v2655 = vmul.f32 %v2654, 0.6931472
    %v2656 = vlog2.pop %v2638
    %v2657 = vmul.f32 %v2656, 0.6931472
    %v2658 = vlog2.pop %v2639
    %v2659 = vmul.f32 %v2658, 0.6931472
    %v2660 = vlog2.pop %v2640
    %v2661 = vmul.f32 %v2660, 0.6931472
    %v2662 = vlog2.pop %v2641
    %v2663 = vmul.f32 %v2662, 0.6931472
    %v2664 = vlog2.pop %v2642
    %v2665 = vmul.f32 %v2664, 0.6931472
    %v2666 = vlog2.pop %v2643
    %v2667 = vmul.f32 %v2666, 0.6931472
    %v2668 = vlog2.pop %v2644
    %v2669 = vmul.f32 %v2668, 0.6931472
    %v2670 = vlog2.pop %v2645
    %v2671 = vmul.f32 %v2670, 0.6931472
    %v2672 = vlog2.pop %v2646
    %v2673 = vmul.f32 %v2672, 0.6931472
    %v2674 = vlog2.pop %v2647
    %v2675 = vmul.f32 %v2674, 0.6931472
    %v2676 = vlog2.pop %v2648
    %v2677 = vmul.f32 %v2676, 0.6931472
    %v2678 = vlog2.pop %v2649
    %v2679 = vmul.f32 %v2678, 0.6931472
    %v2680 = vlog2.pop %v2650
    %v2681 = vmul.f32 %v2680, 0.6931472
    %v2682 = vlog2.pop %v2651
    %v2683 = vmul.f32 %v2682, 0.6931472
    %v2684 = vadd.f32 %v2556, %v2653
    %v2685 = vadd.f32 %v2557, %v2655
    %v2686 = vadd.f32 %v2558, %v2657
    %v2687 = vadd.f32 %v2559, %v2659
    %v2688 = vadd.f32 %v2560, %v2661
    %v2689 = vadd.f32 %v2561, %v2663
    %v2690 = vadd.f32 %v2562, %v2665
    %v2691 = vadd.f32 %v2563, %v2667
    %v2692 = vadd.f32 %v2564, %v2669
    %v2693 = vadd.f32 %v2565, %v2671
    %v2694 = vadd.f32 %v2566, %v2673
    %v2695 = vadd.f32 %v2567, %v2675
    %v2696 = vadd.f32 %v2568, %v2677
    %v2697 = vadd.f32 %v2569, %v2679
    %v2698 = vadd.f32 %v2570, %v2681
    %v2699 = vadd.f32 %v2571, %v2683
    %v2700 = vlaneseq
    %v2701 = vand.u32 %v2700, 127
    %vm2702 = vcmp.eq.s32.totalorder %v2701, 3
    %2704 = vset.pattern.permute.xlu0 0
    %2705 = vperm.xlu0 %2704, %v2684
    %v2706 = vpop.permute.xlu0 %2705
    %2709 = vset.pattern.permute.xlu0 0
    %2710 = vperm.xlu0 %2709, %v2685
    %v2711 = vpop.permute.xlu0 %2710
    %2714 = vset.pattern.permute.xlu0 0
    %2715 = vperm.xlu0 %2714, %v2686
    %v2716 = vpop.permute.xlu0 %2715
    %2719 = vset.pattern.permute.xlu0 0
    %2720 = vperm.xlu0 %2719, %v2687
    %v2721 = vpop.permute.xlu0 %2720
    %2724 = vset.pattern.permute.xlu0 0
    %2725 = vperm.xlu0 %2724, %v2688
    %v2726 = vpop.permute.xlu0 %2725
    %2729 = vset.pattern.permute.xlu0 0
    %2730 = vperm.xlu0 %2729, %v2689
    %v2731 = vpop.permute.xlu0 %2730
    %2734 = vset.pattern.permute.xlu0 0
    %2735 = vperm.xlu0 %2734, %v2690
    %v2736 = vpop.permute.xlu0 %2735
    %2739 = vset.pattern.permute.xlu0 0
    %2740 = vperm.xlu0 %2739, %v2691
    %v2741 = vpop.permute.xlu0 %2740
    %2744 = vset.pattern.permute.xlu0 0
    %2745 = vperm.xlu0 %2744, %v2692
    %v2746 = vpop.permute.xlu0 %2745
    %2749 = vset.pattern.permute.xlu0 0
    %2750 = vperm.xlu0 %2749, %v2693
    %v2751 = vpop.permute.xlu0 %2750
    %2754 = vset.pattern.permute.xlu0 0
    %2755 = vperm.xlu0 %2754, %v2694
    %v2756 = vpop.permute.xlu0 %2755
    %2759 = vset.pattern.permute.xlu0 0
    %2760 = vperm.xlu0 %2759, %v2695
    %v2761 = vpop.permute.xlu0 %2760
    %2764 = vset.pattern.permute.xlu0 0
    %2765 = vperm.xlu0 %2764, %v2696
    %v2766 = vpop.permute.xlu0 %2765
    %2769 = vset.pattern.permute.xlu0 0
    %2770 = vperm.xlu0 %2769, %v2697
    %v2771 = vpop.permute.xlu0 %2770
    %2774 = vset.pattern.permute.xlu0 0
    %2775 = vperm.xlu0 %2774, %v2698
    %v2776 = vpop.permute.xlu0 %2775
    %2779 = vset.pattern.permute.xlu0 0
    %2780 = vperm.xlu0 %2779, %v2699
    %v2781 = vpop.permute.xlu0 %2780
    %v2783 = vsel %vm2702, %v2706, %v2524
    %v2784 = vsel %vm2702, %v2711, %v2525
    %v2785 = vsel %vm2702, %v2716, %v2526
    %v2786 = vsel %vm2702, %v2721, %v2527
    %v2787 = vsel %vm2702, %v2726, %v2528
    %v2788 = vsel %vm2702, %v2731, %v2529
    %v2789 = vsel %vm2702, %v2736, %v2530
    %v2790 = vsel %vm2702, %v2741, %v2531
    %v2791 = vsel %vm2702, %v2746, %v2532
    %v2792 = vsel %vm2702, %v2751, %v2533
    %v2793 = vsel %vm2702, %v2756, %v2534
    %v2794 = vsel %vm2702, %v2761, %v2535
    %v2795 = vsel %vm2702, %v2766, %v2536
    %v2796 = vsel %vm2702, %v2771, %v2537
    %v2797 = vsel %vm2702, %v2776, %v2538
    %v2798 = vsel %vm2702, %v2781, %v2539
    %vm2799 = vcmask 64512
    %2800 = vst.msk [vmem:[%s24] sm:$0xff] %vm2799, %v2783
    %2801 = vst.msk [vmem:[%s24 + $0x8] sm:$0xff] %vm2799, %v2784
    %2802 = vst.msk [vmem:[%s24 + $0x10] sm:$0xff] %vm2799, %v2785
    %2803 = vst.msk [vmem:[%s24 + $0x18] sm:$0xff] %vm2799, %v2786
    %2804 = vst.msk [vmem:[%s24 + $0x20] sm:$0xff] %vm2799, %v2787
    %2805 = vst.msk [vmem:[%s24 + $0x28] sm:$0xff] %vm2799, %v2788
    %2806 = vst.msk [vmem:[%s24 + $0x30] sm:$0xff] %vm2799, %v2789
    %2807 = vst.msk [vmem:[%s24 + $0x38] sm:$0xff] %vm2799, %v2790
    %2808 = vst.msk [vmem:[%s24 + $0x40] sm:$0xff] %vm2799, %v2791
    %2809 = vst.msk [vmem:[%s24 + $0x48] sm:$0xff] %vm2799, %v2792
    %2810 = vst.msk [vmem:[%s24 + $0x50] sm:$0xff] %vm2799, %v2793
    %2811 = vst.msk [vmem:[%s24 + $0x58] sm:$0xff] %vm2799, %v2794
    %2812 = vst.msk [vmem:[%s24 + $0x60] sm:$0xff] %vm2799, %v2795
    %2813 = vst.msk [vmem:[%s24 + $0x68] sm:$0xff] %vm2799, %v2796
    %2814 = vst.msk [vmem:[%s24 + $0x70] sm:$0xff] %vm2799, %v2797
    %2815 = vst.msk [vmem:[%s24 + $0x78] sm:$0xff] %vm2799, %v2798
    // Predicated region
    $region110: #{tpu_custom_call.1} parent=1 // pred_check
      _
    $region111: #{tpu_custom_call.1} parent=1 // pred_check_branch
      %2817 = sbr.rel (0) target = $region113
    $region112: #{tpu_custom_call.1} parent=1 // pred_region
      _
    $region113: #{tpu_custom_call.1} parent=1 // pred_fallthru
      _
    // Predicated region
    $region114: #{tpu_custom_call.1} parent=1 // pred_check
      _
    $region115: #{tpu_custom_call.1} parent=1 // pred_check_branch
      %2819 = sbr.rel (0) target = $region117
    $region116: #{tpu_custom_call.1} parent=1 // pred_region
      _
    $region117: #{tpu_custom_call.1} parent=1 // pred_fallthru
      _
    %2820 = vsyncpa [#allocation3], 1
    %2821 = vsyncpa [#allocation5], 1

</llo_original>
